<compile_context>
chip_gen: v7x
topology: tpu7x:2x2x1
jax: 0.10.0
libtpu: 0.0.40
codegen_flags: <defaults>
</compile_context>

<pallas_src>
import functools

import jax
import jax.numpy as jnp
from jax.experimental import pallas as pl
from jax.experimental.pallas import tpu as pltpu

SEQLEN = 8
INPUT_SIZE = 4
HIDDEN_SIZE = 32
NUM_LAYERS = 2
BATCH = 8  # one full sublane group: keeps every slice/concat tile-aligned


# ----------------------------------------------------------------------------
# Fused kernel: stacked LSTM -> fc2 (Linear+BN+LeakyReLU) -> LogSoftmax
# ----------------------------------------------------------------------------
def _make_generator_kernel(num_layers, batch, seqlen, hidden):
    B, T, H = batch, seqlen, hidden

    def kernel(*refs):
        x_ref = refs[0]                              # (T*B, D_in), row = t*B+b
        lstm_refs = refs[1:1 + 3 * num_layers]       # (w_ih, w_hh, bias) / layer
        fcw_ref, fcb_ref, fcg_ref, fcbeta_ref = refs[1 + 3 * num_layers:-1]
        o_ref = refs[-1]                             # (B, T*H) lane-dense

        # ---- Load weights once (hoisted out of the unrolled time loop). ----
        wih0 = lstm_refs[0][...]                     # (D_in, 4H)
        b0 = lstm_refs[2][...]                       # (1, 4H)
        whh = [lstm_refs[3 * l + 1][...] for l in range(num_layers)]
        wih_hi = [lstm_refs[3 * l][...] for l in range(1, num_layers)]
        b_hi = [lstm_refs[3 * l + 2][...] for l in range(1, num_layers)]

        # Hoisted layer-0 input projection: one matmul covers all T steps,
        # bias folded in once (nothing per-step except sublane slicing).
        gx0 = jnp.dot(x_ref[...], wih0,
                      preferred_element_type=jnp.float32) + b0   # (T*B, 4H)

        def cell(gates, c_prev):
            # gates: (B, 4H) == one 8x128 f32 vreg.  Gate order: i, f, g, o.
            sig = jax.nn.sigmoid(gates)              # one EUP pass over 4H
            i_g = sig[:, 0 * H:1 * H]
            f_g = sig[:, 1 * H:2 * H]
            o_g = sig[:, 3 * H:4 * H]
            g_g = jnp.tanh(gates[:, 2 * H:3 * H])    # tanh only on the g slice
            c_new = f_g * c_prev + i_g * g_g
            h_new = o_g * jnp.tanh(c_new)
            return h_new, c_new

        h = [jnp.zeros((B, H), jnp.float32) for _ in range(num_layers)]
        c = [jnp.zeros((B, H), jnp.float32) for _ in range(num_layers)]
        hs_top = []

        # Single fully-unrolled time loop over both layers (skewed pipeline):
        # layer l at step t needs only h_{l-1,t} and h_{l,t-1}, so layer-0
        # step t+1 and layer-1 step t have no data dependency and overlap.
        for t in range(T):
            gates0 = gx0[t * B:(t + 1) * B, :] + jnp.dot(
                h[0], whh[0], preferred_element_type=jnp.float32)
            h[0], c[0] = cell(gates0, c[0])
            for l in range(1, num_layers):
                # Per-step input projection for upper layers: it depends only
                # on h_{l-1,t}, i.e. it is OFF the l-layer recurrence critical
                # path and can be issued early by the scheduler.
                gates = (jnp.dot(h[l - 1], wih_hi[l - 1],
                                 preferred_element_type=jnp.float32)
                         + b_hi[l - 1]
                         + jnp.dot(h[l], whh[l],
                                   preferred_element_type=jnp.float32))
                h[l], c[l] = cell(gates, c[l])
            hs_top.append(h[num_layers - 1])

        # (B, T*H): column block t holds h_t  == PyTorch out.view(B, T*H).
        out_flat = jnp.concatenate(hs_top, axis=1)

        # fc2: Linear + BatchNorm1d (training-mode batch statistics, biased
        # variance, eps=1e-5) + LeakyReLU(0.2).
        y = jnp.dot(out_flat, fcw_ref[...],
                    preferred_element_type=jnp.float32) + fcb_ref[...]
        mean = jnp.mean(y, axis=0, keepdims=True)
        var = jnp.mean(jnp.square(y - mean), axis=0, keepdims=True)
        yn = (y - mean) * jax.lax.rsqrt(var + 1e-5)
        yn = yn * fcg_ref[...] + fcbeta_ref[...]
        act = jnp.where(yn >= 0, yn, 0.2 * yn)

        # LogSoftmax over each H-sized group (== dim=2 of the (B, T, H) view),
        # via static lane slices so no in-kernel reshapes / relayouts.
        blocks = []
        for t in range(T):
            blk = act[:, t * H:(t + 1) * H]
            m = jnp.max(blk, axis=-1, keepdims=True)
            s = jnp.sum(jnp.exp(blk - m), axis=-1, keepdims=True)
            blocks.append(blk - m - jnp.log(s))
        o_ref[...] = jnp.concatenate(blocks, axis=1)

    return kernel


# ----------------------------------------------------------------------------
# Parameters (deterministic, synthetic) and forward pass
# ----------------------------------------------------------------------------
def init_params(key):
    # fc1 parameters are intentionally not created: the reference discards the
    # fc1 branch's output, so it has no effect on the forward result.
    ks = jax.random.split(key, 2 + 3 * NUM_LAYERS)
    f2 = HIDDEN_SIZE * SEQLEN
    p = {
        "fc2_w": jax.random.normal(ks[0], (f2, f2), jnp.float32) * 0.1,
        "fc2_b": jax.random.normal(ks[1], (1, f2), jnp.float32) * 0.1,
        "fc2_g": jnp.ones((1, f2), jnp.float32),
        "fc2_beta": jnp.zeros((1, f2), jnp.float32),
    }
    lstm = []
    k = 2
    for layer in range(NUM_LAYERS):
        d_in = INPUT_SIZE if layer == 0 else HIDDEN_SIZE
        w_ih = jax.random.normal(ks[k], (d_in, 4 * HIDDEN_SIZE), jnp.float32) * 0.1
        w_hh = jax.random.normal(ks[k + 1], (HIDDEN_SIZE, 4 * HIDDEN_SIZE),
                                 jnp.float32) * 0.1
        # combined bias (b_ih + b_hh)
        bias = jax.random.normal(ks[k + 2], (1, 4 * HIDDEN_SIZE),
                                 jnp.float32) * 0.1
        lstm.append((w_ih, w_hh, bias))
        k += 3
    p["lstm"] = tuple(lstm)
    return p


def generator_forward(params, x):
    B, T, D = x.shape
    H = HIDDEN_SIZE

    # Time-major flatten (row = t*B + b): every per-step slice inside the
    # kernel becomes a contiguous, sublane-aligned static slice.
    x_tb = jnp.transpose(x, (1, 0, 2)).reshape(T * B, D)

    args = [x_tb]
    for (w_ih, w_hh, bias) in params["lstm"]:
        args += [w_ih, w_hh, bias]
    args += [params["fc2_w"], params["fc2_b"], params["fc2_g"],
             params["fc2_beta"]]

    vmem = lambda: pl.BlockSpec(memory_space=pltpu.MemorySpace.VMEM)
    out_flat = pl.pallas_call(
        _make_generator_kernel(NUM_LAYERS, B, T, H),
        out_shape=jax.ShapeDtypeStruct((B, T * H), jnp.float32),
        in_specs=[vmem() for _ in args],
        out_specs=vmem(),
    )(*args)

    return out_flat.reshape(B, T, H)


if __name__ == "__main__":
    key = jax.random.PRNGKey(0)
    pkey, xkey = jax.random.split(key)
    params = init_params(pkey)
    x = jax.random.normal(xkey, (BATCH, SEQLEN, INPUT_SIZE), jnp.float32)

    fwd = jax.jit(functools.partial(generator_forward, params))
    out = fwd(x)
    jax.block_until_ready(out)
    assert out.shape == (BATCH, SEQLEN, HIDDEN_SIZE)
    print("KERNEL_OK")
</pallas_src>

<mosaic_0001>
module attributes {stable_mosaic.version = 11 : i64} {
  func.func @kernel(%arg0: memref<64x4xf32, #tpu.memory_space<vmem>>, %arg1: memref<4x128xf32, #tpu.memory_space<vmem>>, %arg2: memref<32x128xf32, #tpu.memory_space<vmem>>, %arg3: memref<1x128xf32, #tpu.memory_space<vmem>>, %arg4: memref<32x128xf32, #tpu.memory_space<vmem>>, %arg5: memref<32x128xf32, #tpu.memory_space<vmem>>, %arg6: memref<1x128xf32, #tpu.memory_space<vmem>>, %arg7: memref<256x256xf32, #tpu.memory_space<vmem>>, %arg8: memref<1x256xf32, #tpu.memory_space<vmem>>, %arg9: memref<1x256xf32, #tpu.memory_space<vmem>>, %arg10: memref<1x256xf32, #tpu.memory_space<vmem>>, %arg11: memref<8x256xf32, #tpu.memory_space<vmem>>) attributes {dimension_semantics = [], scalar_prefetch = 0 : i64, scratch_operands = 0 : i64, tpu.core_type = #tpu.core_type<tc>} {
    %c0 = arith.constant 0 : index
    %c0_0 = arith.constant 0 : index
    %0 = vector.load %arg1[%c0, %c0_0] : memref<4x128xf32, #tpu.memory_space<vmem>>, vector<4x128xf32>
    %c0_1 = arith.constant 0 : index
    %c0_2 = arith.constant 0 : index
    %1 = vector.load %arg3[%c0_1, %c0_2] : memref<1x128xf32, #tpu.memory_space<vmem>>, vector<1x128xf32>
    %c0_3 = arith.constant 0 : index
    %c0_4 = arith.constant 0 : index
    %2 = vector.load %arg2[%c0_3, %c0_4] : memref<32x128xf32, #tpu.memory_space<vmem>>, vector<32x128xf32>
    %c0_5 = arith.constant 0 : index
    %c0_6 = arith.constant 0 : index
    %3 = vector.load %arg5[%c0_5, %c0_6] : memref<32x128xf32, #tpu.memory_space<vmem>>, vector<32x128xf32>
    %c0_7 = arith.constant 0 : index
    %c0_8 = arith.constant 0 : index
    %4 = vector.load %arg4[%c0_7, %c0_8] : memref<32x128xf32, #tpu.memory_space<vmem>>, vector<32x128xf32>
    %c0_9 = arith.constant 0 : index
    %c0_10 = arith.constant 0 : index
    %5 = vector.load %arg6[%c0_9, %c0_10] : memref<1x128xf32, #tpu.memory_space<vmem>>, vector<1x128xf32>
    %c0_11 = arith.constant 0 : index
    %c0_12 = arith.constant 0 : index
    %6 = vector.load %arg0[%c0_11, %c0_12] : memref<64x4xf32, #tpu.memory_space<vmem>>, vector<64x4xf32>
    %cst = arith.constant dense<0.000000e+00> : vector<64x128xf32>
    %7 = tpu.matmul %6, %0, %cst {dimension_numbers = #tpu.dot_dimension_numbers<[1], [0], [0], [1], [0, 0, 1, 1], [], []>} : vector<64x4xf32>, vector<4x128xf32>, vector<64x128xf32> -> vector<64x128xf32>
    %8 = vector.broadcast %1 : vector<1x128xf32> to vector<64x128xf32>
    %9 = arith.addf %7, %8 : vector<64x128xf32>
    %cst_13 = arith.constant 0.000000e+00 : f32
    %10 = vector.broadcast %cst_13 : f32 to vector<8x32xf32>
    %cst_14 = arith.constant 0.000000e+00 : f32
    %11 = vector.broadcast %cst_14 : f32 to vector<8x32xf32>
    %cst_15 = arith.constant 0.000000e+00 : f32
    %12 = vector.broadcast %cst_15 : f32 to vector<8x32xf32>
    %cst_16 = arith.constant 0.000000e+00 : f32
    %13 = vector.broadcast %cst_16 : f32 to vector<8x32xf32>
    %14 = vector.extract_strided_slice %9 {offsets = [0, 0], sizes = [8, 128], strides = [1, 1]} : vector<64x128xf32> to vector<8x128xf32>
    %cst_17 = arith.constant dense<0.000000e+00> : vector<8x128xf32>
    %15 = tpu.matmul %10, %2, %cst_17 {dimension_numbers = #tpu.dot_dimension_numbers<[1], [0], [0], [1], [0, 0, 1, 1], [], []>} : vector<8x32xf32>, vector<32x128xf32>, vector<8x128xf32> -> vector<8x128xf32>
    %16 = arith.addf %14, %15 : vector<8x128xf32>
    %17 = arith.negf %16 : vector<8x128xf32>
    %18 = math.exp %17 : vector<8x128xf32>
    %cst_18 = arith.constant 1.000000e+00 : f32
    %19 = vector.broadcast %cst_18 : f32 to vector<8x128xf32>
    %20 = arith.addf %19, %18 : vector<8x128xf32>
    %21 = arith.divf %19, %20 : vector<8x128xf32>
    %22 = vector.extract_strided_slice %21 {offsets = [0, 0], sizes = [8, 32], strides = [1, 1]} : vector<8x128xf32> to vector<8x32xf32>
    %23 = vector.extract_strided_slice %21 {offsets = [0, 32], sizes = [8, 32], strides = [1, 1]} : vector<8x128xf32> to vector<8x32xf32>
    %24 = vector.extract_strided_slice %21 {offsets = [0, 96], sizes = [8, 32], strides = [1, 1]} : vector<8x128xf32> to vector<8x32xf32>
    %25 = vector.extract_strided_slice %16 {offsets = [0, 64], sizes = [8, 32], strides = [1, 1]} : vector<8x128xf32> to vector<8x32xf32>
    %26 = math.tanh %25 : vector<8x32xf32>
    %27 = arith.mulf %23, %12 : vector<8x32xf32>
    %28 = arith.mulf %22, %26 : vector<8x32xf32>
    %29 = arith.addf %27, %28 : vector<8x32xf32>
    %30 = math.tanh %29 : vector<8x32xf32>
    %31 = arith.mulf %24, %30 : vector<8x32xf32>
    %cst_19 = arith.constant dense<0.000000e+00> : vector<8x128xf32>
    %32 = tpu.matmul %31, %4, %cst_19 {dimension_numbers = #tpu.dot_dimension_numbers<[1], [0], [0], [1], [0, 0, 1, 1], [], []>} : vector<8x32xf32>, vector<32x128xf32>, vector<8x128xf32> -> vector<8x128xf32>
    %33 = vector.broadcast %5 : vector<1x128xf32> to vector<8x128xf32>
    %34 = arith.addf %32, %33 : vector<8x128xf32>
    %cst_20 = arith.constant dense<0.000000e+00> : vector<8x128xf32>
    %35 = tpu.matmul %11, %3, %cst_20 {dimension_numbers = #tpu.dot_dimension_numbers<[1], [0], [0], [1], [0, 0, 1, 1], [], []>} : vector<8x32xf32>, vector<32x128xf32>, vector<8x128xf32> -> vector<8x128xf32>
    %36 = arith.addf %34, %35 : vector<8x128xf32>
    %37 = arith.negf %36 : vector<8x128xf32>
    %38 = math.exp %37 : vector<8x128xf32>
    %cst_21 = arith.constant 1.000000e+00 : f32
    %39 = vector.broadcast %cst_21 : f32 to vector<8x128xf32>
    %40 = arith.addf %39, %38 : vector<8x128xf32>
    %41 = arith.divf %39, %40 : vector<8x128xf32>
    %42 = vector.extract_strided_slice %41 {offsets = [0, 0], sizes = [8, 32], strides = [1, 1]} : vector<8x128xf32> to vector<8x32xf32>
    %43 = vector.extract_strided_slice %41 {offsets = [0, 32], sizes = [8, 32], strides = [1, 1]} : vector<8x128xf32> to vector<8x32xf32>
    %44 = vector.extract_strided_slice %41 {offsets = [0, 96], sizes = [8, 32], strides = [1, 1]} : vector<8x128xf32> to vector<8x32xf32>
    %45 = vector.extract_strided_slice %36 {offsets = [0, 64], sizes = [8, 32], strides = [1, 1]} : vector<8x128xf32> to vector<8x32xf32>
    %46 = math.tanh %45 : vector<8x32xf32>
    %47 = arith.mulf %43, %13 : vector<8x32xf32>
    %48 = arith.mulf %42, %46 : vector<8x32xf32>
    %49 = arith.addf %47, %48 : vector<8x32xf32>
    %50 = math.tanh %49 : vector<8x32xf32>
    %51 = arith.mulf %44, %50 : vector<8x32xf32>
    %52 = vector.extract_strided_slice %9 {offsets = [8, 0], sizes = [8, 128], strides = [1, 1]} : vector<64x128xf32> to vector<8x128xf32>
    %cst_22 = arith.constant dense<0.000000e+00> : vector<8x128xf32>
    %53 = tpu.matmul %31, %2, %cst_22 {dimension_numbers = #tpu.dot_dimension_numbers<[1], [0], [0], [1], [0, 0, 1, 1], [], []>} : vector<8x32xf32>, vector<32x128xf32>, vector<8x128xf32> -> vector<8x128xf32>
    %54 = arith.addf %52, %53 : vector<8x128xf32>
    %55 = arith.negf %54 : vector<8x128xf32>
    %56 = math.exp %55 : vector<8x128xf32>
    %cst_23 = arith.constant 1.000000e+00 : f32
    %57 = vector.broadcast %cst_23 : f32 to vector<8x128xf32>
    %58 = arith.addf %57, %56 : vector<8x128xf32>
    %59 = arith.divf %57, %58 : vector<8x128xf32>
    %60 = vector.extract_strided_slice %59 {offsets = [0, 0], sizes = [8, 32], strides = [1, 1]} : vector<8x128xf32> to vector<8x32xf32>
    %61 = vector.extract_strided_slice %59 {offsets = [0, 32], sizes = [8, 32], strides = [1, 1]} : vector<8x128xf32> to vector<8x32xf32>
    %62 = vector.extract_strided_slice %59 {offsets = [0, 96], sizes = [8, 32], strides = [1, 1]} : vector<8x128xf32> to vector<8x32xf32>
    %63 = vector.extract_strided_slice %54 {offsets = [0, 64], sizes = [8, 32], strides = [1, 1]} : vector<8x128xf32> to vector<8x32xf32>
    %64 = math.tanh %63 : vector<8x32xf32>
    %65 = arith.mulf %61, %29 : vector<8x32xf32>
    %66 = arith.mulf %60, %64 : vector<8x32xf32>
    %67 = arith.addf %65, %66 : vector<8x32xf32>
    %68 = math.tanh %67 : vector<8x32xf32>
    %69 = arith.mulf %62, %68 : vector<8x32xf32>
    %cst_24 = arith.constant dense<0.000000e+00> : vector<8x128xf32>
    %70 = tpu.matmul %69, %4, %cst_24 {dimension_numbers = #tpu.dot_dimension_numbers<[1], [0], [0], [1], [0, 0, 1, 1], [], []>} : vector<8x32xf32>, vector<32x128xf32>, vector<8x128xf32> -> vector<8x128xf32>
    %71 = vector.broadcast %5 : vector<1x128xf32> to vector<8x128xf32>
    %72 = arith.addf %70, %71 : vector<8x128xf32>
    %cst_25 = arith.constant dense<0.000000e+00> : vector<8x128xf32>
    %73 = tpu.matmul %51, %3, %cst_25 {dimension_numbers = #tpu.dot_dimension_numbers<[1], [0], [0], [1], [0, 0, 1, 1], [], []>} : vector<8x32xf32>, vector<32x128xf32>, vector<8x128xf32> -> vector<8x128xf32>
    %74 = arith.addf %72, %73 : vector<8x128xf32>
    %75 = arith.negf %74 : vector<8x128xf32>
    %76 = math.exp %75 : vector<8x128xf32>
    %cst_26 = arith.constant 1.000000e+00 : f32
    %77 = vector.broadcast %cst_26 : f32 to vector<8x128xf32>
    %78 = arith.addf %77, %76 : vector<8x128xf32>
    %79 = arith.divf %77, %78 : vector<8x128xf32>
    %80 = vector.extract_strided_slice %79 {offsets = [0, 0], sizes = [8, 32], strides = [1, 1]} : vector<8x128xf32> to vector<8x32xf32>
    %81 = vector.extract_strided_slice %79 {offsets = [0, 32], sizes = [8, 32], strides = [1, 1]} : vector<8x128xf32> to vector<8x32xf32>
    %82 = vector.extract_strided_slice %79 {offsets = [0, 96], sizes = [8, 32], strides = [1, 1]} : vector<8x128xf32> to vector<8x32xf32>
    %83 = vector.extract_strided_slice %74 {offsets = [0, 64], sizes = [8, 32], strides = [1, 1]} : vector<8x128xf32> to vector<8x32xf32>
    %84 = math.tanh %83 : vector<8x32xf32>
    %85 = arith.mulf %81, %49 : vector<8x32xf32>
    %86 = arith.mulf %80, %84 : vector<8x32xf32>
    %87 = arith.addf %85, %86 : vector<8x32xf32>
    %88 = math.tanh %87 : vector<8x32xf32>
    %89 = arith.mulf %82, %88 : vector<8x32xf32>
    %90 = vector.extract_strided_slice %9 {offsets = [16, 0], sizes = [8, 128], strides = [1, 1]} : vector<64x128xf32> to vector<8x128xf32>
    %cst_27 = arith.constant dense<0.000000e+00> : vector<8x128xf32>
    %91 = tpu.matmul %69, %2, %cst_27 {dimension_numbers = #tpu.dot_dimension_numbers<[1], [0], [0], [1], [0, 0, 1, 1], [], []>} : vector<8x32xf32>, vector<32x128xf32>, vector<8x128xf32> -> vector<8x128xf32>
    %92 = arith.addf %90, %91 : vector<8x128xf32>
    %93 = arith.negf %92 : vector<8x128xf32>
    %94 = math.exp %93 : vector<8x128xf32>
    %cst_28 = arith.constant 1.000000e+00 : f32
    %95 = vector.broadcast %cst_28 : f32 to vector<8x128xf32>
    %96 = arith.addf %95, %94 : vector<8x128xf32>
    %97 = arith.divf %95, %96 : vector<8x128xf32>
    %98 = vector.extract_strided_slice %97 {offsets = [0, 0], sizes = [8, 32], strides = [1, 1]} : vector<8x128xf32> to vector<8x32xf32>
    %99 = vector.extract_strided_slice %97 {offsets = [0, 32], sizes = [8, 32], strides = [1, 1]} : vector<8x128xf32> to vector<8x32xf32>
    %100 = vector.extract_strided_slice %97 {offsets = [0, 96], sizes = [8, 32], strides = [1, 1]} : vector<8x128xf32> to vector<8x32xf32>
    %101 = vector.extract_strided_slice %92 {offsets = [0, 64], sizes = [8, 32], strides = [1, 1]} : vector<8x128xf32> to vector<8x32xf32>
    %102 = math.tanh %101 : vector<8x32xf32>
    %103 = arith.mulf %99, %67 : vector<8x32xf32>
    %104 = arith.mulf %98, %102 : vector<8x32xf32>
    %105 = arith.addf %103, %104 : vector<8x32xf32>
    %106 = math.tanh %105 : vector<8x32xf32>
    %107 = arith.mulf %100, %106 : vector<8x32xf32>
    %cst_29 = arith.constant dense<0.000000e+00> : vector<8x128xf32>
    %108 = tpu.matmul %107, %4, %cst_29 {dimension_numbers = #tpu.dot_dimension_numbers<[1], [0], [0], [1], [0, 0, 1, 1], [], []>} : vector<8x32xf32>, vector<32x128xf32>, vector<8x128xf32> -> vector<8x128xf32>
    %109 = vector.broadcast %5 : vector<1x128xf32> to vector<8x128xf32>
    %110 = arith.addf %108, %109 : vector<8x128xf32>
    %cst_30 = arith.constant dense<0.000000e+00> : vector<8x128xf32>
    %111 = tpu.matmul %89, %3, %cst_30 {dimension_numbers = #tpu.dot_dimension_numbers<[1], [0], [0], [1], [0, 0, 1, 1], [], []>} : vector<8x32xf32>, vector<32x128xf32>, vector<8x128xf32> -> vector<8x128xf32>
    %112 = arith.addf %110, %111 : vector<8x128xf32>
    %113 = arith.negf %112 : vector<8x128xf32>
    %114 = math.exp %113 : vector<8x128xf32>
    %cst_31 = arith.constant 1.000000e+00 : f32
    %115 = vector.broadcast %cst_31 : f32 to vector<8x128xf32>
    %116 = arith.addf %115, %114 : vector<8x128xf32>
    %117 = arith.divf %115, %116 : vector<8x128xf32>
    %118 = vector.extract_strided_slice %117 {offsets = [0, 0], sizes = [8, 32], strides = [1, 1]} : vector<8x128xf32> to vector<8x32xf32>
    %119 = vector.extract_strided_slice %117 {offsets = [0, 32], sizes = [8, 32], strides = [1, 1]} : vector<8x128xf32> to vector<8x32xf32>
    %120 = vector.extract_strided_slice %117 {offsets = [0, 96], sizes = [8, 32], strides = [1, 1]} : vector<8x128xf32> to vector<8x32xf32>
    %121 = vector.extract_strided_slice %112 {offsets = [0, 64], sizes = [8, 32], strides = [1, 1]} : vector<8x128xf32> to vector<8x32xf32>
    %122 = math.tanh %121 : vector<8x32xf32>
    %123 = arith.mulf %119, %87 : vector<8x32xf32>
    %124 = arith.mulf %118, %122 : vector<8x32xf32>
    %125 = arith.addf %123, %124 : vector<8x32xf32>
    %126 = math.tanh %125 : vector<8x32xf32>
    %127 = arith.mulf %120, %126 : vector<8x32xf32>
    %128 = vector.extract_strided_slice %9 {offsets = [24, 0], sizes = [8, 128], strides = [1, 1]} : vector<64x128xf32> to vector<8x128xf32>
    %cst_32 = arith.constant dense<0.000000e+00> : vector<8x128xf32>
    %129 = tpu.matmul %107, %2, %cst_32 {dimension_numbers = #tpu.dot_dimension_numbers<[1], [0], [0], [1], [0, 0, 1, 1], [], []>} : vector<8x32xf32>, vector<32x128xf32>, vector<8x128xf32> -> vector<8x128xf32>
    %130 = arith.addf %128, %129 : vector<8x128xf32>
    %131 = arith.negf %130 : vector<8x128xf32>
    %132 = math.exp %131 : vector<8x128xf32>
    %cst_33 = arith.constant 1.000000e+00 : f32
    %133 = vector.broadcast %cst_33 : f32 to vector<8x128xf32>
    %134 = arith.addf %133, %132 : vector<8x128xf32>
    %135 = arith.divf %133, %134 : vector<8x128xf32>
    %136 = vector.extract_strided_slice %135 {offsets = [0, 0], sizes = [8, 32], strides = [1, 1]} : vector<8x128xf32> to vector<8x32xf32>
    %137 = vector.extract_strided_slice %135 {offsets = [0, 32], sizes = [8, 32], strides = [1, 1]} : vector<8x128xf32> to vector<8x32xf32>
    %138 = vector.extract_strided_slice %135 {offsets = [0, 96], sizes = [8, 32], strides = [1, 1]} : vector<8x128xf32> to vector<8x32xf32>
    %139 = vector.extract_strided_slice %130 {offsets = [0, 64], sizes = [8, 32], strides = [1, 1]} : vector<8x128xf32> to vector<8x32xf32>
    %140 = math.tanh %139 : vector<8x32xf32>
    %141 = arith.mulf %137, %105 : vector<8x32xf32>
    %142 = arith.mulf %136, %140 : vector<8x32xf32>
    %143 = arith.addf %141, %142 : vector<8x32xf32>
    %144 = math.tanh %143 : vector<8x32xf32>
    %145 = arith.mulf %138, %144 : vector<8x32xf32>
    %cst_34 = arith.constant dense<0.000000e+00> : vector<8x128xf32>
    %146 = tpu.matmul %145, %4, %cst_34 {dimension_numbers = #tpu.dot_dimension_numbers<[1], [0], [0], [1], [0, 0, 1, 1], [], []>} : vector<8x32xf32>, vector<32x128xf32>, vector<8x128xf32> -> vector<8x128xf32>
    %147 = vector.broadcast %5 : vector<1x128xf32> to vector<8x128xf32>
    %148 = arith.addf %146, %147 : vector<8x128xf32>
    %cst_35 = arith.constant dense<0.000000e+00> : vector<8x128xf32>
    %149 = tpu.matmul %127, %3, %cst_35 {dimension_numbers = #tpu.dot_dimension_numbers<[1], [0], [0], [1], [0, 0, 1, 1], [], []>} : vector<8x32xf32>, vector<32x128xf32>, vector<8x128xf32> -> vector<8x128xf32>
    %150 = arith.addf %148, %149 : vector<8x128xf32>
    %151 = arith.negf %150 : vector<8x128xf32>
    %152 = math.exp %151 : vector<8x128xf32>
    %cst_36 = arith.constant 1.000000e+00 : f32
    %153 = vector.broadcast %cst_36 : f32 to vector<8x128xf32>
    %154 = arith.addf %153, %152 : vector<8x128xf32>
    %155 = arith.divf %153, %154 : vector<8x128xf32>
    %156 = vector.extract_strided_slice %155 {offsets = [0, 0], sizes = [8, 32], strides = [1, 1]} : vector<8x128xf32> to vector<8x32xf32>
    %157 = vector.extract_strided_slice %155 {offsets = [0, 32], sizes = [8, 32], strides = [1, 1]} : vector<8x128xf32> to vector<8x32xf32>
    %158 = vector.extract_strided_slice %155 {offsets = [0, 96], sizes = [8, 32], strides = [1, 1]} : vector<8x128xf32> to vector<8x32xf32>
    %159 = vector.extract_strided_slice %150 {offsets = [0, 64], sizes = [8, 32], strides = [1, 1]} : vector<8x128xf32> to vector<8x32xf32>
    %160 = math.tanh %159 : vector<8x32xf32>
    %161 = arith.mulf %157, %125 : vector<8x32xf32>
    %162 = arith.mulf %156, %160 : vector<8x32xf32>
    %163 = arith.addf %161, %162 : vector<8x32xf32>
    %164 = math.tanh %163 : vector<8x32xf32>
    %165 = arith.mulf %158, %164 : vector<8x32xf32>
    %166 = vector.extract_strided_slice %9 {offsets = [32, 0], sizes = [8, 128], strides = [1, 1]} : vector<64x128xf32> to vector<8x128xf32>
    %cst_37 = arith.constant dense<0.000000e+00> : vector<8x128xf32>
    %167 = tpu.matmul %145, %2, %cst_37 {dimension_numbers = #tpu.dot_dimension_numbers<[1], [0], [0], [1], [0, 0, 1, 1], [], []>} : vector<8x32xf32>, vector<32x128xf32>, vector<8x128xf32> -> vector<8x128xf32>
    %168 = arith.addf %166, %167 : vector<8x128xf32>
    %169 = arith.negf %168 : vector<8x128xf32>
    %170 = math.exp %169 : vector<8x128xf32>
    %cst_38 = arith.constant 1.000000e+00 : f32
    %171 = vector.broadcast %cst_38 : f32 to vector<8x128xf32>
    %172 = arith.addf %171, %170 : vector<8x128xf32>
    %173 = arith.divf %171, %172 : vector<8x128xf32>
    %174 = vector.extract_strided_slice %173 {offsets = [0, 0], sizes = [8, 32], strides = [1, 1]} : vector<8x128xf32> to vector<8x32xf32>
    %175 = vector.extract_strided_slice %173 {offsets = [0, 32], sizes = [8, 32], strides = [1, 1]} : vector<8x128xf32> to vector<8x32xf32>
    %176 = vector.extract_strided_slice %173 {offsets = [0, 96], sizes = [8, 32], strides = [1, 1]} : vector<8x128xf32> to vector<8x32xf32>
    %177 = vector.extract_strided_slice %168 {offsets = [0, 64], sizes = [8, 32], strides = [1, 1]} : vector<8x128xf32> to vector<8x32xf32>
    %178 = math.tanh %177 : vector<8x32xf32>
    %179 = arith.mulf %175, %143 : vector<8x32xf32>
    %180 = arith.mulf %174, %178 : vector<8x32xf32>
    %181 = arith.addf %179, %180 : vector<8x32xf32>
    %182 = math.tanh %181 : vector<8x32xf32>
    %183 = arith.mulf %176, %182 : vector<8x32xf32>
    %cst_39 = arith.constant dense<0.000000e+00> : vector<8x128xf32>
    %184 = tpu.matmul %183, %4, %cst_39 {dimension_numbers = #tpu.dot_dimension_numbers<[1], [0], [0], [1], [0, 0, 1, 1], [], []>} : vector<8x32xf32>, vector<32x128xf32>, vector<8x128xf32> -> vector<8x128xf32>
    %185 = vector.broadcast %5 : vector<1x128xf32> to vector<8x128xf32>
    %186 = arith.addf %184, %185 : vector<8x128xf32>
    %cst_40 = arith.constant dense<0.000000e+00> : vector<8x128xf32>
    %187 = tpu.matmul %165, %3, %cst_40 {dimension_numbers = #tpu.dot_dimension_numbers<[1], [0], [0], [1], [0, 0, 1, 1], [], []>} : vector<8x32xf32>, vector<32x128xf32>, vector<8x128xf32> -> vector<8x128xf32>
    %188 = arith.addf %186, %187 : vector<8x128xf32>
    %189 = arith.negf %188 : vector<8x128xf32>
    %190 = math.exp %189 : vector<8x128xf32>
    %cst_41 = arith.constant 1.000000e+00 : f32
    %191 = vector.broadcast %cst_41 : f32 to vector<8x128xf32>
    %192 = arith.addf %191, %190 : vector<8x128xf32>
    %193 = arith.divf %191, %192 : vector<8x128xf32>
    %194 = vector.extract_strided_slice %193 {offsets = [0, 0], sizes = [8, 32], strides = [1, 1]} : vector<8x128xf32> to vector<8x32xf32>
    %195 = vector.extract_strided_slice %193 {offsets = [0, 32], sizes = [8, 32], strides = [1, 1]} : vector<8x128xf32> to vector<8x32xf32>
    %196 = vector.extract_strided_slice %193 {offsets = [0, 96], sizes = [8, 32], strides = [1, 1]} : vector<8x128xf32> to vector<8x32xf32>
    %197 = vector.extract_strided_slice %188 {offsets = [0, 64], sizes = [8, 32], strides = [1, 1]} : vector<8x128xf32> to vector<8x32xf32>
    %198 = math.tanh %197 : vector<8x32xf32>
    %199 = arith.mulf %195, %163 : vector<8x32xf32>
    %200 = arith.mulf %194, %198 : vector<8x32xf32>
    %201 = arith.addf %199, %200 : vector<8x32xf32>
    %202 = math.tanh %201 : vector<8x32xf32>
    %203 = arith.mulf %196, %202 : vector<8x32xf32>
    %204 = vector.extract_strided_slice %9 {offsets = [40, 0], sizes = [8, 128], strides = [1, 1]} : vector<64x128xf32> to vector<8x128xf32>
    %cst_42 = arith.constant dense<0.000000e+00> : vector<8x128xf32>
    %205 = tpu.matmul %183, %2, %cst_42 {dimension_numbers = #tpu.dot_dimension_numbers<[1], [0], [0], [1], [0, 0, 1, 1], [], []>} : vector<8x32xf32>, vector<32x128xf32>, vector<8x128xf32> -> vector<8x128xf32>
    %206 = arith.addf %204, %205 : vector<8x128xf32>
    %207 = arith.negf %206 : vector<8x128xf32>
    %208 = math.exp %207 : vector<8x128xf32>
    %cst_43 = arith.constant 1.000000e+00 : f32
    %209 = vector.broadcast %cst_43 : f32 to vector<8x128xf32>
    %210 = arith.addf %209, %208 : vector<8x128xf32>
    %211 = arith.divf %209, %210 : vector<8x128xf32>
    %212 = vector.extract_strided_slice %211 {offsets = [0, 0], sizes = [8, 32], strides = [1, 1]} : vector<8x128xf32> to vector<8x32xf32>
    %213 = vector.extract_strided_slice %211 {offsets = [0, 32], sizes = [8, 32], strides = [1, 1]} : vector<8x128xf32> to vector<8x32xf32>
    %214 = vector.extract_strided_slice %211 {offsets = [0, 96], sizes = [8, 32], strides = [1, 1]} : vector<8x128xf32> to vector<8x32xf32>
    %215 = vector.extract_strided_slice %206 {offsets = [0, 64], sizes = [8, 32], strides = [1, 1]} : vector<8x128xf32> to vector<8x32xf32>
    %216 = math.tanh %215 : vector<8x32xf32>
    %217 = arith.mulf %213, %181 : vector<8x32xf32>
    %218 = arith.mulf %212, %216 : vector<8x32xf32>
    %219 = arith.addf %217, %218 : vector<8x32xf32>
    %220 = math.tanh %219 : vector<8x32xf32>
    %221 = arith.mulf %214, %220 : vector<8x32xf32>
    %cst_44 = arith.constant dense<0.000000e+00> : vector<8x128xf32>
    %222 = tpu.matmul %221, %4, %cst_44 {dimension_numbers = #tpu.dot_dimension_numbers<[1], [0], [0], [1], [0, 0, 1, 1], [], []>} : vector<8x32xf32>, vector<32x128xf32>, vector<8x128xf32> -> vector<8x128xf32>
    %223 = vector.broadcast %5 : vector<1x128xf32> to vector<8x128xf32>
    %224 = arith.addf %222, %223 : vector<8x128xf32>
    %cst_45 = arith.constant dense<0.000000e+00> : vector<8x128xf32>
    %225 = tpu.matmul %203, %3, %cst_45 {dimension_numbers = #tpu.dot_dimension_numbers<[1], [0], [0], [1], [0, 0, 1, 1], [], []>} : vector<8x32xf32>, vector<32x128xf32>, vector<8x128xf32> -> vector<8x128xf32>
    %226 = arith.addf %224, %225 : vector<8x128xf32>
    %227 = arith.negf %226 : vector<8x128xf32>
    %228 = math.exp %227 : vector<8x128xf32>
    %cst_46 = arith.constant 1.000000e+00 : f32
    %229 = vector.broadcast %cst_46 : f32 to vector<8x128xf32>
    %230 = arith.addf %229, %228 : vector<8x128xf32>
    %231 = arith.divf %229, %230 : vector<8x128xf32>
    %232 = vector.extract_strided_slice %231 {offsets = [0, 0], sizes = [8, 32], strides = [1, 1]} : vector<8x128xf32> to vector<8x32xf32>
    %233 = vector.extract_strided_slice %231 {offsets = [0, 32], sizes = [8, 32], strides = [1, 1]} : vector<8x128xf32> to vector<8x32xf32>
    %234 = vector.extract_strided_slice %231 {offsets = [0, 96], sizes = [8, 32], strides = [1, 1]} : vector<8x128xf32> to vector<8x32xf32>
    %235 = vector.extract_strided_slice %226 {offsets = [0, 64], sizes = [8, 32], strides = [1, 1]} : vector<8x128xf32> to vector<8x32xf32>
    %236 = math.tanh %235 : vector<8x32xf32>
    %237 = arith.mulf %233, %201 : vector<8x32xf32>
    %238 = arith.mulf %232, %236 : vector<8x32xf32>
    %239 = arith.addf %237, %238 : vector<8x32xf32>
    %240 = math.tanh %239 : vector<8x32xf32>
    %241 = arith.mulf %234, %240 : vector<8x32xf32>
    %242 = vector.extract_strided_slice %9 {offsets = [48, 0], sizes = [8, 128], strides = [1, 1]} : vector<64x128xf32> to vector<8x128xf32>
    %cst_47 = arith.constant dense<0.000000e+00> : vector<8x128xf32>
    %243 = tpu.matmul %221, %2, %cst_47 {dimension_numbers = #tpu.dot_dimension_numbers<[1], [0], [0], [1], [0, 0, 1, 1], [], []>} : vector<8x32xf32>, vector<32x128xf32>, vector<8x128xf32> -> vector<8x128xf32>
    %244 = arith.addf %242, %243 : vector<8x128xf32>
    %245 = arith.negf %244 : vector<8x128xf32>
    %246 = math.exp %245 : vector<8x128xf32>
    %cst_48 = arith.constant 1.000000e+00 : f32
    %247 = vector.broadcast %cst_48 : f32 to vector<8x128xf32>
    %248 = arith.addf %247, %246 : vector<8x128xf32>
    %249 = arith.divf %247, %248 : vector<8x128xf32>
    %250 = vector.extract_strided_slice %249 {offsets = [0, 0], sizes = [8, 32], strides = [1, 1]} : vector<8x128xf32> to vector<8x32xf32>
    %251 = vector.extract_strided_slice %249 {offsets = [0, 32], sizes = [8, 32], strides = [1, 1]} : vector<8x128xf32> to vector<8x32xf32>
    %252 = vector.extract_strided_slice %249 {offsets = [0, 96], sizes = [8, 32], strides = [1, 1]} : vector<8x128xf32> to vector<8x32xf32>
    %253 = vector.extract_strided_slice %244 {offsets = [0, 64], sizes = [8, 32], strides = [1, 1]} : vector<8x128xf32> to vector<8x32xf32>
    %254 = math.tanh %253 : vector<8x32xf32>
    %255 = arith.mulf %251, %219 : vector<8x32xf32>
    %256 = arith.mulf %250, %254 : vector<8x32xf32>
    %257 = arith.addf %255, %256 : vector<8x32xf32>
    %258 = math.tanh %257 : vector<8x32xf32>
    %259 = arith.mulf %252, %258 : vector<8x32xf32>
    %cst_49 = arith.constant dense<0.000000e+00> : vector<8x128xf32>
    %260 = tpu.matmul %259, %4, %cst_49 {dimension_numbers = #tpu.dot_dimension_numbers<[1], [0], [0], [1], [0, 0, 1, 1], [], []>} : vector<8x32xf32>, vector<32x128xf32>, vector<8x128xf32> -> vector<8x128xf32>
    %261 = vector.broadcast %5 : vector<1x128xf32> to vector<8x128xf32>
    %262 = arith.addf %260, %261 : vector<8x128xf32>
    %cst_50 = arith.constant dense<0.000000e+00> : vector<8x128xf32>
    %263 = tpu.matmul %241, %3, %cst_50 {dimension_numbers = #tpu.dot_dimension_numbers<[1], [0], [0], [1], [0, 0, 1, 1], [], []>} : vector<8x32xf32>, vector<32x128xf32>, vector<8x128xf32> -> vector<8x128xf32>
    %264 = arith.addf %262, %263 : vector<8x128xf32>
    %265 = arith.negf %264 : vector<8x128xf32>
    %266 = math.exp %265 : vector<8x128xf32>
    %cst_51 = arith.constant 1.000000e+00 : f32
    %267 = vector.broadcast %cst_51 : f32 to vector<8x128xf32>
    %268 = arith.addf %267, %266 : vector<8x128xf32>
    %269 = arith.divf %267, %268 : vector<8x128xf32>
    %270 = vector.extract_strided_slice %269 {offsets = [0, 0], sizes = [8, 32], strides = [1, 1]} : vector<8x128xf32> to vector<8x32xf32>
    %271 = vector.extract_strided_slice %269 {offsets = [0, 32], sizes = [8, 32], strides = [1, 1]} : vector<8x128xf32> to vector<8x32xf32>
    %272 = vector.extract_strided_slice %269 {offsets = [0, 96], sizes = [8, 32], strides = [1, 1]} : vector<8x128xf32> to vector<8x32xf32>
    %273 = vector.extract_strided_slice %264 {offsets = [0, 64], sizes = [8, 32], strides = [1, 1]} : vector<8x128xf32> to vector<8x32xf32>
    %274 = math.tanh %273 : vector<8x32xf32>
    %275 = arith.mulf %271, %239 : vector<8x32xf32>
    %276 = arith.mulf %270, %274 : vector<8x32xf32>
    %277 = arith.addf %275, %276 : vector<8x32xf32>
    %278 = math.tanh %277 : vector<8x32xf32>
    %279 = arith.mulf %272, %278 : vector<8x32xf32>
    %280 = vector.extract_strided_slice %9 {offsets = [56, 0], sizes = [8, 128], strides = [1, 1]} : vector<64x128xf32> to vector<8x128xf32>
    %cst_52 = arith.constant dense<0.000000e+00> : vector<8x128xf32>
    %281 = tpu.matmul %259, %2, %cst_52 {dimension_numbers = #tpu.dot_dimension_numbers<[1], [0], [0], [1], [0, 0, 1, 1], [], []>} : vector<8x32xf32>, vector<32x128xf32>, vector<8x128xf32> -> vector<8x128xf32>
    %282 = arith.addf %280, %281 : vector<8x128xf32>
    %283 = arith.negf %282 : vector<8x128xf32>
    %284 = math.exp %283 : vector<8x128xf32>
    %cst_53 = arith.constant 1.000000e+00 : f32
    %285 = vector.broadcast %cst_53 : f32 to vector<8x128xf32>
    %286 = arith.addf %285, %284 : vector<8x128xf32>
    %287 = arith.divf %285, %286 : vector<8x128xf32>
    %288 = vector.extract_strided_slice %287 {offsets = [0, 0], sizes = [8, 32], strides = [1, 1]} : vector<8x128xf32> to vector<8x32xf32>
    %289 = vector.extract_strided_slice %287 {offsets = [0, 32], sizes = [8, 32], strides = [1, 1]} : vector<8x128xf32> to vector<8x32xf32>
    %290 = vector.extract_strided_slice %287 {offsets = [0, 96], sizes = [8, 32], strides = [1, 1]} : vector<8x128xf32> to vector<8x32xf32>
    %291 = vector.extract_strided_slice %282 {offsets = [0, 64], sizes = [8, 32], strides = [1, 1]} : vector<8x128xf32> to vector<8x32xf32>
    %292 = math.tanh %291 : vector<8x32xf32>
    %293 = arith.mulf %289, %257 : vector<8x32xf32>
    %294 = arith.mulf %288, %292 : vector<8x32xf32>
    %295 = arith.addf %293, %294 : vector<8x32xf32>
    %296 = math.tanh %295 : vector<8x32xf32>
    %297 = arith.mulf %290, %296 : vector<8x32xf32>
    %cst_54 = arith.constant dense<0.000000e+00> : vector<8x128xf32>
    %298 = tpu.matmul %297, %4, %cst_54 {dimension_numbers = #tpu.dot_dimension_numbers<[1], [0], [0], [1], [0, 0, 1, 1], [], []>} : vector<8x32xf32>, vector<32x128xf32>, vector<8x128xf32> -> vector<8x128xf32>
    %299 = vector.broadcast %5 : vector<1x128xf32> to vector<8x128xf32>
    %300 = arith.addf %298, %299 : vector<8x128xf32>
    %cst_55 = arith.constant dense<0.000000e+00> : vector<8x128xf32>
    %301 = tpu.matmul %279, %3, %cst_55 {dimension_numbers = #tpu.dot_dimension_numbers<[1], [0], [0], [1], [0, 0, 1, 1], [], []>} : vector<8x32xf32>, vector<32x128xf32>, vector<8x128xf32> -> vector<8x128xf32>
    %302 = arith.addf %300, %301 : vector<8x128xf32>
    %303 = arith.negf %302 : vector<8x128xf32>
    %304 = math.exp %303 : vector<8x128xf32>
    %cst_56 = arith.constant 1.000000e+00 : f32
    %305 = vector.broadcast %cst_56 : f32 to vector<8x128xf32>
    %306 = arith.addf %305, %304 : vector<8x128xf32>
    %307 = arith.divf %305, %306 : vector<8x128xf32>
    %308 = vector.extract_strided_slice %307 {offsets = [0, 0], sizes = [8, 32], strides = [1, 1]} : vector<8x128xf32> to vector<8x32xf32>
    %309 = vector.extract_strided_slice %307 {offsets = [0, 32], sizes = [8, 32], strides = [1, 1]} : vector<8x128xf32> to vector<8x32xf32>
    %310 = vector.extract_strided_slice %307 {offsets = [0, 96], sizes = [8, 32], strides = [1, 1]} : vector<8x128xf32> to vector<8x32xf32>
    %311 = vector.extract_strided_slice %302 {offsets = [0, 64], sizes = [8, 32], strides = [1, 1]} : vector<8x128xf32> to vector<8x32xf32>
    %312 = math.tanh %311 : vector<8x32xf32>
    %313 = arith.mulf %309, %277 : vector<8x32xf32>
    %314 = arith.mulf %308, %312 : vector<8x32xf32>
    %315 = arith.addf %313, %314 : vector<8x32xf32>
    %316 = math.tanh %315 : vector<8x32xf32>
    %317 = arith.mulf %310, %316 : vector<8x32xf32>
    %318 = tpu.concatenate %51, %89, %127, %165, %203, %241, %279, %317 in 1 : vector<8x32xf32>, vector<8x32xf32>, vector<8x32xf32>, vector<8x32xf32>, vector<8x32xf32>, vector<8x32xf32>, vector<8x32xf32>, vector<8x32xf32> -> vector<8x256xf32>
    %c0_57 = arith.constant 0 : index
    %c0_58 = arith.constant 0 : index
    %319 = vector.load %arg7[%c0_57, %c0_58] : memref<256x256xf32, #tpu.memory_space<vmem>>, vector<256x256xf32>
    %cst_59 = arith.constant dense<0.000000e+00> : vector<8x256xf32>
    %320 = tpu.matmul %318, %319, %cst_59 {dimension_numbers = #tpu.dot_dimension_numbers<[1], [0], [0], [1], [0, 0, 1, 1], [], []>} : vector<8x256xf32>, vector<256x256xf32>, vector<8x256xf32> -> vector<8x256xf32>
    %c0_60 = arith.constant 0 : index
    %c0_61 = arith.constant 0 : index
    %321 = vector.load %arg8[%c0_60, %c0_61] : memref<1x256xf32, #tpu.memory_space<vmem>>, vector<1x256xf32>
    %322 = vector.broadcast %321 : vector<1x256xf32> to vector<8x256xf32>
    %323 = arith.addf %320, %322 : vector<8x256xf32>
    %cst_62 = arith.constant dense<0.000000e+00> : vector<256xf32>
    %324 = vector.multi_reduction <add>, %323, %cst_62 [0] : vector<8x256xf32> to vector<256xf32>
    %325 = vector.shape_cast %324 : vector<256xf32> to vector<1x256xf32>
    %cst_63 = arith.constant 8.000000e+00 : f32
    %326 = vector.broadcast %cst_63 : f32 to vector<1x256xf32>
    %327 = arith.divf %325, %326 : vector<1x256xf32>
    %328 = vector.broadcast %327 : vector<1x256xf32> to vector<8x256xf32>
    %329 = arith.subf %323, %328 : vector<8x256xf32>
    %330 = arith.mulf %329, %329 : vector<8x256xf32>
    %cst_64 = arith.constant dense<0.000000e+00> : vector<256xf32>
    %331 = vector.multi_reduction <add>, %330, %cst_64 [0] : vector<8x256xf32> to vector<256xf32>
    %332 = vector.shape_cast %331 : vector<256xf32> to vector<1x256xf32>
    %cst_65 = arith.constant 8.000000e+00 : f32
    %333 = vector.broadcast %cst_65 : f32 to vector<1x256xf32>
    %334 = arith.divf %332, %333 : vector<1x256xf32>
    %335 = vector.broadcast %327 : vector<1x256xf32> to vector<8x256xf32>
    %336 = arith.subf %323, %335 : vector<8x256xf32>
    %cst_66 = arith.constant 9.99999974E-6 : f32
    %337 = vector.broadcast %cst_66 : f32 to vector<1x256xf32>
    %338 = arith.addf %334, %337 : vector<1x256xf32>
    %339 = math.rsqrt %338 : vector<1x256xf32>
    %340 = vector.broadcast %339 : vector<1x256xf32> to vector<8x256xf32>
    %341 = arith.mulf %336, %340 : vector<8x256xf32>
    %c0_67 = arith.constant 0 : index
    %c0_68 = arith.constant 0 : index
    %342 = vector.load %arg9[%c0_67, %c0_68] : memref<1x256xf32, #tpu.memory_space<vmem>>, vector<1x256xf32>
    %343 = vector.broadcast %342 : vector<1x256xf32> to vector<8x256xf32>
    %344 = arith.mulf %341, %343 : vector<8x256xf32>
    %c0_69 = arith.constant 0 : index
    %c0_70 = arith.constant 0 : index
    %345 = vector.load %arg10[%c0_69, %c0_70] : memref<1x256xf32, #tpu.memory_space<vmem>>, vector<1x256xf32>
    %346 = vector.broadcast %345 : vector<1x256xf32> to vector<8x256xf32>
    %347 = arith.addf %344, %346 : vector<8x256xf32>
    %cst_71 = arith.constant 0.000000e+00 : f32
    %348 = vector.broadcast %cst_71 : f32 to vector<8x256xf32>
    %349 = arith.cmpf oge, %347, %348 : vector<8x256xf32>
    %cst_72 = arith.constant 2.000000e-01 : f32
    %350 = vector.broadcast %cst_72 : f32 to vector<8x256xf32>
    %351 = arith.mulf %350, %347 : vector<8x256xf32>
    %352 = arith.select %349, %347, %351 : vector<8x256xi1>, vector<8x256xf32>
    %353 = vector.extract_strided_slice %352 {offsets = [0, 0], sizes = [8, 32], strides = [1, 1]} : vector<8x256xf32> to vector<8x32xf32>
    %cst_73 = arith.constant dense<0xFF800000> : vector<8xf32>
    %354 = vector.multi_reduction <maximumf>, %353, %cst_73 [1] : vector<8x32xf32> to vector<8xf32>
    %355 = vector.shape_cast %354 : vector<8xf32> to vector<8x1xf32>
    %356 = vector.broadcast %355 : vector<8x1xf32> to vector<8x32xf32>
    %357 = arith.subf %353, %356 : vector<8x32xf32>
    %358 = math.exp %357 : vector<8x32xf32>
    %cst_74 = arith.constant dense<0.000000e+00> : vector<8xf32>
    %359 = vector.multi_reduction <add>, %358, %cst_74 [1] : vector<8x32xf32> to vector<8xf32>
    %360 = vector.shape_cast %359 : vector<8xf32> to vector<8x1xf32>
    %361 = vector.broadcast %355 : vector<8x1xf32> to vector<8x32xf32>
    %362 = arith.subf %353, %361 : vector<8x32xf32>
    %363 = math.log %360 : vector<8x1xf32>
    %364 = vector.broadcast %363 : vector<8x1xf32> to vector<8x32xf32>
    %365 = arith.subf %362, %364 : vector<8x32xf32>
    %366 = vector.extract_strided_slice %352 {offsets = [0, 32], sizes = [8, 32], strides = [1, 1]} : vector<8x256xf32> to vector<8x32xf32>
    %cst_75 = arith.constant dense<0xFF800000> : vector<8xf32>
    %367 = vector.multi_reduction <maximumf>, %366, %cst_75 [1] : vector<8x32xf32> to vector<8xf32>
    %368 = vector.shape_cast %367 : vector<8xf32> to vector<8x1xf32>
    %369 = vector.broadcast %368 : vector<8x1xf32> to vector<8x32xf32>
    %370 = arith.subf %366, %369 : vector<8x32xf32>
    %371 = math.exp %370 : vector<8x32xf32>
    %cst_76 = arith.constant dense<0.000000e+00> : vector<8xf32>
    %372 = vector.multi_reduction <add>, %371, %cst_76 [1] : vector<8x32xf32> to vector<8xf32>
    %373 = vector.shape_cast %372 : vector<8xf32> to vector<8x1xf32>
    %374 = vector.broadcast %368 : vector<8x1xf32> to vector<8x32xf32>
    %375 = arith.subf %366, %374 : vector<8x32xf32>
    %376 = math.log %373 : vector<8x1xf32>
    %377 = vector.broadcast %376 : vector<8x1xf32> to vector<8x32xf32>
    %378 = arith.subf %375, %377 : vector<8x32xf32>
    %379 = vector.extract_strided_slice %352 {offsets = [0, 64], sizes = [8, 32], strides = [1, 1]} : vector<8x256xf32> to vector<8x32xf32>
    %cst_77 = arith.constant dense<0xFF800000> : vector<8xf32>
    %380 = vector.multi_reduction <maximumf>, %379, %cst_77 [1] : vector<8x32xf32> to vector<8xf32>
    %381 = vector.shape_cast %380 : vector<8xf32> to vector<8x1xf32>
    %382 = vector.broadcast %381 : vector<8x1xf32> to vector<8x32xf32>
    %383 = arith.subf %379, %382 : vector<8x32xf32>
    %384 = math.exp %383 : vector<8x32xf32>
    %cst_78 = arith.constant dense<0.000000e+00> : vector<8xf32>
    %385 = vector.multi_reduction <add>, %384, %cst_78 [1] : vector<8x32xf32> to vector<8xf32>
    %386 = vector.shape_cast %385 : vector<8xf32> to vector<8x1xf32>
    %387 = vector.broadcast %381 : vector<8x1xf32> to vector<8x32xf32>
    %388 = arith.subf %379, %387 : vector<8x32xf32>
    %389 = math.log %386 : vector<8x1xf32>
    %390 = vector.broadcast %389 : vector<8x1xf32> to vector<8x32xf32>
    %391 = arith.subf %388, %390 : vector<8x32xf32>
    %392 = vector.extract_strided_slice %352 {offsets = [0, 96], sizes = [8, 32], strides = [1, 1]} : vector<8x256xf32> to vector<8x32xf32>
    %cst_79 = arith.constant dense<0xFF800000> : vector<8xf32>
    %393 = vector.multi_reduction <maximumf>, %392, %cst_79 [1] : vector<8x32xf32> to vector<8xf32>
    %394 = vector.shape_cast %393 : vector<8xf32> to vector<8x1xf32>
    %395 = vector.broadcast %394 : vector<8x1xf32> to vector<8x32xf32>
    %396 = arith.subf %392, %395 : vector<8x32xf32>
    %397 = math.exp %396 : vector<8x32xf32>
    %cst_80 = arith.constant dense<0.000000e+00> : vector<8xf32>
    %398 = vector.multi_reduction <add>, %397, %cst_80 [1] : vector<8x32xf32> to vector<8xf32>
    %399 = vector.shape_cast %398 : vector<8xf32> to vector<8x1xf32>
    %400 = vector.broadcast %394 : vector<8x1xf32> to vector<8x32xf32>
    %401 = arith.subf %392, %400 : vector<8x32xf32>
    %402 = math.log %399 : vector<8x1xf32>
    %403 = vector.broadcast %402 : vector<8x1xf32> to vector<8x32xf32>
    %404 = arith.subf %401, %403 : vector<8x32xf32>
    %405 = vector.extract_strided_slice %352 {offsets = [0, 128], sizes = [8, 32], strides = [1, 1]} : vector<8x256xf32> to vector<8x32xf32>
    %cst_81 = arith.constant dense<0xFF800000> : vector<8xf32>
    %406 = vector.multi_reduction <maximumf>, %405, %cst_81 [1] : vector<8x32xf32> to vector<8xf32>
    %407 = vector.shape_cast %406 : vector<8xf32> to vector<8x1xf32>
    %408 = vector.broadcast %407 : vector<8x1xf32> to vector<8x32xf32>
    %409 = arith.subf %405, %408 : vector<8x32xf32>
    %410 = math.exp %409 : vector<8x32xf32>
    %cst_82 = arith.constant dense<0.000000e+00> : vector<8xf32>
    %411 = vector.multi_reduction <add>, %410, %cst_82 [1] : vector<8x32xf32> to vector<8xf32>
    %412 = vector.shape_cast %411 : vector<8xf32> to vector<8x1xf32>
    %413 = vector.broadcast %407 : vector<8x1xf32> to vector<8x32xf32>
    %414 = arith.subf %405, %413 : vector<8x32xf32>
    %415 = math.log %412 : vector<8x1xf32>
    %416 = vector.broadcast %415 : vector<8x1xf32> to vector<8x32xf32>
    %417 = arith.subf %414, %416 : vector<8x32xf32>
    %418 = vector.extract_strided_slice %352 {offsets = [0, 160], sizes = [8, 32], strides = [1, 1]} : vector<8x256xf32> to vector<8x32xf32>
    %cst_83 = arith.constant dense<0xFF800000> : vector<8xf32>
    %419 = vector.multi_reduction <maximumf>, %418, %cst_83 [1] : vector<8x32xf32> to vector<8xf32>
    %420 = vector.shape_cast %419 : vector<8xf32> to vector<8x1xf32>
    %421 = vector.broadcast %420 : vector<8x1xf32> to vector<8x32xf32>
    %422 = arith.subf %418, %421 : vector<8x32xf32>
    %423 = math.exp %422 : vector<8x32xf32>
    %cst_84 = arith.constant dense<0.000000e+00> : vector<8xf32>
    %424 = vector.multi_reduction <add>, %423, %cst_84 [1] : vector<8x32xf32> to vector<8xf32>
    %425 = vector.shape_cast %424 : vector<8xf32> to vector<8x1xf32>
    %426 = vector.broadcast %420 : vector<8x1xf32> to vector<8x32xf32>
    %427 = arith.subf %418, %426 : vector<8x32xf32>
    %428 = math.log %425 : vector<8x1xf32>
    %429 = vector.broadcast %428 : vector<8x1xf32> to vector<8x32xf32>
    %430 = arith.subf %427, %429 : vector<8x32xf32>
    %431 = vector.extract_strided_slice %352 {offsets = [0, 192], sizes = [8, 32], strides = [1, 1]} : vector<8x256xf32> to vector<8x32xf32>
    %cst_85 = arith.constant dense<0xFF800000> : vector<8xf32>
    %432 = vector.multi_reduction <maximumf>, %431, %cst_85 [1] : vector<8x32xf32> to vector<8xf32>
    %433 = vector.shape_cast %432 : vector<8xf32> to vector<8x1xf32>
    %434 = vector.broadcast %433 : vector<8x1xf32> to vector<8x32xf32>
    %435 = arith.subf %431, %434 : vector<8x32xf32>
    %436 = math.exp %435 : vector<8x32xf32>
    %cst_86 = arith.constant dense<0.000000e+00> : vector<8xf32>
    %437 = vector.multi_reduction <add>, %436, %cst_86 [1] : vector<8x32xf32> to vector<8xf32>
    %438 = vector.shape_cast %437 : vector<8xf32> to vector<8x1xf32>
    %439 = vector.broadcast %433 : vector<8x1xf32> to vector<8x32xf32>
    %440 = arith.subf %431, %439 : vector<8x32xf32>
    %441 = math.log %438 : vector<8x1xf32>
    %442 = vector.broadcast %441 : vector<8x1xf32> to vector<8x32xf32>
    %443 = arith.subf %440, %442 : vector<8x32xf32>
    %444 = vector.extract_strided_slice %352 {offsets = [0, 224], sizes = [8, 32], strides = [1, 1]} : vector<8x256xf32> to vector<8x32xf32>
    %cst_87 = arith.constant dense<0xFF800000> : vector<8xf32>
    %445 = vector.multi_reduction <maximumf>, %444, %cst_87 [1] : vector<8x32xf32> to vector<8xf32>
    %446 = vector.shape_cast %445 : vector<8xf32> to vector<8x1xf32>
    %447 = vector.broadcast %446 : vector<8x1xf32> to vector<8x32xf32>
    %448 = arith.subf %444, %447 : vector<8x32xf32>
    %449 = math.exp %448 : vector<8x32xf32>
    %cst_88 = arith.constant dense<0.000000e+00> : vector<8xf32>
    %450 = vector.multi_reduction <add>, %449, %cst_88 [1] : vector<8x32xf32> to vector<8xf32>
    %451 = vector.shape_cast %450 : vector<8xf32> to vector<8x1xf32>
    %452 = vector.broadcast %446 : vector<8x1xf32> to vector<8x32xf32>
    %453 = arith.subf %444, %452 : vector<8x32xf32>
    %454 = math.log %451 : vector<8x1xf32>
    %455 = vector.broadcast %454 : vector<8x1xf32> to vector<8x32xf32>
    %456 = arith.subf %453, %455 : vector<8x32xf32>
    %457 = tpu.concatenate %365, %378, %391, %404, %417, %430, %443, %456 in 1 : vector<8x32xf32>, vector<8x32xf32>, vector<8x32xf32>, vector<8x32xf32>, vector<8x32xf32>, vector<8x32xf32>, vector<8x32xf32>, vector<8x32xf32> -> vector<8x256xf32>
    %c0_89 = arith.constant 0 : index
    %c0_90 = arith.constant 0 : index
    %458 = vector.load %arg11[%c0_89, %c0_90] : memref<8x256xf32, #tpu.memory_space<vmem>>, vector<8x256xf32>
    tpu.vector_store %arg11[%c0_89, %c0_90], %457 {strides = array<i32>} : memref<8x256xf32, #tpu.memory_space<vmem>>, vector<8x256xf32>,
    return
  }
}

</mosaic_0001>

<llo_original>
// kernel: generator_forward.1
$region0: #{generator_forward.1}
  #allocation0 [shape = 'u32[]', space=smem, size = 0x4, offset = 0x4, fixed_abs, tag = 'smem constant byte address 0x4 - core index']
  #allocation1 [shape = 'u32[144,128]{1,0:T(1,128)}', space=vmem, size = 0x12000, scoped, tag = 'internal scratch']
  %s0 = inlined_call_operand.vmem [shape: f32[64,4], index: 0, kind: input, shape index: {}]
  %s1 = inlined_call_operand.vmem [shape: f32[4,128], index: 1, kind: input, shape index: {}]
  %s2 = inlined_call_operand.vmem [shape: f32[32,128], index: 2, kind: input, shape index: {}]
  %s3 = inlined_call_operand.vmem [shape: f32[1,128], index: 3, kind: input, shape index: {}]
  %s4 = inlined_call_operand.vmem [shape: f32[32,128], index: 4, kind: input, shape index: {}]
  %s5 = inlined_call_operand.vmem [shape: f32[32,128], index: 5, kind: input, shape index: {}]
  %s6 = inlined_call_operand.vmem [shape: f32[1,128], index: 6, kind: input, shape index: {}]
  %s7 = inlined_call_operand.hbm [shape: f32[256,256], index: 7, kind: input, shape index: {}]
  %s8 = inlined_call_operand.vmem [shape: f32[1,256], index: 8, kind: input, shape index: {}]
  %s9 = inlined_call_operand.vmem [shape: f32[1,256], index: 9, kind: input, shape index: {}]
  %s10 = inlined_call_operand.vmem [shape: f32[1,256], index: 10, kind: input, shape index: {}]
  %s11 = inlined_call_operand.vmem [shape: f32[8,256], index: 11, kind: output, shape index: {}]
  %s12 = sld [smem:[#allocation0]]
  $region58: #{generator_forward.1} parent=0
    _
  %s14 = ssub.s32 1, %s12
  %s15 = scalar_select 0, %s14, %s12
  $region1: #{generator_forward.1} parent=0
    #allocation2 [shape = 'u8[262144]{0}', space=vmem, size = 0x40000, scoped, tag = 'input window, operand 7, single buffered']
    #allocation3 [shape = 's32[1]{0}', space=sflag, size = 0x4, scoped, tag = 'scoped memory for generator_forward.1']
    %16 = vsyncpa [#allocation3], 0
    // Predicated region
    $region2: #{generator_forward.1} parent=1 // pred_check
      _
    $region3: #{generator_forward.1} parent=1 // pred_check_branch
      %18 = sbr.rel (0) target = $region5
    $region4: #{generator_forward.1} parent=1 // pred_region
      _
    $region5: #{generator_forward.1} parent=1 // pred_fallthru
      _
    // Predicated region
    $region6: #{generator_forward.1} parent=1 // pred_check
      _
    $region7: #{generator_forward.1} parent=1 // pred_check_branch
      %20 = sbr.rel (0) target = $region9
    $region8: #{generator_forward.1} parent=1 // pred_region
      _
    $region9: #{generator_forward.1} parent=1 // pred_fallthru
      _
    // Predicated region
    $region10: #{generator_forward.1} parent=1 // pred_check
      _
    $region11: #{generator_forward.1} parent=1 // pred_check_branch
      %22 = sbr.rel (0) target = $region13
    $region12: #{generator_forward.1} parent=1 // pred_region
      _
    $region13: #{generator_forward.1} parent=1 // pred_fallthru
      _
    // Predicated region
    $region14: #{generator_forward.1} parent=1 // pred_check
      _
    $region15: #{generator_forward.1} parent=1 // pred_check_branch
      %24 = sbr.rel (0) target = $region17
    $region16: #{generator_forward.1} parent=1 // pred_region
      _
    $region17: #{generator_forward.1} parent=1 // pred_fallthru
      _
    // Predicated region
    $region18: #{generator_forward.1} parent=1 // pred_check
      _
    $region19: #{generator_forward.1} parent=1 // pred_check_branch
      %26 = sbr.rel (0) target = $region21
    $region20: #{generator_forward.1} parent=1 // pred_region
      _
    $region21: #{generator_forward.1} parent=1 // pred_fallthru
      _
    // Predicated region
    $region22: #{generator_forward.1} parent=1 // pred_check
      _
    $region23: #{generator_forward.1} parent=1 // pred_check_branch
      %28 = sbr.rel (0) target = $region25
    $region24: #{generator_forward.1} parent=1 // pred_region
      _
    $region25: #{generator_forward.1} parent=1 // pred_fallthru
      _
    // Predicated region
    $region26: #{generator_forward.1} parent=1 // pred_check
      _
    $region27: #{generator_forward.1} parent=1 // pred_check_branch
      %30 = sbr.rel (0) target = $region29
    $region28: #{generator_forward.1} parent=1 // pred_region
      _
    $region29: #{generator_forward.1} parent=1 // pred_fallthru
      _
    // Predicated region
    $region30: #{generator_forward.1} parent=1 // pred_check
      _
    $region31: #{generator_forward.1} parent=1 // pred_check_branch
      %32 = sbr.rel (0) target = $region33
    $region32: #{generator_forward.1} parent=1 // pred_region
      %s34 = ssub.s32 8192, 8192
      %35 = vsyncadd [#allocation3], %s34
      %s36 = sshll.u32 [#allocation2], 4
      %s37 = int_to_ptr.vmem [resolvable:$true] %s36
      %42 = dma.hbm_to_vmem [thread:$0]  %s7, 8192, %s37, [#allocation3], 256, 256, 16
    $region33: #{generator_forward.1} parent=1 // pred_fallthru
      _
    // Predicated region
    $region34: #{generator_forward.1} parent=1 // pred_check
      _
    $region35: #{generator_forward.1} parent=1 // pred_check_branch
      %44 = sbr.rel (0) target = $region37
    $region36: #{generator_forward.1} parent=1 // pred_region
      _
    $region37: #{generator_forward.1} parent=1 // pred_fallthru
      _
    // Predicated region
    $region38: #{generator_forward.1} parent=1 // pred_check
      _
    $region39: #{generator_forward.1} parent=1 // pred_check_branch
      %46 = sbr.rel (0) target = $region41
    $region40: #{generator_forward.1} parent=1 // pred_region
      _
    $region41: #{generator_forward.1} parent=1 // pred_fallthru
      _
    // Predicated region
    $region42: #{generator_forward.1} parent=1 // pred_check
      _
    $region43: #{generator_forward.1} parent=1 // pred_check_branch
      %48 = sbr.rel (0) target = $region45
    $region44: #{generator_forward.1} parent=1 // pred_region
      _
    $region45: #{generator_forward.1} parent=1 // pred_fallthru
      _
    // Predicated region
    $region46: #{generator_forward.1} parent=1 // pred_check
      _
    $region47: #{generator_forward.1} parent=1 // pred_check_branch
      %50 = sbr.rel (0) target = $region49
    $region48: #{generator_forward.1} parent=1 // pred_region
      %51 = dma.done [#allocation3], 8192
    $region49: #{generator_forward.1} parent=1 // pred_fallthru
      _
    %v52 = vld [vmem:[%s1] sm:$0xf]
    %v53 = vld [vmem:[%s3] sm:$0x1]
    %v54 = vld [vmem:[%s2] sm:$0xff]
    %v55 = vld [vmem:[%s2 + $0x8] sm:$0xff]
    %v56 = vld [vmem:[%s2 + $0x10] sm:$0xff]
    %v57 = vld [vmem:[%s2 + $0x18] sm:$0xff]
    %v58 = vld [vmem:[%s5] sm:$0xff]
    %v59 = vld [vmem:[%s5 + $0x8] sm:$0xff]
    %v60 = vld [vmem:[%s5 + $0x10] sm:$0xff]
    %v61 = vld [vmem:[%s5 + $0x18] sm:$0xff]
    %v62 = vld [vmem:[%s4] sm:$0xff]
    %v63 = vld [vmem:[%s4 + $0x8] sm:$0xff]
    %v64 = vld [vmem:[%s4 + $0x10] sm:$0xff]
    %v65 = vld [vmem:[%s4 + $0x18] sm:$0xff]
    %v66 = vld [vmem:[%s6] sm:$0x1]
    %v67 = vld [vmem:[%s0] sm:$0xff]
    %v68 = vld [vmem:[%s0 + $0x8] sm:$0xff]
    %v69 = vld [vmem:[%s0 + $0x10] sm:$0xff]
    %v70 = vld [vmem:[%s0 + $0x18] sm:$0xff]
    %v71 = vld [vmem:[%s0 + $0x20] sm:$0xff]
    %v72 = vld [vmem:[%s0 + $0x28] sm:$0xff]
    %v73 = vld [vmem:[%s0 + $0x30] sm:$0xff]
    %v74 = vld [vmem:[%s0 + $0x38] sm:$0xff]
    %v76 = vlaneseq
    %v77 = vshrl.u32 %v76, 7
    %v78 = vsub.s32 0, %v77
    %v79 = vrot.slane %v53, %v78
    %vm81 = vcmask 31744
    %v83 = vsel %vm81, %v67, 0
    %v86 = vsel %vm81, %v68, 0
    %v89 = vsel %vm81, %v69, 0
    %v92 = vsel %vm81, %v70, 0
    %v95 = vsel %vm81, %v71, 0
    %v98 = vsel %vm81, %v72, 0
    %v101 = vsel %vm81, %v73, 0
    %v104 = vsel %vm81, %v74, 0
    %vm106 = vcmask 1043456
    %v108 = vsel %vm106, %v52, 0
    %110 = vmatprep.subr.mxu0 0.0
    %111 = vmatpush1.msra.mxu0 %v108
    %112 = vmatprep.subr.mxu0 0.0
    %113 = vmatpush1.msra.mxu0 0.0
    %114 = vmatprep.subr.mxu0 0.0
    %115 = vmatpush1.msra.mxu0 0.0
    %116 = vmatprep.subr.mxu0 0.0
    %117 = vmatpush1.msra.mxu0 0.0
    %118 = vmatprep.subr.mxu0 0.0
    %119 = vmatpush1.msra.mxu0 0.0
    %120 = vmatprep.subr.mxu0 0.0
    %121 = vmatpush1.msra.mxu0 0.0
    %122 = vmatprep.subr.mxu0 0.0
    %123 = vmatpush1.msra.mxu0 0.0
    %124 = vmatprep.subr.mxu0 0.0
    %125 = vmatpush1.msra.mxu0 0.0
    %126 = vmatprep.subr.mxu0 0.0
    %127 = vmatpush1.msra.mxu0 0.0
    %128 = vmatprep.subr.mxu0 0.0
    %129 = vmatpush1.msra.mxu0 0.0
    %130 = vmatprep.subr.mxu0 0.0
    %131 = vmatpush1.msra.mxu0 0.0
    %132 = vmatprep.subr.mxu0 0.0
    %133 = vmatpush1.msra.mxu0 0.0
    %134 = vmatprep.subr.mxu0 0.0
    %135 = vmatpush1.msra.mxu0 0.0
    %136 = vmatprep.subr.mxu0 0.0
    %137 = vmatpush1.msra.mxu0 0.0
    %138 = vmatprep.subr.mxu0 0.0
    %139 = vmatpush1.msra.mxu0 0.0
    %140 = vmatprep.subr.mxu0 0.0
    %141 = vmatpush1.msra.mxu0 0.0
    %142 = vmatprep.subr.mxu0 0.0
    %143 = vmatpush1.msra.mxu0 0.0
    %144 = vmatprep.subr.mxu0 0.0
    %145 = vmatpush1.msra.mxu0 0.0
    %146 = vmatprep.subr.mxu0 0.0
    %147 = vmatpush1.msra.mxu0 0.0
    %148 = vmatprep.subr.mxu0 0.0
    %149 = vmatpush1.msra.mxu0 0.0
    %150 = vmatprep.subr.mxu0 0.0
    %151 = vmatpush1.msra.mxu0 0.0
    %152 = vmatprep.subr.mxu0 0.0
    %153 = vmatpush1.msra.mxu0 0.0
    %154 = vmatprep.subr.mxu0 0.0
    %155 = vmatpush1.msra.mxu0 0.0
    %156 = vmatprep.subr.mxu0 0.0
    %157 = vmatpush1.msra.mxu0 0.0
    %158 = vmatprep.subr.mxu0 0.0
    %159 = vmatpush1.msra.mxu0 0.0
    %160 = vmatprep.subr.mxu0 0.0
    %161 = vmatpush1.msra.mxu0 0.0
    %162 = vmatprep.subr.mxu0 0.0
    %163 = vmatpush1.msra.mxu0 0.0
    %164 = vmatprep.subr.mxu0 0.0
    %165 = vmatpush1.msra.mxu0 0.0
    %166 = vmatprep.subr.mxu0 0.0
    %167 = vmatpush1.msra.mxu0 0.0
    %168 = vmatprep.subr.mxu0 0.0
    %169 = vmatpush1.msra.mxu0 0.0
    %170 = vmatprep.subr.mxu0 0.0
    %171 = vmatpush1.msra.mxu0 0.0
    %172 = vmatprep.subr.mxu0 0.0
    %173 = vmatpush1.msra.mxu0 0.0
    %174 = vmatprep.mubr.f32.mxu0 0.0
    %175 = vmatmul.mubr.f32.gmra.mrb[0].mxu0 %v83
    %v176 = vpop.f32.mrb[0].mxu0
    %v177 = vadd.f32 %v79, %v176
    %v178 = vpop.f32.mrb[0].mxu0
    %179 = vmatprep.mubr.f32.mxu0 0.0
    %180 = vmatmul.mubr.f32.gmra.mrb[0].mxu0 %v86
    %v181 = vpop.f32.mrb[0].mxu0
    %v182 = vadd.f32 %v79, %v181
    %v183 = vpop.f32.mrb[0].mxu0
    %184 = vmatprep.mubr.f32.mxu0 0.0
    %185 = vmatmul.mubr.f32.gmra.mrb[0].mxu0 %v89
    %v186 = vpop.f32.mrb[0].mxu0
    %v187 = vadd.f32 %v79, %v186
    %v188 = vpop.f32.mrb[0].mxu0
    %189 = vmatprep.mubr.f32.mxu0 0.0
    %190 = vmatmul.mubr.f32.gmra.mrb[0].mxu0 %v92
    %v191 = vpop.f32.mrb[0].mxu0
    %v192 = vadd.f32 %v79, %v191
    %v193 = vpop.f32.mrb[0].mxu0
    %194 = vmatprep.mubr.f32.mxu0 0.0
    %195 = vmatmul.mubr.f32.gmra.mrb[0].mxu0 %v95
    %v196 = vpop.f32.mrb[0].mxu0
    %v197 = vadd.f32 %v79, %v196
    %v198 = vpop.f32.mrb[0].mxu0
    %199 = vmatprep.mubr.f32.mxu0 0.0
    %200 = vmatmul.mubr.f32.gmra.mrb[0].mxu0 %v98
    %v201 = vpop.f32.mrb[0].mxu0
    %v202 = vadd.f32 %v79, %v201
    %v203 = vpop.f32.mrb[0].mxu0
    %204 = vmatprep.mubr.f32.mxu0 0.0
    %205 = vmatmul.mubr.f32.gmra.mrb[0].mxu0 %v101
    %v206 = vpop.f32.mrb[0].mxu0
    %v207 = vadd.f32 %v79, %v206
    %v208 = vpop.f32.mrb[0].mxu0
    %209 = vmatprep.mubr.f32.mxu0 0.0
    %210 = vmatmul.mubr.f32.gmra.mrb[0].mxu0 %v104
    %v211 = vpop.f32.mrb[0].mxu0
    %v212 = vadd.f32 %v79, %v211
    %v213 = vpop.f32.mrb[0].mxu0
    %214 = vdwg.mxu0
    %vm215 = vcmask 261120
    %v217 = vsel %vm215, 0.0, 0
    %219 = vmatprep.subr.mxu0 0.0
    %220 = vmatpush1.msra.mxu0 %v54
    %221 = vmatprep.subr.mxu0 0.0
    %222 = vmatpush1.msra.mxu0 %v55
    %223 = vmatprep.subr.mxu0 0.0
    %224 = vmatpush1.msra.mxu0 %v56
    %225 = vmatprep.subr.mxu0 0.0
    %226 = vmatpush1.msra.mxu0 %v57
    %227 = vmatprep.subr.mxu0 0.0
    %228 = vmatpush1.msra.mxu0 0.0
    %229 = vmatprep.subr.mxu0 0.0
    %230 = vmatpush1.msra.mxu0 0.0
    %231 = vmatprep.subr.mxu0 0.0
    %232 = vmatpush1.msra.mxu0 0.0
    %233 = vmatprep.subr.mxu0 0.0
    %234 = vmatpush1.msra.mxu0 0.0
    %235 = vmatprep.subr.mxu0 0.0
    %236 = vmatpush1.msra.mxu0 0.0
    %237 = vmatprep.subr.mxu0 0.0
    %238 = vmatpush1.msra.mxu0 0.0
    %239 = vmatprep.subr.mxu0 0.0
    %240 = vmatpush1.msra.mxu0 0.0
    %241 = vmatprep.subr.mxu0 0.0
    %242 = vmatpush1.msra.mxu0 0.0
    %243 = vmatprep.subr.mxu0 0.0
    %244 = vmatpush1.msra.mxu0 0.0
    %245 = vmatprep.subr.mxu0 0.0
    %246 = vmatpush1.msra.mxu0 0.0
    %247 = vmatprep.subr.mxu0 0.0
    %248 = vmatpush1.msra.mxu0 0.0
    %249 = vmatprep.subr.mxu0 0.0
    %250 = vmatpush1.msra.mxu0 0.0
    %251 = vmatprep.subr.mxu0 0.0
    %252 = vmatpush1.msra.mxu0 0.0
    %253 = vmatprep.subr.mxu0 0.0
    %254 = vmatpush1.msra.mxu0 0.0
    %255 = vmatprep.subr.mxu0 0.0
    %256 = vmatpush1.msra.mxu0 0.0
    %257 = vmatprep.subr.mxu0 0.0
    %258 = vmatpush1.msra.mxu0 0.0
    %259 = vmatprep.subr.mxu0 0.0
    %260 = vmatpush1.msra.mxu0 0.0
    %261 = vmatprep.subr.mxu0 0.0
    %262 = vmatpush1.msra.mxu0 0.0
    %263 = vmatprep.subr.mxu0 0.0
    %264 = vmatpush1.msra.mxu0 0.0
    %265 = vmatprep.subr.mxu0 0.0
    %266 = vmatpush1.msra.mxu0 0.0
    %267 = vmatprep.subr.mxu0 0.0
    %268 = vmatpush1.msra.mxu0 0.0
    %269 = vmatprep.subr.mxu0 0.0
    %270 = vmatpush1.msra.mxu0 0.0
    %271 = vmatprep.subr.mxu0 0.0
    %272 = vmatpush1.msra.mxu0 0.0
    %273 = vmatprep.subr.mxu0 0.0
    %274 = vmatpush1.msra.mxu0 0.0
    %275 = vmatprep.subr.mxu0 0.0
    %276 = vmatpush1.msra.mxu0 0.0
    %277 = vmatprep.subr.mxu0 0.0
    %278 = vmatpush1.msra.mxu0 0.0
    %279 = vmatprep.subr.mxu0 0.0
    %280 = vmatpush1.msra.mxu0 0.0
    %281 = vmatprep.subr.mxu0 0.0
    %282 = vmatpush1.msra.mxu0 0.0
    %283 = vmatprep.mubr.f32.mxu0 0.0
    %284 = vmatmul.mubr.f32.gmra.mrb[0].mxu0 %v217
    %v285 = vpop.f32.mrb[0].mxu0
    %v286 = vadd.f32 0.0, %v285
    %v287 = vpop.f32.mrb[0].mxu0
    %288 = vdwg.mxu0
    %v289 = vadd.f32 %v177, %v286
    %v290 = vxor.u32 %v289, 2147483648
    %v291 = vmul.f32 %v290, 1.442695
    %v292 = vpow.pop %v291
    %v293 = vadd.f32 %v292, 1.0
    %v294 = vrcp.pop %v293
    %v295 = vmul.f32 1.0, %v294
    %v296 = vtanh.pop %v289
    %v297 = vmul.f32 %v295, 0.0
    %299 = vrot.lane.b32.xlu0 %v296, 64
    %v300 = vpop.permute.xlu0 %299
    %v302 = vmul.f32 %v295, %v300
    %304 = vrot.lane.b32.xlu0 %v302, 32
    %v305 = vpop.permute.xlu0 %304
    %v307 = vadd.f32 %v297, %v305
    %v308 = vtanh.pop %v307
    %310 = vrot.lane.b32.xlu0 %v308, 64
    %v311 = vpop.permute.xlu0 %310
    %v313 = vmul.f32 %v295, %v311
    %v315 = vlaneseq
    %v316 = vshrl.u32 %v315, 7
    %v317 = vsub.s32 0, %v316
    %v318 = vrot.slane %v66, %v317
    %321 = vrot.lane.b32.xlu0 %v313, 32
    %v322 = vpop.permute.xlu0 %321
    %v323 = vsel %vm215, %v322, 0
    %325 = vmatprep.subr.mxu0 0.0
    %326 = vmatpush1.msra.mxu0 %v62
    %327 = vmatprep.subr.mxu0 0.0
    %328 = vmatpush1.msra.mxu0 %v63
    %329 = vmatprep.subr.mxu0 0.0
    %330 = vmatpush1.msra.mxu0 %v64
    %331 = vmatprep.subr.mxu0 0.0
    %332 = vmatpush1.msra.mxu0 %v65
    %333 = vmatprep.subr.mxu0 0.0
    %334 = vmatpush1.msra.mxu0 0.0
    %335 = vmatprep.subr.mxu0 0.0
    %336 = vmatpush1.msra.mxu0 0.0
    %337 = vmatprep.subr.mxu0 0.0
    %338 = vmatpush1.msra.mxu0 0.0
    %339 = vmatprep.subr.mxu0 0.0
    %340 = vmatpush1.msra.mxu0 0.0
    %341 = vmatprep.subr.mxu0 0.0
    %342 = vmatpush1.msra.mxu0 0.0
    %343 = vmatprep.subr.mxu0 0.0
    %344 = vmatpush1.msra.mxu0 0.0
    %345 = vmatprep.subr.mxu0 0.0
    %346 = vmatpush1.msra.mxu0 0.0
    %347 = vmatprep.subr.mxu0 0.0
    %348 = vmatpush1.msra.mxu0 0.0
    %349 = vmatprep.subr.mxu0 0.0
    %350 = vmatpush1.msra.mxu0 0.0
    %351 = vmatprep.subr.mxu0 0.0
    %352 = vmatpush1.msra.mxu0 0.0
    %353 = vmatprep.subr.mxu0 0.0
    %354 = vmatpush1.msra.mxu0 0.0
    %355 = vmatprep.subr.mxu0 0.0
    %356 = vmatpush1.msra.mxu0 0.0
    %357 = vmatprep.subr.mxu0 0.0
    %358 = vmatpush1.msra.mxu0 0.0
    %359 = vmatprep.subr.mxu0 0.0
    %360 = vmatpush1.msra.mxu0 0.0
    %361 = vmatprep.subr.mxu0 0.0
    %362 = vmatpush1.msra.mxu0 0.0
    %363 = vmatprep.subr.mxu0 0.0
    %364 = vmatpush1.msra.mxu0 0.0
    %365 = vmatprep.subr.mxu0 0.0
    %366 = vmatpush1.msra.mxu0 0.0
    %367 = vmatprep.subr.mxu0 0.0
    %368 = vmatpush1.msra.mxu0 0.0
    %369 = vmatprep.subr.mxu0 0.0
    %370 = vmatpush1.msra.mxu0 0.0
    %371 = vmatprep.subr.mxu0 0.0
    %372 = vmatpush1.msra.mxu0 0.0
    %373 = vmatprep.subr.mxu0 0.0
    %374 = vmatpush1.msra.mxu0 0.0
    %375 = vmatprep.subr.mxu0 0.0
    %376 = vmatpush1.msra.mxu0 0.0
    %377 = vmatprep.subr.mxu0 0.0
    %378 = vmatpush1.msra.mxu0 0.0
    %379 = vmatprep.subr.mxu0 0.0
    %380 = vmatpush1.msra.mxu0 0.0
    %381 = vmatprep.subr.mxu0 0.0
    %382 = vmatpush1.msra.mxu0 0.0
    %383 = vmatprep.subr.mxu0 0.0
    %384 = vmatpush1.msra.mxu0 0.0
    %385 = vmatprep.subr.mxu0 0.0
    %386 = vmatpush1.msra.mxu0 0.0
    %387 = vmatprep.subr.mxu0 0.0
    %388 = vmatpush1.msra.mxu0 0.0
    %389 = vmatprep.mubr.f32.mxu0 0.0
    %390 = vmatmul.mubr.f32.gmra.mrb[0].mxu0 %v323
    %v391 = vpop.f32.mrb[0].mxu0
    %v392 = vadd.f32 %v318, %v391
    %v393 = vpop.f32.mrb[0].mxu0
    %394 = vdwg.mxu0
    %395 = vmatprep.subr.mxu0 0.0
    %396 = vmatpush1.msra.mxu0 %v58
    %397 = vmatprep.subr.mxu0 0.0
    %398 = vmatpush1.msra.mxu0 %v59
    %399 = vmatprep.subr.mxu0 0.0
    %400 = vmatpush1.msra.mxu0 %v60
    %401 = vmatprep.subr.mxu0 0.0
    %402 = vmatpush1.msra.mxu0 %v61
    %403 = vmatprep.subr.mxu0 0.0
    %404 = vmatpush1.msra.mxu0 0.0
    %405 = vmatprep.subr.mxu0 0.0
    %406 = vmatpush1.msra.mxu0 0.0
    %407 = vmatprep.subr.mxu0 0.0
    %408 = vmatpush1.msra.mxu0 0.0
    %409 = vmatprep.subr.mxu0 0.0
    %410 = vmatpush1.msra.mxu0 0.0
    %411 = vmatprep.subr.mxu0 0.0
    %412 = vmatpush1.msra.mxu0 0.0
    %413 = vmatprep.subr.mxu0 0.0
    %414 = vmatpush1.msra.mxu0 0.0
    %415 = vmatprep.subr.mxu0 0.0
    %416 = vmatpush1.msra.mxu0 0.0
    %417 = vmatprep.subr.mxu0 0.0
    %418 = vmatpush1.msra.mxu0 0.0
    %419 = vmatprep.subr.mxu0 0.0
    %420 = vmatpush1.msra.mxu0 0.0
    %421 = vmatprep.subr.mxu0 0.0
    %422 = vmatpush1.msra.mxu0 0.0
    %423 = vmatprep.subr.mxu0 0.0
    %424 = vmatpush1.msra.mxu0 0.0
    %425 = vmatprep.subr.mxu0 0.0
    %426 = vmatpush1.msra.mxu0 0.0
    %427 = vmatprep.subr.mxu0 0.0
    %428 = vmatpush1.msra.mxu0 0.0
    %429 = vmatprep.subr.mxu0 0.0
    %430 = vmatpush1.msra.mxu0 0.0
    %431 = vmatprep.subr.mxu0 0.0
    %432 = vmatpush1.msra.mxu0 0.0
    %433 = vmatprep.subr.mxu0 0.0
    %434 = vmatpush1.msra.mxu0 0.0
    %435 = vmatprep.subr.mxu0 0.0
    %436 = vmatpush1.msra.mxu0 0.0
    %437 = vmatprep.subr.mxu0 0.0
    %438 = vmatpush1.msra.mxu0 0.0
    %439 = vmatprep.subr.mxu0 0.0
    %440 = vmatpush1.msra.mxu0 0.0
    %441 = vmatprep.subr.mxu0 0.0
    %442 = vmatpush1.msra.mxu0 0.0
    %443 = vmatprep.subr.mxu0 0.0
    %444 = vmatpush1.msra.mxu0 0.0
    %445 = vmatprep.subr.mxu0 0.0
    %446 = vmatpush1.msra.mxu0 0.0
    %447 = vmatprep.subr.mxu0 0.0
    %448 = vmatpush1.msra.mxu0 0.0
    %449 = vmatprep.subr.mxu0 0.0
    %450 = vmatpush1.msra.mxu0 0.0
    %451 = vmatprep.subr.mxu0 0.0
    %452 = vmatpush1.msra.mxu0 0.0
    %453 = vmatprep.subr.mxu0 0.0
    %454 = vmatpush1.msra.mxu0 0.0
    %455 = vmatprep.subr.mxu0 0.0
    %456 = vmatpush1.msra.mxu0 0.0
    %457 = vmatprep.subr.mxu0 0.0
    %458 = vmatpush1.msra.mxu0 0.0
    %459 = vmatprep.mubr.f32.mxu0 0.0
    %460 = vmatmul.mubr.f32.gmra.mrb[0].mxu0 %v217
    %v461 = vpop.f32.mrb[0].mxu0
    %v462 = vadd.f32 0.0, %v461
    %v463 = vpop.f32.mrb[0].mxu0
    %464 = vdwg.mxu0
    %v465 = vadd.f32 %v392, %v462
    %v466 = vxor.u32 %v465, 2147483648
    %v467 = vmul.f32 %v466, 1.442695
    %v468 = vpow.pop %v467
    %v469 = vadd.f32 %v468, 1.0
    %v470 = vrcp.pop %v469
    %v471 = vmul.f32 1.0, %v470
    %v472 = vtanh.pop %v465
    %v473 = vmul.f32 %v471, 0.0
    %475 = vrot.lane.b32.xlu0 %v472, 64
    %v476 = vpop.permute.xlu0 %475
    %v478 = vmul.f32 %v471, %v476
    %480 = vrot.lane.b32.xlu0 %v478, 32
    %v481 = vpop.permute.xlu0 %480
    %v483 = vadd.f32 %v473, %v481
    %v484 = vtanh.pop %v483
    %486 = vrot.lane.b32.xlu0 %v484, 64
    %v487 = vpop.permute.xlu0 %486
    %v489 = vmul.f32 %v471, %v487
    %490 = vmatprep.subr.mxu0 0.0
    %491 = vmatpush1.msra.mxu0 %v54
    %492 = vmatprep.subr.mxu0 0.0
    %493 = vmatpush1.msra.mxu0 %v55
    %494 = vmatprep.subr.mxu0 0.0
    %495 = vmatpush1.msra.mxu0 %v56
    %496 = vmatprep.subr.mxu0 0.0
    %497 = vmatpush1.msra.mxu0 %v57
    %498 = vmatprep.subr.mxu0 0.0
    %499 = vmatpush1.msra.mxu0 0.0
    %500 = vmatprep.subr.mxu0 0.0
    %501 = vmatpush1.msra.mxu0 0.0
    %502 = vmatprep.subr.mxu0 0.0
    %503 = vmatpush1.msra.mxu0 0.0
    %504 = vmatprep.subr.mxu0 0.0
    %505 = vmatpush1.msra.mxu0 0.0
    %506 = vmatprep.subr.mxu0 0.0
    %507 = vmatpush1.msra.mxu0 0.0
    %508 = vmatprep.subr.mxu0 0.0
    %509 = vmatpush1.msra.mxu0 0.0
    %510 = vmatprep.subr.mxu0 0.0
    %511 = vmatpush1.msra.mxu0 0.0
    %512 = vmatprep.subr.mxu0 0.0
    %513 = vmatpush1.msra.mxu0 0.0
    %514 = vmatprep.subr.mxu0 0.0
    %515 = vmatpush1.msra.mxu0 0.0
    %516 = vmatprep.subr.mxu0 0.0
    %517 = vmatpush1.msra.mxu0 0.0
    %518 = vmatprep.subr.mxu0 0.0
    %519 = vmatpush1.msra.mxu0 0.0
    %520 = vmatprep.subr.mxu0 0.0
    %521 = vmatpush1.msra.mxu0 0.0
    %522 = vmatprep.subr.mxu0 0.0
    %523 = vmatpush1.msra.mxu0 0.0
    %524 = vmatprep.subr.mxu0 0.0
    %525 = vmatpush1.msra.mxu0 0.0
    %526 = vmatprep.subr.mxu0 0.0
    %527 = vmatpush1.msra.mxu0 0.0
    %528 = vmatprep.subr.mxu0 0.0
    %529 = vmatpush1.msra.mxu0 0.0
    %530 = vmatprep.subr.mxu0 0.0
    %531 = vmatpush1.msra.mxu0 0.0
    %532 = vmatprep.subr.mxu0 0.0
    %533 = vmatpush1.msra.mxu0 0.0
    %534 = vmatprep.subr.mxu0 0.0
    %535 = vmatpush1.msra.mxu0 0.0
    %536 = vmatprep.subr.mxu0 0.0
    %537 = vmatpush1.msra.mxu0 0.0
    %538 = vmatprep.subr.mxu0 0.0
    %539 = vmatpush1.msra.mxu0 0.0
    %540 = vmatprep.subr.mxu0 0.0
    %541 = vmatpush1.msra.mxu0 0.0
    %542 = vmatprep.subr.mxu0 0.0
    %543 = vmatpush1.msra.mxu0 0.0
    %544 = vmatprep.subr.mxu0 0.0
    %545 = vmatpush1.msra.mxu0 0.0
    %546 = vmatprep.subr.mxu0 0.0
    %547 = vmatpush1.msra.mxu0 0.0
    %548 = vmatprep.subr.mxu0 0.0
    %549 = vmatpush1.msra.mxu0 0.0
    %550 = vmatprep.subr.mxu0 0.0
    %551 = vmatpush1.msra.mxu0 0.0
    %552 = vmatprep.subr.mxu0 0.0
    %553 = vmatpush1.msra.mxu0 0.0
    %554 = vmatprep.mubr.f32.mxu0 0.0
    %555 = vmatmul.mubr.f32.gmra.mrb[0].mxu0 %v323
    %v556 = vpop.f32.mrb[0].mxu0
    %v557 = vadd.f32 0.0, %v556
    %v558 = vpop.f32.mrb[0].mxu0
    %559 = vdwg.mxu0
    %v560 = vadd.f32 %v182, %v557
    %v561 = vxor.u32 %v560, 2147483648
    %v562 = vmul.f32 %v561, 1.442695
    %v563 = vpow.pop %v562
    %v564 = vadd.f32 %v563, 1.0
    %v565 = vrcp.pop %v564
    %v566 = vmul.f32 1.0, %v565
    %v567 = vtanh.pop %v560
    %v568 = vmul.f32 %v566, %v307
    %570 = vrot.lane.b32.xlu0 %v567, 64
    %v571 = vpop.permute.xlu0 %570
    %v573 = vmul.f32 %v566, %v571
    %575 = vrot.lane.b32.xlu0 %v573, 32
    %v576 = vpop.permute.xlu0 %575
    %v578 = vadd.f32 %v568, %v576
    %v579 = vtanh.pop %v578
    %581 = vrot.lane.b32.xlu0 %v579, 64
    %v582 = vpop.permute.xlu0 %581
    %v584 = vmul.f32 %v566, %v582
    %586 = vrot.lane.b32.xlu0 %v584, 32
    %v587 = vpop.permute.xlu0 %586
    %v588 = vsel %vm215, %v587, 0
    %590 = vmatprep.subr.mxu0 0.0
    %591 = vmatpush1.msra.mxu0 %v62
    %592 = vmatprep.subr.mxu0 0.0
    %593 = vmatpush1.msra.mxu0 %v63
    %594 = vmatprep.subr.mxu0 0.0
    %595 = vmatpush1.msra.mxu0 %v64
    %596 = vmatprep.subr.mxu0 0.0
    %597 = vmatpush1.msra.mxu0 %v65
    %598 = vmatprep.subr.mxu0 0.0
    %599 = vmatpush1.msra.mxu0 0.0
    %600 = vmatprep.subr.mxu0 0.0
    %601 = vmatpush1.msra.mxu0 0.0
    %602 = vmatprep.subr.mxu0 0.0
    %603 = vmatpush1.msra.mxu0 0.0
    %604 = vmatprep.subr.mxu0 0.0
    %605 = vmatpush1.msra.mxu0 0.0
    %606 = vmatprep.subr.mxu0 0.0
    %607 = vmatpush1.msra.mxu0 0.0
    %608 = vmatprep.subr.mxu0 0.0
    %609 = vmatpush1.msra.mxu0 0.0
    %610 = vmatprep.subr.mxu0 0.0
    %611 = vmatpush1.msra.mxu0 0.0
    %612 = vmatprep.subr.mxu0 0.0
    %613 = vmatpush1.msra.mxu0 0.0
    %614 = vmatprep.subr.mxu0 0.0
    %615 = vmatpush1.msra.mxu0 0.0
    %616 = vmatprep.subr.mxu0 0.0
    %617 = vmatpush1.msra.mxu0 0.0
    %618 = vmatprep.subr.mxu0 0.0
    %619 = vmatpush1.msra.mxu0 0.0
    %620 = vmatprep.subr.mxu0 0.0
    %621 = vmatpush1.msra.mxu0 0.0
    %622 = vmatprep.subr.mxu0 0.0
    %623 = vmatpush1.msra.mxu0 0.0
    %624 = vmatprep.subr.mxu0 0.0
    %625 = vmatpush1.msra.mxu0 0.0
    %626 = vmatprep.subr.mxu0 0.0
    %627 = vmatpush1.msra.mxu0 0.0
    %628 = vmatprep.subr.mxu0 0.0
    %629 = vmatpush1.msra.mxu0 0.0
    %630 = vmatprep.subr.mxu0 0.0
    %631 = vmatpush1.msra.mxu0 0.0
    %632 = vmatprep.subr.mxu0 0.0
    %633 = vmatpush1.msra.mxu0 0.0
    %634 = vmatprep.subr.mxu0 0.0
    %635 = vmatpush1.msra.mxu0 0.0
    %636 = vmatprep.subr.mxu0 0.0
    %637 = vmatpush1.msra.mxu0 0.0
    %638 = vmatprep.subr.mxu0 0.0
    %639 = vmatpush1.msra.mxu0 0.0
    %640 = vmatprep.subr.mxu0 0.0
    %641 = vmatpush1.msra.mxu0 0.0
    %642 = vmatprep.subr.mxu0 0.0
    %643 = vmatpush1.msra.mxu0 0.0
    %644 = vmatprep.subr.mxu0 0.0
    %645 = vmatpush1.msra.mxu0 0.0
    %646 = vmatprep.subr.mxu0 0.0
    %647 = vmatpush1.msra.mxu0 0.0
    %648 = vmatprep.subr.mxu0 0.0
    %649 = vmatpush1.msra.mxu0 0.0
    %650 = vmatprep.subr.mxu0 0.0
    %651 = vmatpush1.msra.mxu0 0.0
    %652 = vmatprep.subr.mxu0 0.0
    %653 = vmatpush1.msra.mxu0 0.0
    %654 = vmatprep.mubr.f32.mxu0 0.0
    %655 = vmatmul.mubr.f32.gmra.mrb[0].mxu0 %v588
    %v656 = vpop.f32.mrb[0].mxu0
    %v657 = vadd.f32 %v318, %v656
    %v658 = vpop.f32.mrb[0].mxu0
    %659 = vdwg.mxu0
    %661 = vrot.lane.b32.xlu0 %v489, 32
    %v662 = vpop.permute.xlu0 %661
    %v663 = vsel %vm215, %v662, 0
    %665 = vmatprep.subr.mxu0 0.0
    %666 = vmatpush1.msra.mxu0 %v58
    %667 = vmatprep.subr.mxu0 0.0
    %668 = vmatpush1.msra.mxu0 %v59
    %669 = vmatprep.subr.mxu0 0.0
    %670 = vmatpush1.msra.mxu0 %v60
    %671 = vmatprep.subr.mxu0 0.0
    %672 = vmatpush1.msra.mxu0 %v61
    %673 = vmatprep.subr.mxu0 0.0
    %674 = vmatpush1.msra.mxu0 0.0
    %675 = vmatprep.subr.mxu0 0.0
    %676 = vmatpush1.msra.mxu0 0.0
    %677 = vmatprep.subr.mxu0 0.0
    %678 = vmatpush1.msra.mxu0 0.0
    %679 = vmatprep.subr.mxu0 0.0
    %680 = vmatpush1.msra.mxu0 0.0
    %681 = vmatprep.subr.mxu0 0.0
    %682 = vmatpush1.msra.mxu0 0.0
    %683 = vmatprep.subr.mxu0 0.0
    %684 = vmatpush1.msra.mxu0 0.0
    %685 = vmatprep.subr.mxu0 0.0
    %686 = vmatpush1.msra.mxu0 0.0
    %687 = vmatprep.subr.mxu0 0.0
    %688 = vmatpush1.msra.mxu0 0.0
    %689 = vmatprep.subr.mxu0 0.0
    %690 = vmatpush1.msra.mxu0 0.0
    %691 = vmatprep.subr.mxu0 0.0
    %692 = vmatpush1.msra.mxu0 0.0
    %693 = vmatprep.subr.mxu0 0.0
    %694 = vmatpush1.msra.mxu0 0.0
    %695 = vmatprep.subr.mxu0 0.0
    %696 = vmatpush1.msra.mxu0 0.0
    %697 = vmatprep.subr.mxu0 0.0
    %698 = vmatpush1.msra.mxu0 0.0
    %699 = vmatprep.subr.mxu0 0.0
    %700 = vmatpush1.msra.mxu0 0.0
    %701 = vmatprep.subr.mxu0 0.0
    %702 = vmatpush1.msra.mxu0 0.0
    %703 = vmatprep.subr.mxu0 0.0
    %704 = vmatpush1.msra.mxu0 0.0
    %705 = vmatprep.subr.mxu0 0.0
    %706 = vmatpush1.msra.mxu0 0.0
    %707 = vmatprep.subr.mxu0 0.0
    %708 = vmatpush1.msra.mxu0 0.0
    %709 = vmatprep.subr.mxu0 0.0
    %710 = vmatpush1.msra.mxu0 0.0
    %711 = vmatprep.subr.mxu0 0.0
    %712 = vmatpush1.msra.mxu0 0.0
    %713 = vmatprep.subr.mxu0 0.0
    %714 = vmatpush1.msra.mxu0 0.0
    %715 = vmatprep.subr.mxu0 0.0
    %716 = vmatpush1.msra.mxu0 0.0
    %717 = vmatprep.subr.mxu0 0.0
    %718 = vmatpush1.msra.mxu0 0.0
    %719 = vmatprep.subr.mxu0 0.0
    %720 = vmatpush1.msra.mxu0 0.0
    %721 = vmatprep.subr.mxu0 0.0
    %722 = vmatpush1.msra.mxu0 0.0
    %723 = vmatprep.subr.mxu0 0.0
    %724 = vmatpush1.msra.mxu0 0.0
    %725 = vmatprep.subr.mxu0 0.0
    %726 = vmatpush1.msra.mxu0 0.0
    %727 = vmatprep.subr.mxu0 0.0
    %728 = vmatpush1.msra.mxu0 0.0
    %729 = vmatprep.mubr.f32.mxu0 0.0
    %730 = vmatmul.mubr.f32.gmra.mrb[0].mxu0 %v663
    %v731 = vpop.f32.mrb[0].mxu0
    %v732 = vadd.f32 0.0, %v731
    %v733 = vpop.f32.mrb[0].mxu0
    %734 = vdwg.mxu0
    %v735 = vadd.f32 %v657, %v732
    %v736 = vxor.u32 %v735, 2147483648
    %v737 = vmul.f32 %v736, 1.442695
    %v738 = vpow.pop %v737
    %v739 = vadd.f32 %v738, 1.0
    %v740 = vrcp.pop %v739
    %v741 = vmul.f32 1.0, %v740
    %v742 = vtanh.pop %v735
    %v743 = vmul.f32 %v741, %v483
    %745 = vrot.lane.b32.xlu0 %v742, 64
    %v746 = vpop.permute.xlu0 %745
    %v748 = vmul.f32 %v741, %v746
    %750 = vrot.lane.b32.xlu0 %v748, 32
    %v751 = vpop.permute.xlu0 %750
    %v753 = vadd.f32 %v743, %v751
    %v754 = vtanh.pop %v753
    %756 = vrot.lane.b32.xlu0 %v754, 64
    %v757 = vpop.permute.xlu0 %756
    %v759 = vmul.f32 %v741, %v757
    %760 = vmatprep.subr.mxu0 0.0
    %761 = vmatpush1.msra.mxu0 %v54
    %762 = vmatprep.subr.mxu0 0.0
    %763 = vmatpush1.msra.mxu0 %v55
    %764 = vmatprep.subr.mxu0 0.0
    %765 = vmatpush1.msra.mxu0 %v56
    %766 = vmatprep.subr.mxu0 0.0
    %767 = vmatpush1.msra.mxu0 %v57
    %768 = vmatprep.subr.mxu0 0.0
    %769 = vmatpush1.msra.mxu0 0.0
    %770 = vmatprep.subr.mxu0 0.0
    %771 = vmatpush1.msra.mxu0 0.0
    %772 = vmatprep.subr.mxu0 0.0
    %773 = vmatpush1.msra.mxu0 0.0
    %774 = vmatprep.subr.mxu0 0.0
    %775 = vmatpush1.msra.mxu0 0.0
    %776 = vmatprep.subr.mxu0 0.0
    %777 = vmatpush1.msra.mxu0 0.0
    %778 = vmatprep.subr.mxu0 0.0
    %779 = vmatpush1.msra.mxu0 0.0
    %780 = vmatprep.subr.mxu0 0.0
    %781 = vmatpush1.msra.mxu0 0.0
    %782 = vmatprep.subr.mxu0 0.0
    %783 = vmatpush1.msra.mxu0 0.0
    %784 = vmatprep.subr.mxu0 0.0
    %785 = vmatpush1.msra.mxu0 0.0
    %786 = vmatprep.subr.mxu0 0.0
    %787 = vmatpush1.msra.mxu0 0.0
    %788 = vmatprep.subr.mxu0 0.0
    %789 = vmatpush1.msra.mxu0 0.0
    %790 = vmatprep.subr.mxu0 0.0
    %791 = vmatpush1.msra.mxu0 0.0
    %792 = vmatprep.subr.mxu0 0.0
    %793 = vmatpush1.msra.mxu0 0.0
    %794 = vmatprep.subr.mxu0 0.0
    %795 = vmatpush1.msra.mxu0 0.0
    %796 = vmatprep.subr.mxu0 0.0
    %797 = vmatpush1.msra.mxu0 0.0
    %798 = vmatprep.subr.mxu0 0.0
    %799 = vmatpush1.msra.mxu0 0.0
    %800 = vmatprep.subr.mxu0 0.0
    %801 = vmatpush1.msra.mxu0 0.0
    %802 = vmatprep.subr.mxu0 0.0
    %803 = vmatpush1.msra.mxu0 0.0
    %804 = vmatprep.subr.mxu0 0.0
    %805 = vmatpush1.msra.mxu0 0.0
    %806 = vmatprep.subr.mxu0 0.0
    %807 = vmatpush1.msra.mxu0 0.0
    %808 = vmatprep.subr.mxu0 0.0
    %809 = vmatpush1.msra.mxu0 0.0
    %810 = vmatprep.subr.mxu0 0.0
    %811 = vmatpush1.msra.mxu0 0.0
    %812 = vmatprep.subr.mxu0 0.0
    %813 = vmatpush1.msra.mxu0 0.0
    %814 = vmatprep.subr.mxu0 0.0
    %815 = vmatpush1.msra.mxu0 0.0
    %816 = vmatprep.subr.mxu0 0.0
    %817 = vmatpush1.msra.mxu0 0.0
    %818 = vmatprep.subr.mxu0 0.0
    %819 = vmatpush1.msra.mxu0 0.0
    %820 = vmatprep.subr.mxu0 0.0
    %821 = vmatpush1.msra.mxu0 0.0
    %822 = vmatprep.subr.mxu0 0.0
    %823 = vmatpush1.msra.mxu0 0.0
    %824 = vmatprep.mubr.f32.mxu0 0.0
    %825 = vmatmul.mubr.f32.gmra.mrb[0].mxu0 %v588
    %v826 = vpop.f32.mrb[0].mxu0
    %v827 = vadd.f32 0.0, %v826
    %v828 = vpop.f32.mrb[0].mxu0
    %829 = vdwg.mxu0
    %v830 = vadd.f32 %v187, %v827
    %v831 = vxor.u32 %v830, 2147483648
    %v832 = vmul.f32 %v831, 1.442695
    %v833 = vpow.pop %v832
    %v834 = vadd.f32 %v833, 1.0
    %v835 = vrcp.pop %v834
    %v836 = vmul.f32 1.0, %v835
    %v837 = vtanh.pop %v830
    %v838 = vmul.f32 %v836, %v578
    %840 = vrot.lane.b32.xlu0 %v837, 64
    %v841 = vpop.permute.xlu0 %840
    %v843 = vmul.f32 %v836, %v841
    %845 = vrot.lane.b32.xlu0 %v843, 32
    %v846 = vpop.permute.xlu0 %845
    %v848 = vadd.f32 %v838, %v846
    %v849 = vtanh.pop %v848
    %851 = vrot.lane.b32.xlu0 %v849, 64
    %v852 = vpop.permute.xlu0 %851
    %v854 = vmul.f32 %v836, %v852
    %856 = vrot.lane.b32.xlu0 %v854, 32
    %v857 = vpop.permute.xlu0 %856
    %v858 = vsel %vm215, %v857, 0
    %860 = vmatprep.subr.mxu0 0.0
    %861 = vmatpush1.msra.mxu0 %v62
    %862 = vmatprep.subr.mxu0 0.0
    %863 = vmatpush1.msra.mxu0 %v63
    %864 = vmatprep.subr.mxu0 0.0
    %865 = vmatpush1.msra.mxu0 %v64
    %866 = vmatprep.subr.mxu0 0.0
    %867 = vmatpush1.msra.mxu0 %v65
    %868 = vmatprep.subr.mxu0 0.0
    %869 = vmatpush1.msra.mxu0 0.0
    %870 = vmatprep.subr.mxu0 0.0
    %871 = vmatpush1.msra.mxu0 0.0
    %872 = vmatprep.subr.mxu0 0.0
    %873 = vmatpush1.msra.mxu0 0.0
    %874 = vmatprep.subr.mxu0 0.0
    %875 = vmatpush1.msra.mxu0 0.0
    %876 = vmatprep.subr.mxu0 0.0
    %877 = vmatpush1.msra.mxu0 0.0
    %878 = vmatprep.subr.mxu0 0.0
    %879 = vmatpush1.msra.mxu0 0.0
    %880 = vmatprep.subr.mxu0 0.0
    %881 = vmatpush1.msra.mxu0 0.0
    %882 = vmatprep.subr.mxu0 0.0
    %883 = vmatpush1.msra.mxu0 0.0
    %884 = vmatprep.subr.mxu0 0.0
    %885 = vmatpush1.msra.mxu0 0.0
    %886 = vmatprep.subr.mxu0 0.0
    %887 = vmatpush1.msra.mxu0 0.0
    %888 = vmatprep.subr.mxu0 0.0
    %889 = vmatpush1.msra.mxu0 0.0
    %890 = vmatprep.subr.mxu0 0.0
    %891 = vmatpush1.msra.mxu0 0.0
    %892 = vmatprep.subr.mxu0 0.0
    %893 = vmatpush1.msra.mxu0 0.0
    %894 = vmatprep.subr.mxu0 0.0
    %895 = vmatpush1.msra.mxu0 0.0
    %896 = vmatprep.subr.mxu0 0.0
    %897 = vmatpush1.msra.mxu0 0.0
    %898 = vmatprep.subr.mxu0 0.0
    %899 = vmatpush1.msra.mxu0 0.0
    %900 = vmatprep.subr.mxu0 0.0
    %901 = vmatpush1.msra.mxu0 0.0
    %902 = vmatprep.subr.mxu0 0.0
    %903 = vmatpush1.msra.mxu0 0.0
    %904 = vmatprep.subr.mxu0 0.0
    %905 = vmatpush1.msra.mxu0 0.0
    %906 = vmatprep.subr.mxu0 0.0
    %907 = vmatpush1.msra.mxu0 0.0
    %908 = vmatprep.subr.mxu0 0.0
    %909 = vmatpush1.msra.mxu0 0.0
    %910 = vmatprep.subr.mxu0 0.0
    %911 = vmatpush1.msra.mxu0 0.0
    %912 = vmatprep.subr.mxu0 0.0
    %913 = vmatpush1.msra.mxu0 0.0
    %914 = vmatprep.subr.mxu0 0.0
    %915 = vmatpush1.msra.mxu0 0.0
    %916 = vmatprep.subr.mxu0 0.0
    %917 = vmatpush1.msra.mxu0 0.0
    %918 = vmatprep.subr.mxu0 0.0
    %919 = vmatpush1.msra.mxu0 0.0
    %920 = vmatprep.subr.mxu0 0.0
    %921 = vmatpush1.msra.mxu0 0.0
    %922 = vmatprep.subr.mxu0 0.0
    %923 = vmatpush1.msra.mxu0 0.0
    %924 = vmatprep.mubr.f32.mxu0 0.0
    %925 = vmatmul.mubr.f32.gmra.mrb[0].mxu0 %v858
    %v926 = vpop.f32.mrb[0].mxu0
    %v927 = vadd.f32 %v318, %v926
    %v928 = vpop.f32.mrb[0].mxu0
    %929 = vdwg.mxu0
    %931 = vrot.lane.b32.xlu0 %v759, 32
    %v932 = vpop.permute.xlu0 %931
    %v933 = vsel %vm215, %v932, 0
    %935 = vmatprep.subr.mxu0 0.0
    %936 = vmatpush1.msra.mxu0 %v58
    %937 = vmatprep.subr.mxu0 0.0
    %938 = vmatpush1.msra.mxu0 %v59
    %939 = vmatprep.subr.mxu0 0.0
    %940 = vmatpush1.msra.mxu0 %v60
    %941 = vmatprep.subr.mxu0 0.0
    %942 = vmatpush1.msra.mxu0 %v61
    %943 = vmatprep.subr.mxu0 0.0
    %944 = vmatpush1.msra.mxu0 0.0
    %945 = vmatprep.subr.mxu0 0.0
    %946 = vmatpush1.msra.mxu0 0.0
    %947 = vmatprep.subr.mxu0 0.0
    %948 = vmatpush1.msra.mxu0 0.0
    %949 = vmatprep.subr.mxu0 0.0
    %950 = vmatpush1.msra.mxu0 0.0
    %951 = vmatprep.subr.mxu0 0.0
    %952 = vmatpush1.msra.mxu0 0.0
    %953 = vmatprep.subr.mxu0 0.0
    %954 = vmatpush1.msra.mxu0 0.0
    %955 = vmatprep.subr.mxu0 0.0
    %956 = vmatpush1.msra.mxu0 0.0
    %957 = vmatprep.subr.mxu0 0.0
    %958 = vmatpush1.msra.mxu0 0.0
    %959 = vmatprep.subr.mxu0 0.0
    %960 = vmatpush1.msra.mxu0 0.0
    %961 = vmatprep.subr.mxu0 0.0
    %962 = vmatpush1.msra.mxu0 0.0
    %963 = vmatprep.subr.mxu0 0.0
    %964 = vmatpush1.msra.mxu0 0.0
    %965 = vmatprep.subr.mxu0 0.0
    %966 = vmatpush1.msra.mxu0 0.0
    %967 = vmatprep.subr.mxu0 0.0
    %968 = vmatpush1.msra.mxu0 0.0
    %969 = vmatprep.subr.mxu0 0.0
    %970 = vmatpush1.msra.mxu0 0.0
    %971 = vmatprep.subr.mxu0 0.0
    %972 = vmatpush1.msra.mxu0 0.0
    %973 = vmatprep.subr.mxu0 0.0
    %974 = vmatpush1.msra.mxu0 0.0
    %975 = vmatprep.subr.mxu0 0.0
    %976 = vmatpush1.msra.mxu0 0.0
    %977 = vmatprep.subr.mxu0 0.0
    %978 = vmatpush1.msra.mxu0 0.0
    %979 = vmatprep.subr.mxu0 0.0
    %980 = vmatpush1.msra.mxu0 0.0
    %981 = vmatprep.subr.mxu0 0.0
    %982 = vmatpush1.msra.mxu0 0.0
    %983 = vmatprep.subr.mxu0 0.0
    %984 = vmatpush1.msra.mxu0 0.0
    %985 = vmatprep.subr.mxu0 0.0
    %986 = vmatpush1.msra.mxu0 0.0
    %987 = vmatprep.subr.mxu0 0.0
    %988 = vmatpush1.msra.mxu0 0.0
    %989 = vmatprep.subr.mxu0 0.0
    %990 = vmatpush1.msra.mxu0 0.0
    %991 = vmatprep.subr.mxu0 0.0
    %992 = vmatpush1.msra.mxu0 0.0
    %993 = vmatprep.subr.mxu0 0.0
    %994 = vmatpush1.msra.mxu0 0.0
    %995 = vmatprep.subr.mxu0 0.0
    %996 = vmatpush1.msra.mxu0 0.0
    %997 = vmatprep.subr.mxu0 0.0
    %998 = vmatpush1.msra.mxu0 0.0
    %999 = vmatprep.mubr.f32.mxu0 0.0
    %1000 = vmatmul.mubr.f32.gmra.mrb[0].mxu0 %v933
    %v1001 = vpop.f32.mrb[0].mxu0
    %v1002 = vadd.f32 0.0, %v1001
    %v1003 = vpop.f32.mrb[0].mxu0
    %1004 = vdwg.mxu0
    %v1005 = vadd.f32 %v927, %v1002
    %v1006 = vxor.u32 %v1005, 2147483648
    %v1007 = vmul.f32 %v1006, 1.442695
    %v1008 = vpow.pop %v1007
    %v1009 = vadd.f32 %v1008, 1.0
    %v1010 = vrcp.pop %v1009
    %v1011 = vmul.f32 1.0, %v1010
    %v1012 = vtanh.pop %v1005
    %v1013 = vmul.f32 %v1011, %v753
    %1015 = vrot.lane.b32.xlu0 %v1012, 64
    %v1016 = vpop.permute.xlu0 %1015
    %v1018 = vmul.f32 %v1011, %v1016
    %1020 = vrot.lane.b32.xlu0 %v1018, 32
    %v1021 = vpop.permute.xlu0 %1020
    %v1023 = vadd.f32 %v1013, %v1021
    %v1024 = vtanh.pop %v1023
    %1026 = vrot.lane.b32.xlu0 %v1024, 64
    %v1027 = vpop.permute.xlu0 %1026
    %v1029 = vmul.f32 %v1011, %v1027
    %1030 = vmatprep.subr.mxu0 0.0
    %1031 = vmatpush1.msra.mxu0 %v54
    %1032 = vmatprep.subr.mxu0 0.0
    %1033 = vmatpush1.msra.mxu0 %v55
    %1034 = vmatprep.subr.mxu0 0.0
    %1035 = vmatpush1.msra.mxu0 %v56
    %1036 = vmatprep.subr.mxu0 0.0
    %1037 = vmatpush1.msra.mxu0 %v57
    %1038 = vmatprep.subr.mxu0 0.0
    %1039 = vmatpush1.msra.mxu0 0.0
    %1040 = vmatprep.subr.mxu0 0.0
    %1041 = vmatpush1.msra.mxu0 0.0
    %1042 = vmatprep.subr.mxu0 0.0
    %1043 = vmatpush1.msra.mxu0 0.0
    %1044 = vmatprep.subr.mxu0 0.0
    %1045 = vmatpush1.msra.mxu0 0.0
    %1046 = vmatprep.subr.mxu0 0.0
    %1047 = vmatpush1.msra.mxu0 0.0
    %1048 = vmatprep.subr.mxu0 0.0
    %1049 = vmatpush1.msra.mxu0 0.0
    %1050 = vmatprep.subr.mxu0 0.0
    %1051 = vmatpush1.msra.mxu0 0.0
    %1052 = vmatprep.subr.mxu0 0.0
    %1053 = vmatpush1.msra.mxu0 0.0
    %1054 = vmatprep.subr.mxu0 0.0
    %1055 = vmatpush1.msra.mxu0 0.0
    %1056 = vmatprep.subr.mxu0 0.0
    %1057 = vmatpush1.msra.mxu0 0.0
    %1058 = vmatprep.subr.mxu0 0.0
    %1059 = vmatpush1.msra.mxu0 0.0
    %1060 = vmatprep.subr.mxu0 0.0
    %1061 = vmatpush1.msra.mxu0 0.0
    %1062 = vmatprep.subr.mxu0 0.0
    %1063 = vmatpush1.msra.mxu0 0.0
    %1064 = vmatprep.subr.mxu0 0.0
    %1065 = vmatpush1.msra.mxu0 0.0
    %1066 = vmatprep.subr.mxu0 0.0
    %1067 = vmatpush1.msra.mxu0 0.0
    %1068 = vmatprep.subr.mxu0 0.0
    %1069 = vmatpush1.msra.mxu0 0.0
    %1070 = vmatprep.subr.mxu0 0.0
    %1071 = vmatpush1.msra.mxu0 0.0
    %1072 = vmatprep.subr.mxu0 0.0
    %1073 = vmatpush1.msra.mxu0 0.0
    %1074 = vmatprep.subr.mxu0 0.0
    %1075 = vmatpush1.msra.mxu0 0.0
    %1076 = vmatprep.subr.mxu0 0.0
    %1077 = vmatpush1.msra.mxu0 0.0
    %1078 = vmatprep.subr.mxu0 0.0
    %1079 = vmatpush1.msra.mxu0 0.0
    %1080 = vmatprep.subr.mxu0 0.0
    %1081 = vmatpush1.msra.mxu0 0.0
    %1082 = vmatprep.subr.mxu0 0.0
    %1083 = vmatpush1.msra.mxu0 0.0
    %1084 = vmatprep.subr.mxu0 0.0
    %1085 = vmatpush1.msra.mxu0 0.0
    %1086 = vmatprep.subr.mxu0 0.0
    %1087 = vmatpush1.msra.mxu0 0.0
    %1088 = vmatprep.subr.mxu0 0.0
    %1089 = vmatpush1.msra.mxu0 0.0
    %1090 = vmatprep.subr.mxu0 0.0
    %1091 = vmatpush1.msra.mxu0 0.0
    %1092 = vmatprep.subr.mxu0 0.0
    %1093 = vmatpush1.msra.mxu0 0.0
    %1094 = vmatprep.mubr.f32.mxu0 0.0
    %1095 = vmatmul.mubr.f32.gmra.mrb[0].mxu0 %v858
    %v1096 = vpop.f32.mrb[0].mxu0
    %v1097 = vadd.f32 0.0, %v1096
    %v1098 = vpop.f32.mrb[0].mxu0
    %1099 = vdwg.mxu0
    %v1100 = vadd.f32 %v192, %v1097
    %v1101 = vxor.u32 %v1100, 2147483648
    %v1102 = vmul.f32 %v1101, 1.442695
    %v1103 = vpow.pop %v1102
    %v1104 = vadd.f32 %v1103, 1.0
    %v1105 = vrcp.pop %v1104
    %v1106 = vmul.f32 1.0, %v1105
    %v1107 = vtanh.pop %v1100
    %v1108 = vmul.f32 %v1106, %v848
    %1110 = vrot.lane.b32.xlu0 %v1107, 64
    %v1111 = vpop.permute.xlu0 %1110
    %v1113 = vmul.f32 %v1106, %v1111
    %1115 = vrot.lane.b32.xlu0 %v1113, 32
    %v1116 = vpop.permute.xlu0 %1115
    %v1118 = vadd.f32 %v1108, %v1116
    %v1119 = vtanh.pop %v1118
    %1121 = vrot.lane.b32.xlu0 %v1119, 64
    %v1122 = vpop.permute.xlu0 %1121
    %v1124 = vmul.f32 %v1106, %v1122
    %1126 = vrot.lane.b32.xlu0 %v1124, 32
    %v1127 = vpop.permute.xlu0 %1126
    %v1128 = vsel %vm215, %v1127, 0
    %1130 = vmatprep.subr.mxu0 0.0
    %1131 = vmatpush1.msra.mxu0 %v62
    %1132 = vmatprep.subr.mxu0 0.0
    %1133 = vmatpush1.msra.mxu0 %v63
    %1134 = vmatprep.subr.mxu0 0.0
    %1135 = vmatpush1.msra.mxu0 %v64
    %1136 = vmatprep.subr.mxu0 0.0
    %1137 = vmatpush1.msra.mxu0 %v65
    %1138 = vmatprep.subr.mxu0 0.0
    %1139 = vmatpush1.msra.mxu0 0.0
    %1140 = vmatprep.subr.mxu0 0.0
    %1141 = vmatpush1.msra.mxu0 0.0
    %1142 = vmatprep.subr.mxu0 0.0
    %1143 = vmatpush1.msra.mxu0 0.0
    %1144 = vmatprep.subr.mxu0 0.0
    %1145 = vmatpush1.msra.mxu0 0.0
    %1146 = vmatprep.subr.mxu0 0.0
    %1147 = vmatpush1.msra.mxu0 0.0
    %1148 = vmatprep.subr.mxu0 0.0
    %1149 = vmatpush1.msra.mxu0 0.0
    %1150 = vmatprep.subr.mxu0 0.0
    %1151 = vmatpush1.msra.mxu0 0.0
    %1152 = vmatprep.subr.mxu0 0.0
    %1153 = vmatpush1.msra.mxu0 0.0
    %1154 = vmatprep.subr.mxu0 0.0
    %1155 = vmatpush1.msra.mxu0 0.0
    %1156 = vmatprep.subr.mxu0 0.0
    %1157 = vmatpush1.msra.mxu0 0.0
    %1158 = vmatprep.subr.mxu0 0.0
    %1159 = vmatpush1.msra.mxu0 0.0
    %1160 = vmatprep.subr.mxu0 0.0
    %1161 = vmatpush1.msra.mxu0 0.0
    %1162 = vmatprep.subr.mxu0 0.0
    %1163 = vmatpush1.msra.mxu0 0.0
    %1164 = vmatprep.subr.mxu0 0.0
    %1165 = vmatpush1.msra.mxu0 0.0
    %1166 = vmatprep.subr.mxu0 0.0
    %1167 = vmatpush1.msra.mxu0 0.0
    %1168 = vmatprep.subr.mxu0 0.0
    %1169 = vmatpush1.msra.mxu0 0.0
    %1170 = vmatprep.subr.mxu0 0.0
    %1171 = vmatpush1.msra.mxu0 0.0
    %1172 = vmatprep.subr.mxu0 0.0
    %1173 = vmatpush1.msra.mxu0 0.0
    %1174 = vmatprep.subr.mxu0 0.0
    %1175 = vmatpush1.msra.mxu0 0.0
    %1176 = vmatprep.subr.mxu0 0.0
    %1177 = vmatpush1.msra.mxu0 0.0
    %1178 = vmatprep.subr.mxu0 0.0
    %1179 = vmatpush1.msra.mxu0 0.0
    %1180 = vmatprep.subr.mxu0 0.0
    %1181 = vmatpush1.msra.mxu0 0.0
    %1182 = vmatprep.subr.mxu0 0.0
    %1183 = vmatpush1.msra.mxu0 0.0
    %1184 = vmatprep.subr.mxu0 0.0
    %1185 = vmatpush1.msra.mxu0 0.0
    %1186 = vmatprep.subr.mxu0 0.0
    %1187 = vmatpush1.msra.mxu0 0.0
    %1188 = vmatprep.subr.mxu0 0.0
    %1189 = vmatpush1.msra.mxu0 0.0
    %1190 = vmatprep.subr.mxu0 0.0
    %1191 = vmatpush1.msra.mxu0 0.0
    %1192 = vmatprep.subr.mxu0 0.0
    %1193 = vmatpush1.msra.mxu0 0.0
    %1194 = vmatprep.mubr.f32.mxu0 0.0
    %1195 = vmatmul.mubr.f32.gmra.mrb[0].mxu0 %v1128
    %v1196 = vpop.f32.mrb[0].mxu0
    %v1197 = vadd.f32 %v318, %v1196
    %v1198 = vpop.f32.mrb[0].mxu0
    %1199 = vdwg.mxu0
    %1201 = vrot.lane.b32.xlu0 %v1029, 32
    %v1202 = vpop.permute.xlu0 %1201
    %v1203 = vsel %vm215, %v1202, 0
    %1205 = vmatprep.subr.mxu0 0.0
    %1206 = vmatpush1.msra.mxu0 %v58
    %1207 = vmatprep.subr.mxu0 0.0
    %1208 = vmatpush1.msra.mxu0 %v59
    %1209 = vmatprep.subr.mxu0 0.0
    %1210 = vmatpush1.msra.mxu0 %v60
    %1211 = vmatprep.subr.mxu0 0.0
    %1212 = vmatpush1.msra.mxu0 %v61
    %1213 = vmatprep.subr.mxu0 0.0
    %1214 = vmatpush1.msra.mxu0 0.0
    %1215 = vmatprep.subr.mxu0 0.0
    %1216 = vmatpush1.msra.mxu0 0.0
    %1217 = vmatprep.subr.mxu0 0.0
    %1218 = vmatpush1.msra.mxu0 0.0
    %1219 = vmatprep.subr.mxu0 0.0
    %1220 = vmatpush1.msra.mxu0 0.0
    %1221 = vmatprep.subr.mxu0 0.0
    %1222 = vmatpush1.msra.mxu0 0.0
    %1223 = vmatprep.subr.mxu0 0.0
    %1224 = vmatpush1.msra.mxu0 0.0
    %1225 = vmatprep.subr.mxu0 0.0
    %1226 = vmatpush1.msra.mxu0 0.0
    %1227 = vmatprep.subr.mxu0 0.0
    %1228 = vmatpush1.msra.mxu0 0.0
    %1229 = vmatprep.subr.mxu0 0.0
    %1230 = vmatpush1.msra.mxu0 0.0
    %1231 = vmatprep.subr.mxu0 0.0
    %1232 = vmatpush1.msra.mxu0 0.0
    %1233 = vmatprep.subr.mxu0 0.0
    %1234 = vmatpush1.msra.mxu0 0.0
    %1235 = vmatprep.subr.mxu0 0.0
    %1236 = vmatpush1.msra.mxu0 0.0
    %1237 = vmatprep.subr.mxu0 0.0
    %1238 = vmatpush1.msra.mxu0 0.0
    %1239 = vmatprep.subr.mxu0 0.0
    %1240 = vmatpush1.msra.mxu0 0.0
    %1241 = vmatprep.subr.mxu0 0.0
    %1242 = vmatpush1.msra.mxu0 0.0
    %1243 = vmatprep.subr.mxu0 0.0
    %1244 = vmatpush1.msra.mxu0 0.0
    %1245 = vmatprep.subr.mxu0 0.0
    %1246 = vmatpush1.msra.mxu0 0.0
    %1247 = vmatprep.subr.mxu0 0.0
    %1248 = vmatpush1.msra.mxu0 0.0
    %1249 = vmatprep.subr.mxu0 0.0
    %1250 = vmatpush1.msra.mxu0 0.0
    %1251 = vmatprep.subr.mxu0 0.0
    %1252 = vmatpush1.msra.mxu0 0.0
    %1253 = vmatprep.subr.mxu0 0.0
    %1254 = vmatpush1.msra.mxu0 0.0
    %1255 = vmatprep.subr.mxu0 0.0
    %1256 = vmatpush1.msra.mxu0 0.0
    %1257 = vmatprep.subr.mxu0 0.0
    %1258 = vmatpush1.msra.mxu0 0.0
    %1259 = vmatprep.subr.mxu0 0.0
    %1260 = vmatpush1.msra.mxu0 0.0
    %1261 = vmatprep.subr.mxu0 0.0
    %1262 = vmatpush1.msra.mxu0 0.0
    %1263 = vmatprep.subr.mxu0 0.0
    %1264 = vmatpush1.msra.mxu0 0.0
    %1265 = vmatprep.subr.mxu0 0.0
    %1266 = vmatpush1.msra.mxu0 0.0
    %1267 = vmatprep.subr.mxu0 0.0
    %1268 = vmatpush1.msra.mxu0 0.0
    %1269 = vmatprep.mubr.f32.mxu0 0.0
    %1270 = vmatmul.mubr.f32.gmra.mrb[0].mxu0 %v1203
    %v1271 = vpop.f32.mrb[0].mxu0
    %v1272 = vadd.f32 0.0, %v1271
    %v1273 = vpop.f32.mrb[0].mxu0
    %1274 = vdwg.mxu0
    %v1275 = vadd.f32 %v1197, %v1272
    %v1276 = vxor.u32 %v1275, 2147483648
    %v1277 = vmul.f32 %v1276, 1.442695
    %v1278 = vpow.pop %v1277
    %v1279 = vadd.f32 %v1278, 1.0
    %v1280 = vrcp.pop %v1279
    %v1281 = vmul.f32 1.0, %v1280
    %v1282 = vtanh.pop %v1275
    %v1283 = vmul.f32 %v1281, %v1023
    %1285 = vrot.lane.b32.xlu0 %v1282, 64
    %v1286 = vpop.permute.xlu0 %1285
    %v1288 = vmul.f32 %v1281, %v1286
    %1290 = vrot.lane.b32.xlu0 %v1288, 32
    %v1291 = vpop.permute.xlu0 %1290
    %v1293 = vadd.f32 %v1283, %v1291
    %v1294 = vtanh.pop %v1293
    %1296 = vrot.lane.b32.xlu0 %v1294, 64
    %v1297 = vpop.permute.xlu0 %1296
    %v1299 = vmul.f32 %v1281, %v1297
    %1300 = vmatprep.subr.mxu0 0.0
    %1301 = vmatpush1.msra.mxu0 %v54
    %1302 = vmatprep.subr.mxu0 0.0
    %1303 = vmatpush1.msra.mxu0 %v55
    %1304 = vmatprep.subr.mxu0 0.0
    %1305 = vmatpush1.msra.mxu0 %v56
    %1306 = vmatprep.subr.mxu0 0.0
    %1307 = vmatpush1.msra.mxu0 %v57
    %1308 = vmatprep.subr.mxu0 0.0
    %1309 = vmatpush1.msra.mxu0 0.0
    %1310 = vmatprep.subr.mxu0 0.0
    %1311 = vmatpush1.msra.mxu0 0.0
    %1312 = vmatprep.subr.mxu0 0.0
    %1313 = vmatpush1.msra.mxu0 0.0
    %1314 = vmatprep.subr.mxu0 0.0
    %1315 = vmatpush1.msra.mxu0 0.0
    %1316 = vmatprep.subr.mxu0 0.0
    %1317 = vmatpush1.msra.mxu0 0.0
    %1318 = vmatprep.subr.mxu0 0.0
    %1319 = vmatpush1.msra.mxu0 0.0
    %1320 = vmatprep.subr.mxu0 0.0
    %1321 = vmatpush1.msra.mxu0 0.0
    %1322 = vmatprep.subr.mxu0 0.0
    %1323 = vmatpush1.msra.mxu0 0.0
    %1324 = vmatprep.subr.mxu0 0.0
    %1325 = vmatpush1.msra.mxu0 0.0
    %1326 = vmatprep.subr.mxu0 0.0
    %1327 = vmatpush1.msra.mxu0 0.0
    %1328 = vmatprep.subr.mxu0 0.0
    %1329 = vmatpush1.msra.mxu0 0.0
    %1330 = vmatprep.subr.mxu0 0.0
    %1331 = vmatpush1.msra.mxu0 0.0
    %1332 = vmatprep.subr.mxu0 0.0
    %1333 = vmatpush1.msra.mxu0 0.0
    %1334 = vmatprep.subr.mxu0 0.0
    %1335 = vmatpush1.msra.mxu0 0.0
    %1336 = vmatprep.subr.mxu0 0.0
    %1337 = vmatpush1.msra.mxu0 0.0
    %1338 = vmatprep.subr.mxu0 0.0
    %1339 = vmatpush1.msra.mxu0 0.0
    %1340 = vmatprep.subr.mxu0 0.0
    %1341 = vmatpush1.msra.mxu0 0.0
    %1342 = vmatprep.subr.mxu0 0.0
    %1343 = vmatpush1.msra.mxu0 0.0
    %1344 = vmatprep.subr.mxu0 0.0
    %1345 = vmatpush1.msra.mxu0 0.0
    %1346 = vmatprep.subr.mxu0 0.0
    %1347 = vmatpush1.msra.mxu0 0.0
    %1348 = vmatprep.subr.mxu0 0.0
    %1349 = vmatpush1.msra.mxu0 0.0
    %1350 = vmatprep.subr.mxu0 0.0
    %1351 = vmatpush1.msra.mxu0 0.0
    %1352 = vmatprep.subr.mxu0 0.0
    %1353 = vmatpush1.msra.mxu0 0.0
    %1354 = vmatprep.subr.mxu0 0.0
    %1355 = vmatpush1.msra.mxu0 0.0
    %1356 = vmatprep.subr.mxu0 0.0
    %1357 = vmatpush1.msra.mxu0 0.0
    %1358 = vmatprep.subr.mxu0 0.0
    %1359 = vmatpush1.msra.mxu0 0.0
    %1360 = vmatprep.subr.mxu0 0.0
    %1361 = vmatpush1.msra.mxu0 0.0
    %1362 = vmatprep.subr.mxu0 0.0
    %1363 = vmatpush1.msra.mxu0 0.0
    %1364 = vmatprep.mubr.f32.mxu0 0.0
    %1365 = vmatmul.mubr.f32.gmra.mrb[0].mxu0 %v1128
    %v1366 = vpop.f32.mrb[0].mxu0
    %v1367 = vadd.f32 0.0, %v1366
    %v1368 = vpop.f32.mrb[0].mxu0
    %1369 = vdwg.mxu0
    %v1370 = vadd.f32 %v197, %v1367
    %v1371 = vxor.u32 %v1370, 2147483648
    %v1372 = vmul.f32 %v1371, 1.442695
    %v1373 = vpow.pop %v1372
    %v1374 = vadd.f32 %v1373, 1.0
    %v1375 = vrcp.pop %v1374
    %v1376 = vmul.f32 1.0, %v1375
    %v1377 = vtanh.pop %v1370
    %v1378 = vmul.f32 %v1376, %v1118
    %1380 = vrot.lane.b32.xlu0 %v1377, 64
    %v1381 = vpop.permute.xlu0 %1380
    %v1383 = vmul.f32 %v1376, %v1381
    %1385 = vrot.lane.b32.xlu0 %v1383, 32
    %v1386 = vpop.permute.xlu0 %1385
    %v1388 = vadd.f32 %v1378, %v1386
    %v1389 = vtanh.pop %v1388
    %1391 = vrot.lane.b32.xlu0 %v1389, 64
    %v1392 = vpop.permute.xlu0 %1391
    %v1394 = vmul.f32 %v1376, %v1392
    %1396 = vrot.lane.b32.xlu0 %v1394, 32
    %v1397 = vpop.permute.xlu0 %1396
    %v1398 = vsel %vm215, %v1397, 0
    %1400 = vmatprep.subr.mxu0 0.0
    %1401 = vmatpush1.msra.mxu0 %v62
    %1402 = vmatprep.subr.mxu0 0.0
    %1403 = vmatpush1.msra.mxu0 %v63
    %1404 = vmatprep.subr.mxu0 0.0
    %1405 = vmatpush1.msra.mxu0 %v64
    %1406 = vmatprep.subr.mxu0 0.0
    %1407 = vmatpush1.msra.mxu0 %v65
    %1408 = vmatprep.subr.mxu0 0.0
    %1409 = vmatpush1.msra.mxu0 0.0
    %1410 = vmatprep.subr.mxu0 0.0
    %1411 = vmatpush1.msra.mxu0 0.0
    %1412 = vmatprep.subr.mxu0 0.0
    %1413 = vmatpush1.msra.mxu0 0.0
    %1414 = vmatprep.subr.mxu0 0.0
    %1415 = vmatpush1.msra.mxu0 0.0
    %1416 = vmatprep.subr.mxu0 0.0
    %1417 = vmatpush1.msra.mxu0 0.0
    %1418 = vmatprep.subr.mxu0 0.0
    %1419 = vmatpush1.msra.mxu0 0.0
    %1420 = vmatprep.subr.mxu0 0.0
    %1421 = vmatpush1.msra.mxu0 0.0
    %1422 = vmatprep.subr.mxu0 0.0
    %1423 = vmatpush1.msra.mxu0 0.0
    %1424 = vmatprep.subr.mxu0 0.0
    %1425 = vmatpush1.msra.mxu0 0.0
    %1426 = vmatprep.subr.mxu0 0.0
    %1427 = vmatpush1.msra.mxu0 0.0
    %1428 = vmatprep.subr.mxu0 0.0
    %1429 = vmatpush1.msra.mxu0 0.0
    %1430 = vmatprep.subr.mxu0 0.0
    %1431 = vmatpush1.msra.mxu0 0.0
    %1432 = vmatprep.subr.mxu0 0.0
    %1433 = vmatpush1.msra.mxu0 0.0
    %1434 = vmatprep.subr.mxu0 0.0
    %1435 = vmatpush1.msra.mxu0 0.0
    %1436 = vmatprep.subr.mxu0 0.0
    %1437 = vmatpush1.msra.mxu0 0.0
    %1438 = vmatprep.subr.mxu0 0.0
    %1439 = vmatpush1.msra.mxu0 0.0
    %1440 = vmatprep.subr.mxu0 0.0
    %1441 = vmatpush1.msra.mxu0 0.0
    %1442 = vmatprep.subr.mxu0 0.0
    %1443 = vmatpush1.msra.mxu0 0.0
    %1444 = vmatprep.subr.mxu0 0.0
    %1445 = vmatpush1.msra.mxu0 0.0
    %1446 = vmatprep.subr.mxu0 0.0
    %1447 = vmatpush1.msra.mxu0 0.0
    %1448 = vmatprep.subr.mxu0 0.0
    %1449 = vmatpush1.msra.mxu0 0.0
    %1450 = vmatprep.subr.mxu0 0.0
    %1451 = vmatpush1.msra.mxu0 0.0
    %1452 = vmatprep.subr.mxu0 0.0
    %1453 = vmatpush1.msra.mxu0 0.0
    %1454 = vmatprep.subr.mxu0 0.0
    %1455 = vmatpush1.msra.mxu0 0.0
    %1456 = vmatprep.subr.mxu0 0.0
    %1457 = vmatpush1.msra.mxu0 0.0
    %1458 = vmatprep.subr.mxu0 0.0
    %1459 = vmatpush1.msra.mxu0 0.0
    %1460 = vmatprep.subr.mxu0 0.0
    %1461 = vmatpush1.msra.mxu0 0.0
    %1462 = vmatprep.subr.mxu0 0.0
    %1463 = vmatpush1.msra.mxu0 0.0
    %1464 = vmatprep.mubr.f32.mxu0 0.0
    %1465 = vmatmul.mubr.f32.gmra.mrb[0].mxu0 %v1398
    %v1466 = vpop.f32.mrb[0].mxu0
    %v1467 = vadd.f32 %v318, %v1466
    %v1468 = vpop.f32.mrb[0].mxu0
    %1469 = vdwg.mxu0
    %1471 = vrot.lane.b32.xlu0 %v1299, 32
    %v1472 = vpop.permute.xlu0 %1471
    %v1473 = vsel %vm215, %v1472, 0
    %1475 = vmatprep.subr.mxu0 0.0
    %1476 = vmatpush1.msra.mxu0 %v58
    %1477 = vmatprep.subr.mxu0 0.0
    %1478 = vmatpush1.msra.mxu0 %v59
    %1479 = vmatprep.subr.mxu0 0.0
    %1480 = vmatpush1.msra.mxu0 %v60
    %1481 = vmatprep.subr.mxu0 0.0
    %1482 = vmatpush1.msra.mxu0 %v61
    %1483 = vmatprep.subr.mxu0 0.0
    %1484 = vmatpush1.msra.mxu0 0.0
    %1485 = vmatprep.subr.mxu0 0.0
    %1486 = vmatpush1.msra.mxu0 0.0
    %1487 = vmatprep.subr.mxu0 0.0
    %1488 = vmatpush1.msra.mxu0 0.0
    %1489 = vmatprep.subr.mxu0 0.0
    %1490 = vmatpush1.msra.mxu0 0.0
    %1491 = vmatprep.subr.mxu0 0.0
    %1492 = vmatpush1.msra.mxu0 0.0
    %1493 = vmatprep.subr.mxu0 0.0
    %1494 = vmatpush1.msra.mxu0 0.0
    %1495 = vmatprep.subr.mxu0 0.0
    %1496 = vmatpush1.msra.mxu0 0.0
    %1497 = vmatprep.subr.mxu0 0.0
    %1498 = vmatpush1.msra.mxu0 0.0
    %1499 = vmatprep.subr.mxu0 0.0
    %1500 = vmatpush1.msra.mxu0 0.0
    %1501 = vmatprep.subr.mxu0 0.0
    %1502 = vmatpush1.msra.mxu0 0.0
    %1503 = vmatprep.subr.mxu0 0.0
    %1504 = vmatpush1.msra.mxu0 0.0
    %1505 = vmatprep.subr.mxu0 0.0
    %1506 = vmatpush1.msra.mxu0 0.0
    %1507 = vmatprep.subr.mxu0 0.0
    %1508 = vmatpush1.msra.mxu0 0.0
    %1509 = vmatprep.subr.mxu0 0.0
    %1510 = vmatpush1.msra.mxu0 0.0
    %1511 = vmatprep.subr.mxu0 0.0
    %1512 = vmatpush1.msra.mxu0 0.0
    %1513 = vmatprep.subr.mxu0 0.0
    %1514 = vmatpush1.msra.mxu0 0.0
    %1515 = vmatprep.subr.mxu0 0.0
    %1516 = vmatpush1.msra.mxu0 0.0
    %1517 = vmatprep.subr.mxu0 0.0
    %1518 = vmatpush1.msra.mxu0 0.0
    %1519 = vmatprep.subr.mxu0 0.0
    %1520 = vmatpush1.msra.mxu0 0.0
    %1521 = vmatprep.subr.mxu0 0.0
    %1522 = vmatpush1.msra.mxu0 0.0
    %1523 = vmatprep.subr.mxu0 0.0
    %1524 = vmatpush1.msra.mxu0 0.0
    %1525 = vmatprep.subr.mxu0 0.0
    %1526 = vmatpush1.msra.mxu0 0.0
    %1527 = vmatprep.subr.mxu0 0.0
    %1528 = vmatpush1.msra.mxu0 0.0
    %1529 = vmatprep.subr.mxu0 0.0
    %1530 = vmatpush1.msra.mxu0 0.0
    %1531 = vmatprep.subr.mxu0 0.0
    %1532 = vmatpush1.msra.mxu0 0.0
    %1533 = vmatprep.subr.mxu0 0.0
    %1534 = vmatpush1.msra.mxu0 0.0
    %1535 = vmatprep.subr.mxu0 0.0
    %1536 = vmatpush1.msra.mxu0 0.0
    %1537 = vmatprep.subr.mxu0 0.0
    %1538 = vmatpush1.msra.mxu0 0.0
    %1539 = vmatprep.mubr.f32.mxu0 0.0
    %1540 = vmatmul.mubr.f32.gmra.mrb[0].mxu0 %v1473
    %v1541 = vpop.f32.mrb[0].mxu0
    %v1542 = vadd.f32 0.0, %v1541
    %v1543 = vpop.f32.mrb[0].mxu0
    %1544 = vdwg.mxu0
    %v1545 = vadd.f32 %v1467, %v1542
    %v1546 = vxor.u32 %v1545, 2147483648
    %v1547 = vmul.f32 %v1546, 1.442695
    %v1548 = vpow.pop %v1547
    %v1549 = vadd.f32 %v1548, 1.0
    %v1550 = vrcp.pop %v1549
    %v1551 = vmul.f32 1.0, %v1550
    %v1552 = vtanh.pop %v1545
    %v1553 = vmul.f32 %v1551, %v1293
    %1555 = vrot.lane.b32.xlu0 %v1552, 64
    %v1556 = vpop.permute.xlu0 %1555
    %v1558 = vmul.f32 %v1551, %v1556
    %1560 = vrot.lane.b32.xlu0 %v1558, 32
    %v1561 = vpop.permute.xlu0 %1560
    %v1563 = vadd.f32 %v1553, %v1561
    %v1564 = vtanh.pop %v1563
    %1566 = vrot.lane.b32.xlu0 %v1564, 64
    %v1567 = vpop.permute.xlu0 %1566
    %v1569 = vmul.f32 %v1551, %v1567
    %1570 = vmatprep.subr.mxu0 0.0
    %1571 = vmatpush1.msra.mxu0 %v54
    %1572 = vmatprep.subr.mxu0 0.0
    %1573 = vmatpush1.msra.mxu0 %v55
    %1574 = vmatprep.subr.mxu0 0.0
    %1575 = vmatpush1.msra.mxu0 %v56
    %1576 = vmatprep.subr.mxu0 0.0
    %1577 = vmatpush1.msra.mxu0 %v57
    %1578 = vmatprep.subr.mxu0 0.0
    %1579 = vmatpush1.msra.mxu0 0.0
    %1580 = vmatprep.subr.mxu0 0.0
    %1581 = vmatpush1.msra.mxu0 0.0
    %1582 = vmatprep.subr.mxu0 0.0
    %1583 = vmatpush1.msra.mxu0 0.0
    %1584 = vmatprep.subr.mxu0 0.0
    %1585 = vmatpush1.msra.mxu0 0.0
    %1586 = vmatprep.subr.mxu0 0.0
    %1587 = vmatpush1.msra.mxu0 0.0
    %1588 = vmatprep.subr.mxu0 0.0
    %1589 = vmatpush1.msra.mxu0 0.0
    %1590 = vmatprep.subr.mxu0 0.0
    %1591 = vmatpush1.msra.mxu0 0.0
    %1592 = vmatprep.subr.mxu0 0.0
    %1593 = vmatpush1.msra.mxu0 0.0
    %1594 = vmatprep.subr.mxu0 0.0
    %1595 = vmatpush1.msra.mxu0 0.0
    %1596 = vmatprep.subr.mxu0 0.0
    %1597 = vmatpush1.msra.mxu0 0.0
    %1598 = vmatprep.subr.mxu0 0.0
    %1599 = vmatpush1.msra.mxu0 0.0
    %1600 = vmatprep.subr.mxu0 0.0
    %1601 = vmatpush1.msra.mxu0 0.0
    %1602 = vmatprep.subr.mxu0 0.0
    %1603 = vmatpush1.msra.mxu0 0.0
    %1604 = vmatprep.subr.mxu0 0.0
    %1605 = vmatpush1.msra.mxu0 0.0
    %1606 = vmatprep.subr.mxu0 0.0
    %1607 = vmatpush1.msra.mxu0 0.0
    %1608 = vmatprep.subr.mxu0 0.0
    %1609 = vmatpush1.msra.mxu0 0.0
    %1610 = vmatprep.subr.mxu0 0.0
    %1611 = vmatpush1.msra.mxu0 0.0
    %1612 = vmatprep.subr.mxu0 0.0
    %1613 = vmatpush1.msra.mxu0 0.0
    %1614 = vmatprep.subr.mxu0 0.0
    %1615 = vmatpush1.msra.mxu0 0.0
    %1616 = vmatprep.subr.mxu0 0.0
    %1617 = vmatpush1.msra.mxu0 0.0
    %1618 = vmatprep.subr.mxu0 0.0
    %1619 = vmatpush1.msra.mxu0 0.0
    %1620 = vmatprep.subr.mxu0 0.0
    %1621 = vmatpush1.msra.mxu0 0.0
    %1622 = vmatprep.subr.mxu0 0.0
    %1623 = vmatpush1.msra.mxu0 0.0
    %1624 = vmatprep.subr.mxu0 0.0
    %1625 = vmatpush1.msra.mxu0 0.0
    %1626 = vmatprep.subr.mxu0 0.0
    %1627 = vmatpush1.msra.mxu0 0.0
    %1628 = vmatprep.subr.mxu0 0.0
    %1629 = vmatpush1.msra.mxu0 0.0
    %1630 = vmatprep.subr.mxu0 0.0
    %1631 = vmatpush1.msra.mxu0 0.0
    %1632 = vmatprep.subr.mxu0 0.0
    %1633 = vmatpush1.msra.mxu0 0.0
    %1634 = vmatprep.mubr.f32.mxu0 0.0
    %1635 = vmatmul.mubr.f32.gmra.mrb[0].mxu0 %v1398
    %v1636 = vpop.f32.mrb[0].mxu0
    %v1637 = vadd.f32 0.0, %v1636
    %v1638 = vpop.f32.mrb[0].mxu0
    %1639 = vdwg.mxu0
    %v1640 = vadd.f32 %v202, %v1637
    %v1641 = vxor.u32 %v1640, 2147483648
    %v1642 = vmul.f32 %v1641, 1.442695
    %v1643 = vpow.pop %v1642
    %v1644 = vadd.f32 %v1643, 1.0
    %v1645 = vrcp.pop %v1644
    %v1646 = vmul.f32 1.0, %v1645
    %v1647 = vtanh.pop %v1640
    %v1648 = vmul.f32 %v1646, %v1388
    %1650 = vrot.lane.b32.xlu0 %v1647, 64
    %v1651 = vpop.permute.xlu0 %1650
    %v1653 = vmul.f32 %v1646, %v1651
    %1655 = vrot.lane.b32.xlu0 %v1653, 32
    %v1656 = vpop.permute.xlu0 %1655
    %v1658 = vadd.f32 %v1648, %v1656
    %v1659 = vtanh.pop %v1658
    %1661 = vrot.lane.b32.xlu0 %v1659, 64
    %v1662 = vpop.permute.xlu0 %1661
    %v1664 = vmul.f32 %v1646, %v1662
    %1666 = vrot.lane.b32.xlu0 %v1664, 32
    %v1667 = vpop.permute.xlu0 %1666
    %v1668 = vsel %vm215, %v1667, 0
    %1670 = vmatprep.subr.mxu0 0.0
    %1671 = vmatpush1.msra.mxu0 %v62
    %1672 = vmatprep.subr.mxu0 0.0
    %1673 = vmatpush1.msra.mxu0 %v63
    %1674 = vmatprep.subr.mxu0 0.0
    %1675 = vmatpush1.msra.mxu0 %v64
    %1676 = vmatprep.subr.mxu0 0.0
    %1677 = vmatpush1.msra.mxu0 %v65
    %1678 = vmatprep.subr.mxu0 0.0
    %1679 = vmatpush1.msra.mxu0 0.0
    %1680 = vmatprep.subr.mxu0 0.0
    %1681 = vmatpush1.msra.mxu0 0.0
    %1682 = vmatprep.subr.mxu0 0.0
    %1683 = vmatpush1.msra.mxu0 0.0
    %1684 = vmatprep.subr.mxu0 0.0
    %1685 = vmatpush1.msra.mxu0 0.0
    %1686 = vmatprep.subr.mxu0 0.0
    %1687 = vmatpush1.msra.mxu0 0.0
    %1688 = vmatprep.subr.mxu0 0.0
    %1689 = vmatpush1.msra.mxu0 0.0
    %1690 = vmatprep.subr.mxu0 0.0
    %1691 = vmatpush1.msra.mxu0 0.0
    %1692 = vmatprep.subr.mxu0 0.0
    %1693 = vmatpush1.msra.mxu0 0.0
    %1694 = vmatprep.subr.mxu0 0.0
    %1695 = vmatpush1.msra.mxu0 0.0
    %1696 = vmatprep.subr.mxu0 0.0
    %1697 = vmatpush1.msra.mxu0 0.0
    %1698 = vmatprep.subr.mxu0 0.0
    %1699 = vmatpush1.msra.mxu0 0.0
    %1700 = vmatprep.subr.mxu0 0.0
    %1701 = vmatpush1.msra.mxu0 0.0
    %1702 = vmatprep.subr.mxu0 0.0
    %1703 = vmatpush1.msra.mxu0 0.0
    %1704 = vmatprep.subr.mxu0 0.0
    %1705 = vmatpush1.msra.mxu0 0.0
    %1706 = vmatprep.subr.mxu0 0.0
    %1707 = vmatpush1.msra.mxu0 0.0
    %1708 = vmatprep.subr.mxu0 0.0
    %1709 = vmatpush1.msra.mxu0 0.0
    %1710 = vmatprep.subr.mxu0 0.0
    %1711 = vmatpush1.msra.mxu0 0.0
    %1712 = vmatprep.subr.mxu0 0.0
    %1713 = vmatpush1.msra.mxu0 0.0
    %1714 = vmatprep.subr.mxu0 0.0
    %1715 = vmatpush1.msra.mxu0 0.0
    %1716 = vmatprep.subr.mxu0 0.0
    %1717 = vmatpush1.msra.mxu0 0.0
    %1718 = vmatprep.subr.mxu0 0.0
    %1719 = vmatpush1.msra.mxu0 0.0
    %1720 = vmatprep.subr.mxu0 0.0
    %1721 = vmatpush1.msra.mxu0 0.0
    %1722 = vmatprep.subr.mxu0 0.0
    %1723 = vmatpush1.msra.mxu0 0.0
    %1724 = vmatprep.subr.mxu0 0.0
    %1725 = vmatpush1.msra.mxu0 0.0
    %1726 = vmatprep.subr.mxu0 0.0
    %1727 = vmatpush1.msra.mxu0 0.0
    %1728 = vmatprep.subr.mxu0 0.0
    %1729 = vmatpush1.msra.mxu0 0.0
    %1730 = vmatprep.subr.mxu0 0.0
    %1731 = vmatpush1.msra.mxu0 0.0
    %1732 = vmatprep.subr.mxu0 0.0
    %1733 = vmatpush1.msra.mxu0 0.0
    %1734 = vmatprep.mubr.f32.mxu0 0.0
    %1735 = vmatmul.mubr.f32.gmra.mrb[0].mxu0 %v1668
    %v1736 = vpop.f32.mrb[0].mxu0
    %v1737 = vadd.f32 %v318, %v1736
    %v1738 = vpop.f32.mrb[0].mxu0
    %1739 = vdwg.mxu0
    %1741 = vrot.lane.b32.xlu0 %v1569, 32
    %v1742 = vpop.permute.xlu0 %1741
    %v1743 = vsel %vm215, %v1742, 0
    %1745 = vmatprep.subr.mxu0 0.0
    %1746 = vmatpush1.msra.mxu0 %v58
    %1747 = vmatprep.subr.mxu0 0.0
    %1748 = vmatpush1.msra.mxu0 %v59
    %1749 = vmatprep.subr.mxu0 0.0
    %1750 = vmatpush1.msra.mxu0 %v60
    %1751 = vmatprep.subr.mxu0 0.0
    %1752 = vmatpush1.msra.mxu0 %v61
    %1753 = vmatprep.subr.mxu0 0.0
    %1754 = vmatpush1.msra.mxu0 0.0
    %1755 = vmatprep.subr.mxu0 0.0
    %1756 = vmatpush1.msra.mxu0 0.0
    %1757 = vmatprep.subr.mxu0 0.0
    %1758 = vmatpush1.msra.mxu0 0.0
    %1759 = vmatprep.subr.mxu0 0.0
    %1760 = vmatpush1.msra.mxu0 0.0
    %1761 = vmatprep.subr.mxu0 0.0
    %1762 = vmatpush1.msra.mxu0 0.0
    %1763 = vmatprep.subr.mxu0 0.0
    %1764 = vmatpush1.msra.mxu0 0.0
    %1765 = vmatprep.subr.mxu0 0.0
    %1766 = vmatpush1.msra.mxu0 0.0
    %1767 = vmatprep.subr.mxu0 0.0
    %1768 = vmatpush1.msra.mxu0 0.0
    %1769 = vmatprep.subr.mxu0 0.0
    %1770 = vmatpush1.msra.mxu0 0.0
    %1771 = vmatprep.subr.mxu0 0.0
    %1772 = vmatpush1.msra.mxu0 0.0
    %1773 = vmatprep.subr.mxu0 0.0
    %1774 = vmatpush1.msra.mxu0 0.0
    %1775 = vmatprep.subr.mxu0 0.0
    %1776 = vmatpush1.msra.mxu0 0.0
    %1777 = vmatprep.subr.mxu0 0.0
    %1778 = vmatpush1.msra.mxu0 0.0
    %1779 = vmatprep.subr.mxu0 0.0
    %1780 = vmatpush1.msra.mxu0 0.0
    %1781 = vmatprep.subr.mxu0 0.0
    %1782 = vmatpush1.msra.mxu0 0.0
    %1783 = vmatprep.subr.mxu0 0.0
    %1784 = vmatpush1.msra.mxu0 0.0
    %1785 = vmatprep.subr.mxu0 0.0
    %1786 = vmatpush1.msra.mxu0 0.0
    %1787 = vmatprep.subr.mxu0 0.0
    %1788 = vmatpush1.msra.mxu0 0.0
    %1789 = vmatprep.subr.mxu0 0.0
    %1790 = vmatpush1.msra.mxu0 0.0
    %1791 = vmatprep.subr.mxu0 0.0
    %1792 = vmatpush1.msra.mxu0 0.0
    %1793 = vmatprep.subr.mxu0 0.0
    %1794 = vmatpush1.msra.mxu0 0.0
    %1795 = vmatprep.subr.mxu0 0.0
    %1796 = vmatpush1.msra.mxu0 0.0
    %1797 = vmatprep.subr.mxu0 0.0
    %1798 = vmatpush1.msra.mxu0 0.0
    %1799 = vmatprep.subr.mxu0 0.0
    %1800 = vmatpush1.msra.mxu0 0.0
    %1801 = vmatprep.subr.mxu0 0.0
    %1802 = vmatpush1.msra.mxu0 0.0
    %1803 = vmatprep.subr.mxu0 0.0
    %1804 = vmatpush1.msra.mxu0 0.0
    %1805 = vmatprep.subr.mxu0 0.0
    %1806 = vmatpush1.msra.mxu0 0.0
    %1807 = vmatprep.subr.mxu0 0.0
    %1808 = vmatpush1.msra.mxu0 0.0
    %1809 = vmatprep.mubr.f32.mxu0 0.0
    %1810 = vmatmul.mubr.f32.gmra.mrb[0].mxu0 %v1743
    %v1811 = vpop.f32.mrb[0].mxu0
    %v1812 = vadd.f32 0.0, %v1811
    %v1813 = vpop.f32.mrb[0].mxu0
    %1814 = vdwg.mxu0
    %v1815 = vadd.f32 %v1737, %v1812
    %v1816 = vxor.u32 %v1815, 2147483648
    %v1817 = vmul.f32 %v1816, 1.442695
    %v1818 = vpow.pop %v1817
    %v1819 = vadd.f32 %v1818, 1.0
    %v1820 = vrcp.pop %v1819
    %v1821 = vmul.f32 1.0, %v1820
    %v1822 = vtanh.pop %v1815
    %v1823 = vmul.f32 %v1821, %v1563
    %1825 = vrot.lane.b32.xlu0 %v1822, 64
    %v1826 = vpop.permute.xlu0 %1825
    %v1828 = vmul.f32 %v1821, %v1826
    %1830 = vrot.lane.b32.xlu0 %v1828, 32
    %v1831 = vpop.permute.xlu0 %1830
    %v1833 = vadd.f32 %v1823, %v1831
    %v1834 = vtanh.pop %v1833
    %1836 = vrot.lane.b32.xlu0 %v1834, 64
    %v1837 = vpop.permute.xlu0 %1836
    %v1839 = vmul.f32 %v1821, %v1837
    %1840 = vmatprep.subr.mxu0 0.0
    %1841 = vmatpush1.msra.mxu0 %v54
    %1842 = vmatprep.subr.mxu0 0.0
    %1843 = vmatpush1.msra.mxu0 %v55
    %1844 = vmatprep.subr.mxu0 0.0
    %1845 = vmatpush1.msra.mxu0 %v56
    %1846 = vmatprep.subr.mxu0 0.0
    %1847 = vmatpush1.msra.mxu0 %v57
    %1848 = vmatprep.subr.mxu0 0.0
    %1849 = vmatpush1.msra.mxu0 0.0
    %1850 = vmatprep.subr.mxu0 0.0
    %1851 = vmatpush1.msra.mxu0 0.0
    %1852 = vmatprep.subr.mxu0 0.0
    %1853 = vmatpush1.msra.mxu0 0.0
    %1854 = vmatprep.subr.mxu0 0.0
    %1855 = vmatpush1.msra.mxu0 0.0
    %1856 = vmatprep.subr.mxu0 0.0
    %1857 = vmatpush1.msra.mxu0 0.0
    %1858 = vmatprep.subr.mxu0 0.0
    %1859 = vmatpush1.msra.mxu0 0.0
    %1860 = vmatprep.subr.mxu0 0.0
    %1861 = vmatpush1.msra.mxu0 0.0
    %1862 = vmatprep.subr.mxu0 0.0
    %1863 = vmatpush1.msra.mxu0 0.0
    %1864 = vmatprep.subr.mxu0 0.0
    %1865 = vmatpush1.msra.mxu0 0.0
    %1866 = vmatprep.subr.mxu0 0.0
    %1867 = vmatpush1.msra.mxu0 0.0
    %1868 = vmatprep.subr.mxu0 0.0
    %1869 = vmatpush1.msra.mxu0 0.0
    %1870 = vmatprep.subr.mxu0 0.0
    %1871 = vmatpush1.msra.mxu0 0.0
    %1872 = vmatprep.subr.mxu0 0.0
    %1873 = vmatpush1.msra.mxu0 0.0
    %1874 = vmatprep.subr.mxu0 0.0
    %1875 = vmatpush1.msra.mxu0 0.0
    %1876 = vmatprep.subr.mxu0 0.0
    %1877 = vmatpush1.msra.mxu0 0.0
    %1878 = vmatprep.subr.mxu0 0.0
    %1879 = vmatpush1.msra.mxu0 0.0
    %1880 = vmatprep.subr.mxu0 0.0
    %1881 = vmatpush1.msra.mxu0 0.0
    %1882 = vmatprep.subr.mxu0 0.0
    %1883 = vmatpush1.msra.mxu0 0.0
    %1884 = vmatprep.subr.mxu0 0.0
    %1885 = vmatpush1.msra.mxu0 0.0
    %1886 = vmatprep.subr.mxu0 0.0
    %1887 = vmatpush1.msra.mxu0 0.0
    %1888 = vmatprep.subr.mxu0 0.0
    %1889 = vmatpush1.msra.mxu0 0.0
    %1890 = vmatprep.subr.mxu0 0.0
    %1891 = vmatpush1.msra.mxu0 0.0
    %1892 = vmatprep.subr.mxu0 0.0
    %1893 = vmatpush1.msra.mxu0 0.0
    %1894 = vmatprep.subr.mxu0 0.0
    %1895 = vmatpush1.msra.mxu0 0.0
    %1896 = vmatprep.subr.mxu0 0.0
    %1897 = vmatpush1.msra.mxu0 0.0
    %1898 = vmatprep.subr.mxu0 0.0
    %1899 = vmatpush1.msra.mxu0 0.0
    %1900 = vmatprep.subr.mxu0 0.0
    %1901 = vmatpush1.msra.mxu0 0.0
    %1902 = vmatprep.subr.mxu0 0.0
    %1903 = vmatpush1.msra.mxu0 0.0
    %1904 = vmatprep.mubr.f32.mxu0 0.0
    %1905 = vmatmul.mubr.f32.gmra.mrb[0].mxu0 %v1668
    %v1906 = vpop.f32.mrb[0].mxu0
    %v1907 = vadd.f32 0.0, %v1906
    %v1908 = vpop.f32.mrb[0].mxu0
    %1909 = vdwg.mxu0
    %v1910 = vadd.f32 %v207, %v1907
    %v1911 = vxor.u32 %v1910, 2147483648
    %v1912 = vmul.f32 %v1911, 1.442695
    %v1913 = vpow.pop %v1912
    %v1914 = vadd.f32 %v1913, 1.0
    %v1915 = vrcp.pop %v1914
    %v1916 = vmul.f32 1.0, %v1915
    %v1917 = vtanh.pop %v1910
    %v1918 = vmul.f32 %v1916, %v1658
    %1920 = vrot.lane.b32.xlu0 %v1917, 64
    %v1921 = vpop.permute.xlu0 %1920
    %v1923 = vmul.f32 %v1916, %v1921
    %1925 = vrot.lane.b32.xlu0 %v1923, 32
    %v1926 = vpop.permute.xlu0 %1925
    %v1928 = vadd.f32 %v1918, %v1926
    %v1929 = vtanh.pop %v1928
    %1931 = vrot.lane.b32.xlu0 %v1929, 64
    %v1932 = vpop.permute.xlu0 %1931
    %v1934 = vmul.f32 %v1916, %v1932
    %1936 = vrot.lane.b32.xlu0 %v1934, 32
    %v1937 = vpop.permute.xlu0 %1936
    %v1938 = vsel %vm215, %v1937, 0
    %1940 = vmatprep.subr.mxu0 0.0
    %1941 = vmatpush1.msra.mxu0 %v62
    %1942 = vmatprep.subr.mxu0 0.0
    %1943 = vmatpush1.msra.mxu0 %v63
    %1944 = vmatprep.subr.mxu0 0.0
    %1945 = vmatpush1.msra.mxu0 %v64
    %1946 = vmatprep.subr.mxu0 0.0
    %1947 = vmatpush1.msra.mxu0 %v65
    %1948 = vmatprep.subr.mxu0 0.0
    %1949 = vmatpush1.msra.mxu0 0.0
    %1950 = vmatprep.subr.mxu0 0.0
    %1951 = vmatpush1.msra.mxu0 0.0
    %1952 = vmatprep.subr.mxu0 0.0
    %1953 = vmatpush1.msra.mxu0 0.0
    %1954 = vmatprep.subr.mxu0 0.0
    %1955 = vmatpush1.msra.mxu0 0.0
    %1956 = vmatprep.subr.mxu0 0.0
    %1957 = vmatpush1.msra.mxu0 0.0
    %1958 = vmatprep.subr.mxu0 0.0
    %1959 = vmatpush1.msra.mxu0 0.0
    %1960 = vmatprep.subr.mxu0 0.0
    %1961 = vmatpush1.msra.mxu0 0.0
    %1962 = vmatprep.subr.mxu0 0.0
    %1963 = vmatpush1.msra.mxu0 0.0
    %1964 = vmatprep.subr.mxu0 0.0
    %1965 = vmatpush1.msra.mxu0 0.0
    %1966 = vmatprep.subr.mxu0 0.0
    %1967 = vmatpush1.msra.mxu0 0.0
    %1968 = vmatprep.subr.mxu0 0.0
    %1969 = vmatpush1.msra.mxu0 0.0
    %1970 = vmatprep.subr.mxu0 0.0
    %1971 = vmatpush1.msra.mxu0 0.0
    %1972 = vmatprep.subr.mxu0 0.0
    %1973 = vmatpush1.msra.mxu0 0.0
    %1974 = vmatprep.subr.mxu0 0.0
    %1975 = vmatpush1.msra.mxu0 0.0
    %1976 = vmatprep.subr.mxu0 0.0
    %1977 = vmatpush1.msra.mxu0 0.0
    %1978 = vmatprep.subr.mxu0 0.0
    %1979 = vmatpush1.msra.mxu0 0.0
    %1980 = vmatprep.subr.mxu0 0.0
    %1981 = vmatpush1.msra.mxu0 0.0
    %1982 = vmatprep.subr.mxu0 0.0
    %1983 = vmatpush1.msra.mxu0 0.0
    %1984 = vmatprep.subr.mxu0 0.0
    %1985 = vmatpush1.msra.mxu0 0.0
    %1986 = vmatprep.subr.mxu0 0.0
    %1987 = vmatpush1.msra.mxu0 0.0
    %1988 = vmatprep.subr.mxu0 0.0
    %1989 = vmatpush1.msra.mxu0 0.0
    %1990 = vmatprep.subr.mxu0 0.0
    %1991 = vmatpush1.msra.mxu0 0.0
    %1992 = vmatprep.subr.mxu0 0.0
    %1993 = vmatpush1.msra.mxu0 0.0
    %1994 = vmatprep.subr.mxu0 0.0
    %1995 = vmatpush1.msra.mxu0 0.0
    %1996 = vmatprep.subr.mxu0 0.0
    %1997 = vmatpush1.msra.mxu0 0.0
    %1998 = vmatprep.subr.mxu0 0.0
    %1999 = vmatpush1.msra.mxu0 0.0
    %2000 = vmatprep.subr.mxu0 0.0
    %2001 = vmatpush1.msra.mxu0 0.0
    %2002 = vmatprep.subr.mxu0 0.0
    %2003 = vmatpush1.msra.mxu0 0.0
    %2004 = vmatprep.mubr.f32.mxu0 0.0
    %2005 = vmatmul.mubr.f32.gmra.mrb[0].mxu0 %v1938
    %v2006 = vpop.f32.mrb[0].mxu0
    %v2007 = vadd.f32 %v318, %v2006
    %v2008 = vpop.f32.mrb[0].mxu0
    %2009 = vdwg.mxu0
    %2011 = vrot.lane.b32.xlu0 %v1839, 32
    %v2012 = vpop.permute.xlu0 %2011
    %v2013 = vsel %vm215, %v2012, 0
    %2015 = vmatprep.subr.mxu0 0.0
    %2016 = vmatpush1.msra.mxu0 %v58
    %2017 = vmatprep.subr.mxu0 0.0
    %2018 = vmatpush1.msra.mxu0 %v59
    %2019 = vmatprep.subr.mxu0 0.0
    %2020 = vmatpush1.msra.mxu0 %v60
    %2021 = vmatprep.subr.mxu0 0.0
    %2022 = vmatpush1.msra.mxu0 %v61
    %2023 = vmatprep.subr.mxu0 0.0
    %2024 = vmatpush1.msra.mxu0 0.0
    %2025 = vmatprep.subr.mxu0 0.0
    %2026 = vmatpush1.msra.mxu0 0.0
    %2027 = vmatprep.subr.mxu0 0.0
    %2028 = vmatpush1.msra.mxu0 0.0
    %2029 = vmatprep.subr.mxu0 0.0
    %2030 = vmatpush1.msra.mxu0 0.0
    %2031 = vmatprep.subr.mxu0 0.0
    %2032 = vmatpush1.msra.mxu0 0.0
    %2033 = vmatprep.subr.mxu0 0.0
    %2034 = vmatpush1.msra.mxu0 0.0
    %2035 = vmatprep.subr.mxu0 0.0
    %2036 = vmatpush1.msra.mxu0 0.0
    %2037 = vmatprep.subr.mxu0 0.0
    %2038 = vmatpush1.msra.mxu0 0.0
    %2039 = vmatprep.subr.mxu0 0.0
    %2040 = vmatpush1.msra.mxu0 0.0
    %2041 = vmatprep.subr.mxu0 0.0
    %2042 = vmatpush1.msra.mxu0 0.0
    %2043 = vmatprep.subr.mxu0 0.0
    %2044 = vmatpush1.msra.mxu0 0.0
    %2045 = vmatprep.subr.mxu0 0.0
    %2046 = vmatpush1.msra.mxu0 0.0
    %2047 = vmatprep.subr.mxu0 0.0
    %2048 = vmatpush1.msra.mxu0 0.0
    %2049 = vmatprep.subr.mxu0 0.0
    %2050 = vmatpush1.msra.mxu0 0.0
    %2051 = vmatprep.subr.mxu0 0.0
    %2052 = vmatpush1.msra.mxu0 0.0
    %2053 = vmatprep.subr.mxu0 0.0
    %2054 = vmatpush1.msra.mxu0 0.0
    %2055 = vmatprep.subr.mxu0 0.0
    %2056 = vmatpush1.msra.mxu0 0.0
    %2057 = vmatprep.subr.mxu0 0.0
    %2058 = vmatpush1.msra.mxu0 0.0
    %2059 = vmatprep.subr.mxu0 0.0
    %2060 = vmatpush1.msra.mxu0 0.0
    %2061 = vmatprep.subr.mxu0 0.0
    %2062 = vmatpush1.msra.mxu0 0.0
    %2063 = vmatprep.subr.mxu0 0.0
    %2064 = vmatpush1.msra.mxu0 0.0
    %2065 = vmatprep.subr.mxu0 0.0
    %2066 = vmatpush1.msra.mxu0 0.0
    %2067 = vmatprep.subr.mxu0 0.0
    %2068 = vmatpush1.msra.mxu0 0.0
    %2069 = vmatprep.subr.mxu0 0.0
    %2070 = vmatpush1.msra.mxu0 0.0
    %2071 = vmatprep.subr.mxu0 0.0
    %2072 = vmatpush1.msra.mxu0 0.0
    %2073 = vmatprep.subr.mxu0 0.0
    %2074 = vmatpush1.msra.mxu0 0.0
    %2075 = vmatprep.subr.mxu0 0.0
    %2076 = vmatpush1.msra.mxu0 0.0
    %2077 = vmatprep.subr.mxu0 0.0
    %2078 = vmatpush1.msra.mxu0 0.0
    %2079 = vmatprep.mubr.f32.mxu0 0.0
    %2080 = vmatmul.mubr.f32.gmra.mrb[0].mxu0 %v2013
    %v2081 = vpop.f32.mrb[0].mxu0
    %v2082 = vadd.f32 0.0, %v2081
    %v2083 = vpop.f32.mrb[0].mxu0
    %2084 = vdwg.mxu0
    %v2085 = vadd.f32 %v2007, %v2082
    %v2086 = vxor.u32 %v2085, 2147483648
    %v2087 = vmul.f32 %v2086, 1.442695
    %v2088 = vpow.pop %v2087
    %v2089 = vadd.f32 %v2088, 1.0
    %v2090 = vrcp.pop %v2089
    %v2091 = vmul.f32 1.0, %v2090
    %v2092 = vtanh.pop %v2085
    %v2093 = vmul.f32 %v2091, %v1833
    %2095 = vrot.lane.b32.xlu0 %v2092, 64
    %v2096 = vpop.permute.xlu0 %2095
    %v2098 = vmul.f32 %v2091, %v2096
    %2100 = vrot.lane.b32.xlu0 %v2098, 32
    %v2101 = vpop.permute.xlu0 %2100
    %v2103 = vadd.f32 %v2093, %v2101
    %v2104 = vtanh.pop %v2103
    %2106 = vrot.lane.b32.xlu0 %v2104, 64
    %v2107 = vpop.permute.xlu0 %2106
    %v2109 = vmul.f32 %v2091, %v2107
    %2110 = vmatprep.subr.mxu0 0.0
    %2111 = vmatpush1.msra.mxu0 %v54
    %2112 = vmatprep.subr.mxu0 0.0
    %2113 = vmatpush1.msra.mxu0 %v55
    %2114 = vmatprep.subr.mxu0 0.0
    %2115 = vmatpush1.msra.mxu0 %v56
    %2116 = vmatprep.subr.mxu0 0.0
    %2117 = vmatpush1.msra.mxu0 %v57
    %2118 = vmatprep.subr.mxu0 0.0
    %2119 = vmatpush1.msra.mxu0 0.0
    %2120 = vmatprep.subr.mxu0 0.0
    %2121 = vmatpush1.msra.mxu0 0.0
    %2122 = vmatprep.subr.mxu0 0.0
    %2123 = vmatpush1.msra.mxu0 0.0
    %2124 = vmatprep.subr.mxu0 0.0
    %2125 = vmatpush1.msra.mxu0 0.0
    %2126 = vmatprep.subr.mxu0 0.0
    %2127 = vmatpush1.msra.mxu0 0.0
    %2128 = vmatprep.subr.mxu0 0.0
    %2129 = vmatpush1.msra.mxu0 0.0
    %2130 = vmatprep.subr.mxu0 0.0
    %2131 = vmatpush1.msra.mxu0 0.0
    %2132 = vmatprep.subr.mxu0 0.0
    %2133 = vmatpush1.msra.mxu0 0.0
    %2134 = vmatprep.subr.mxu0 0.0
    %2135 = vmatpush1.msra.mxu0 0.0
    %2136 = vmatprep.subr.mxu0 0.0
    %2137 = vmatpush1.msra.mxu0 0.0
    %2138 = vmatprep.subr.mxu0 0.0
    %2139 = vmatpush1.msra.mxu0 0.0
    %2140 = vmatprep.subr.mxu0 0.0
    %2141 = vmatpush1.msra.mxu0 0.0
    %2142 = vmatprep.subr.mxu0 0.0
    %2143 = vmatpush1.msra.mxu0 0.0
    %2144 = vmatprep.subr.mxu0 0.0
    %2145 = vmatpush1.msra.mxu0 0.0
    %2146 = vmatprep.subr.mxu0 0.0
    %2147 = vmatpush1.msra.mxu0 0.0
    %2148 = vmatprep.subr.mxu0 0.0
    %2149 = vmatpush1.msra.mxu0 0.0
    %2150 = vmatprep.subr.mxu0 0.0
    %2151 = vmatpush1.msra.mxu0 0.0
    %2152 = vmatprep.subr.mxu0 0.0
    %2153 = vmatpush1.msra.mxu0 0.0
    %2154 = vmatprep.subr.mxu0 0.0
    %2155 = vmatpush1.msra.mxu0 0.0
    %2156 = vmatprep.subr.mxu0 0.0
    %2157 = vmatpush1.msra.mxu0 0.0
    %2158 = vmatprep.subr.mxu0 0.0
    %2159 = vmatpush1.msra.mxu0 0.0
    %2160 = vmatprep.subr.mxu0 0.0
    %2161 = vmatpush1.msra.mxu0 0.0
    %2162 = vmatprep.subr.mxu0 0.0
    %2163 = vmatpush1.msra.mxu0 0.0
    %2164 = vmatprep.subr.mxu0 0.0
    %2165 = vmatpush1.msra.mxu0 0.0
    %2166 = vmatprep.subr.mxu0 0.0
    %2167 = vmatpush1.msra.mxu0 0.0
    %2168 = vmatprep.subr.mxu0 0.0
    %2169 = vmatpush1.msra.mxu0 0.0
    %2170 = vmatprep.subr.mxu0 0.0
    %2171 = vmatpush1.msra.mxu0 0.0
    %2172 = vmatprep.subr.mxu0 0.0
    %2173 = vmatpush1.msra.mxu0 0.0
    %2174 = vmatprep.mubr.f32.mxu0 0.0
    %2175 = vmatmul.mubr.f32.gmra.mrb[0].mxu0 %v1938
    %v2176 = vpop.f32.mrb[0].mxu0
    %v2177 = vadd.f32 0.0, %v2176
    %v2178 = vpop.f32.mrb[0].mxu0
    %2179 = vdwg.mxu0
    %v2180 = vadd.f32 %v212, %v2177
    %v2181 = vxor.u32 %v2180, 2147483648
    %v2182 = vmul.f32 %v2181, 1.442695
    %v2183 = vpow.pop %v2182
    %v2184 = vadd.f32 %v2183, 1.0
    %v2185 = vrcp.pop %v2184
    %v2186 = vmul.f32 1.0, %v2185
    %v2187 = vtanh.pop %v2180
    %v2188 = vmul.f32 %v2186, %v1928
    %2190 = vrot.lane.b32.xlu0 %v2187, 64
    %v2191 = vpop.permute.xlu0 %2190
    %v2193 = vmul.f32 %v2186, %v2191
    %2195 = vrot.lane.b32.xlu0 %v2193, 32
    %v2196 = vpop.permute.xlu0 %2195
    %v2198 = vadd.f32 %v2188, %v2196
    %v2199 = vtanh.pop %v2198
    %2201 = vrot.lane.b32.xlu0 %v2199, 64
    %v2202 = vpop.permute.xlu0 %2201
    %v2204 = vmul.f32 %v2186, %v2202
    %2206 = vrot.lane.b32.xlu0 %v2204, 32
    %v2207 = vpop.permute.xlu0 %2206
    %v2208 = vsel %vm215, %v2207, 0
    %2210 = vmatprep.subr.mxu0 0.0
    %2211 = vmatpush1.msra.mxu0 %v62
    %2212 = vmatprep.subr.mxu0 0.0
    %2213 = vmatpush1.msra.mxu0 %v63
    %2214 = vmatprep.subr.mxu0 0.0
    %2215 = vmatpush1.msra.mxu0 %v64
    %2216 = vmatprep.subr.mxu0 0.0
    %2217 = vmatpush1.msra.mxu0 %v65
    %2218 = vmatprep.subr.mxu0 0.0
    %2219 = vmatpush1.msra.mxu0 0.0
    %2220 = vmatprep.subr.mxu0 0.0
    %2221 = vmatpush1.msra.mxu0 0.0
    %2222 = vmatprep.subr.mxu0 0.0
    %2223 = vmatpush1.msra.mxu0 0.0
    %2224 = vmatprep.subr.mxu0 0.0
    %2225 = vmatpush1.msra.mxu0 0.0
    %2226 = vmatprep.subr.mxu0 0.0
    %2227 = vmatpush1.msra.mxu0 0.0
    %2228 = vmatprep.subr.mxu0 0.0
    %2229 = vmatpush1.msra.mxu0 0.0
    %2230 = vmatprep.subr.mxu0 0.0
    %2231 = vmatpush1.msra.mxu0 0.0
    %2232 = vmatprep.subr.mxu0 0.0
    %2233 = vmatpush1.msra.mxu0 0.0
    %2234 = vmatprep.subr.mxu0 0.0
    %2235 = vmatpush1.msra.mxu0 0.0
    %2236 = vmatprep.subr.mxu0 0.0
    %2237 = vmatpush1.msra.mxu0 0.0
    %2238 = vmatprep.subr.mxu0 0.0
    %2239 = vmatpush1.msra.mxu0 0.0
    %2240 = vmatprep.subr.mxu0 0.0
    %2241 = vmatpush1.msra.mxu0 0.0
    %2242 = vmatprep.subr.mxu0 0.0
    %2243 = vmatpush1.msra.mxu0 0.0
    %2244 = vmatprep.subr.mxu0 0.0
    %2245 = vmatpush1.msra.mxu0 0.0
    %2246 = vmatprep.subr.mxu0 0.0
    %2247 = vmatpush1.msra.mxu0 0.0
    %2248 = vmatprep.subr.mxu0 0.0
    %2249 = vmatpush1.msra.mxu0 0.0
    %2250 = vmatprep.subr.mxu0 0.0
    %2251 = vmatpush1.msra.mxu0 0.0
    %2252 = vmatprep.subr.mxu0 0.0
    %2253 = vmatpush1.msra.mxu0 0.0
    %2254 = vmatprep.subr.mxu0 0.0
    %2255 = vmatpush1.msra.mxu0 0.0
    %2256 = vmatprep.subr.mxu0 0.0
    %2257 = vmatpush1.msra.mxu0 0.0
    %2258 = vmatprep.subr.mxu0 0.0
    %2259 = vmatpush1.msra.mxu0 0.0
    %2260 = vmatprep.subr.mxu0 0.0
    %2261 = vmatpush1.msra.mxu0 0.0
    %2262 = vmatprep.subr.mxu0 0.0
    %2263 = vmatpush1.msra.mxu0 0.0
    %2264 = vmatprep.subr.mxu0 0.0
    %2265 = vmatpush1.msra.mxu0 0.0
    %2266 = vmatprep.subr.mxu0 0.0
    %2267 = vmatpush1.msra.mxu0 0.0
    %2268 = vmatprep.subr.mxu0 0.0
    %2269 = vmatpush1.msra.mxu0 0.0
    %2270 = vmatprep.subr.mxu0 0.0
    %2271 = vmatpush1.msra.mxu0 0.0
    %2272 = vmatprep.subr.mxu0 0.0
    %2273 = vmatpush1.msra.mxu0 0.0
    %2274 = vmatprep.mubr.f32.mxu0 0.0
    %2275 = vmatmul.mubr.f32.gmra.mrb[0].mxu0 %v2208
    %v2276 = vpop.f32.mrb[0].mxu0
    %v2277 = vadd.f32 %v318, %v2276
    %v2278 = vpop.f32.mrb[0].mxu0
    %2279 = vdwg.mxu0
    %2281 = vrot.lane.b32.xlu0 %v2109, 32
    %v2282 = vpop.permute.xlu0 %2281
    %v2283 = vsel %vm215, %v2282, 0
    %2285 = vmatprep.subr.mxu0 0.0
    %2286 = vmatpush1.msra.mxu0 %v58
    %2287 = vmatprep.subr.mxu0 0.0
    %2288 = vmatpush1.msra.mxu0 %v59
    %2289 = vmatprep.subr.mxu0 0.0
    %2290 = vmatpush1.msra.mxu0 %v60
    %2291 = vmatprep.subr.mxu0 0.0
    %2292 = vmatpush1.msra.mxu0 %v61
    %2293 = vmatprep.subr.mxu0 0.0
    %2294 = vmatpush1.msra.mxu0 0.0
    %2295 = vmatprep.subr.mxu0 0.0
    %2296 = vmatpush1.msra.mxu0 0.0
    %2297 = vmatprep.subr.mxu0 0.0
    %2298 = vmatpush1.msra.mxu0 0.0
    %2299 = vmatprep.subr.mxu0 0.0
    %2300 = vmatpush1.msra.mxu0 0.0
    %2301 = vmatprep.subr.mxu0 0.0
    %2302 = vmatpush1.msra.mxu0 0.0
    %2303 = vmatprep.subr.mxu0 0.0
    %2304 = vmatpush1.msra.mxu0 0.0
    %2305 = vmatprep.subr.mxu0 0.0
    %2306 = vmatpush1.msra.mxu0 0.0
    %2307 = vmatprep.subr.mxu0 0.0
    %2308 = vmatpush1.msra.mxu0 0.0
    %2309 = vmatprep.subr.mxu0 0.0
    %2310 = vmatpush1.msra.mxu0 0.0
    %2311 = vmatprep.subr.mxu0 0.0
    %2312 = vmatpush1.msra.mxu0 0.0
    %2313 = vmatprep.subr.mxu0 0.0
    %2314 = vmatpush1.msra.mxu0 0.0
    %2315 = vmatprep.subr.mxu0 0.0
    %2316 = vmatpush1.msra.mxu0 0.0
    %2317 = vmatprep.subr.mxu0 0.0
    %2318 = vmatpush1.msra.mxu0 0.0
    %2319 = vmatprep.subr.mxu0 0.0
    %2320 = vmatpush1.msra.mxu0 0.0
    %2321 = vmatprep.subr.mxu0 0.0
    %2322 = vmatpush1.msra.mxu0 0.0
    %2323 = vmatprep.subr.mxu0 0.0
    %2324 = vmatpush1.msra.mxu0 0.0
    %2325 = vmatprep.subr.mxu0 0.0
    %2326 = vmatpush1.msra.mxu0 0.0
    %2327 = vmatprep.subr.mxu0 0.0
    %2328 = vmatpush1.msra.mxu0 0.0
    %2329 = vmatprep.subr.mxu0 0.0
    %2330 = vmatpush1.msra.mxu0 0.0
    %2331 = vmatprep.subr.mxu0 0.0
    %2332 = vmatpush1.msra.mxu0 0.0
    %2333 = vmatprep.subr.mxu0 0.0
    %2334 = vmatpush1.msra.mxu0 0.0
    %2335 = vmatprep.subr.mxu0 0.0
    %2336 = vmatpush1.msra.mxu0 0.0
    %2337 = vmatprep.subr.mxu0 0.0
    %2338 = vmatpush1.msra.mxu0 0.0
    %2339 = vmatprep.subr.mxu0 0.0
    %2340 = vmatpush1.msra.mxu0 0.0
    %2341 = vmatprep.subr.mxu0 0.0
    %2342 = vmatpush1.msra.mxu0 0.0
    %2343 = vmatprep.subr.mxu0 0.0
    %2344 = vmatpush1.msra.mxu0 0.0
    %2345 = vmatprep.subr.mxu0 0.0
    %2346 = vmatpush1.msra.mxu0 0.0
    %2347 = vmatprep.subr.mxu0 0.0
    %2348 = vmatpush1.msra.mxu0 0.0
    %2349 = vmatprep.mubr.f32.mxu0 0.0
    %2350 = vmatmul.mubr.f32.gmra.mrb[0].mxu0 %v2283
    %v2351 = vpop.f32.mrb[0].mxu0
    %v2352 = vadd.f32 0.0, %v2351
    %v2353 = vpop.f32.mrb[0].mxu0
    %2354 = vdwg.mxu0
    %v2355 = vadd.f32 %v2277, %v2352
    %v2356 = vxor.u32 %v2355, 2147483648
    %v2357 = vmul.f32 %v2356, 1.442695
    %v2358 = vpow.pop %v2357
    %v2359 = vadd.f32 %v2358, 1.0
    %v2360 = vrcp.pop %v2359
    %v2361 = vmul.f32 1.0, %v2360
    %v2362 = vtanh.pop %v2355
    %v2363 = vmul.f32 %v2361, %v2103
    %2365 = vrot.lane.b32.xlu0 %v2362, 64
    %v2366 = vpop.permute.xlu0 %2365
    %v2368 = vmul.f32 %v2361, %v2366
    %2370 = vrot.lane.b32.xlu0 %v2368, 32
    %v2371 = vpop.permute.xlu0 %2370
    %v2373 = vadd.f32 %v2363, %v2371
    %v2374 = vtanh.pop %v2373
    %2376 = vrot.lane.b32.xlu0 %v2374, 64
    %v2377 = vpop.permute.xlu0 %2376
    %v2379 = vmul.f32 %v2361, %v2377
    %2381 = vrot.lane.b32.xlu0 %v759, 64
    %v2382 = vpop.permute.xlu0 %2381
    %2384 = vrot.lane.b32.xlu0 %v1029, 96
    %v2385 = vpop.permute.xlu0 %2384
    %2388 = vrot.lane.b32.xlu0 %v1839, 64
    %v2389 = vpop.permute.xlu0 %2388
    %2391 = vrot.lane.b32.xlu0 %v2109, 96
    %v2392 = vpop.permute.xlu0 %2391
    %v2394 = vsel %vm215, %v662, %v2382
    %vm2395 = vcmask 523264
    %v2396 = vsel %vm2395, %v2394, %v2385
    %vm2397 = vcmask 785408
    %v2398 = vsel %vm2397, %v2396, %v1299
    %v2399 = vsel %vm215, %v1742, %v2389
    %v2400 = vsel %vm2395, %v2399, %v2392
    %v2401 = vsel %vm2397, %v2400, %v2379
    %v2402 = vld [vmem:[#allocation2] sm:$0xff]
    %v2403 = vld [vmem:[#allocation2 + $0x8] sm:$0xff]
    %v2404 = vld [vmem:[#allocation2 + $0x10] sm:$0xff]
    %v2405 = vld [vmem:[#allocation2 + $0x18] sm:$0xff]
    %v2406 = vld [vmem:[#allocation2 + $0x20] sm:$0xff]
    %v2407 = vld [vmem:[#allocation2 + $0x28] sm:$0xff]
    %v2408 = vld [vmem:[#allocation2 + $0x30] sm:$0xff]
    %v2409 = vld [vmem:[#allocation2 + $0x38] sm:$0xff]
    %v2410 = vld [vmem:[#allocation2 + $0x40] sm:$0xff]
    %v2411 = vld [vmem:[#allocation2 + $0x48] sm:$0xff]
    %v2412 = vld [vmem:[#allocation2 + $0x50] sm:$0xff]
    %v2413 = vld [vmem:[#allocation2 + $0x58] sm:$0xff]
    %v2414 = vld [vmem:[#allocation2 + $0x60] sm:$0xff]
    %v2415 = vld [vmem:[#allocation2 + $0x68] sm:$0xff]
    %v2416 = vld [vmem:[#allocation2 + $0x70] sm:$0xff]
    %v2417 = vld [vmem:[#allocation2 + $0x78] sm:$0xff]
    %v2418 = vld [vmem:[#allocation2 + $0x80] sm:$0xff]
    %v2419 = vld [vmem:[#allocation2 + $0x88] sm:$0xff]
    %v2420 = vld [vmem:[#allocation2 + $0x90] sm:$0xff]
    %v2421 = vld [vmem:[#allocation2 + $0x98] sm:$0xff]
    %v2422 = vld [vmem:[#allocation2 + $0xa0] sm:$0xff]
    %v2423 = vld [vmem:[#allocation2 + $0xa8] sm:$0xff]
    %v2424 = vld [vmem:[#allocation2 + $0xb0] sm:$0xff]
    %v2425 = vld [vmem:[#allocation2 + $0xb8] sm:$0xff]
    %v2426 = vld [vmem:[#allocation2 + $0xc0] sm:$0xff]
    %v2427 = vld [vmem:[#allocation2 + $0xc8] sm:$0xff]
    %v2428 = vld [vmem:[#allocation2 + $0xd0] sm:$0xff]
    %v2429 = vld [vmem:[#allocation2 + $0xd8] sm:$0xff]
    %v2430 = vld [vmem:[#allocation2 + $0xe0] sm:$0xff]
    %v2431 = vld [vmem:[#allocation2 + $0xe8] sm:$0xff]
    %v2432 = vld [vmem:[#allocation2 + $0xf0] sm:$0xff]
    %v2433 = vld [vmem:[#allocation2 + $0xf8] sm:$0xff]
    %v2434 = vld [vmem:[#allocation2 + $0x100] sm:$0xff]
    %v2435 = vld [vmem:[#allocation2 + $0x108] sm:$0xff]
    %v2436 = vld [vmem:[#allocation2 + $0x110] sm:$0xff]
    %v2437 = vld [vmem:[#allocation2 + $0x118] sm:$0xff]
    %v2438 = vld [vmem:[#allocation2 + $0x120] sm:$0xff]
    %v2439 = vld [vmem:[#allocation2 + $0x128] sm:$0xff]
    %v2440 = vld [vmem:[#allocation2 + $0x130] sm:$0xff]
    %v2441 = vld [vmem:[#allocation2 + $0x138] sm:$0xff]
    %v2442 = vld [vmem:[#allocation2 + $0x140] sm:$0xff]
    %v2443 = vld [vmem:[#allocation2 + $0x148] sm:$0xff]
    %v2444 = vld [vmem:[#allocation2 + $0x150] sm:$0xff]
    %v2445 = vld [vmem:[#allocation2 + $0x158] sm:$0xff]
    %v2446 = vld [vmem:[#allocation2 + $0x160] sm:$0xff]
    %v2447 = vld [vmem:[#allocation2 + $0x168] sm:$0xff]
    %v2448 = vld [vmem:[#allocation2 + $0x170] sm:$0xff]
    %v2449 = vld [vmem:[#allocation2 + $0x178] sm:$0xff]
    %v2450 = vld [vmem:[#allocation2 + $0x180] sm:$0xff]
    %v2451 = vld [vmem:[#allocation2 + $0x188] sm:$0xff]
    %v2452 = vld [vmem:[#allocation2 + $0x190] sm:$0xff]
    %v2453 = vld [vmem:[#allocation2 + $0x198] sm:$0xff]
    %v2454 = vld [vmem:[#allocation2 + $0x1a0] sm:$0xff]
    %v2455 = vld [vmem:[#allocation2 + $0x1a8] sm:$0xff]
    %v2456 = vld [vmem:[#allocation2 + $0x1b0] sm:$0xff]
    %v2457 = vld [vmem:[#allocation2 + $0x1b8] sm:$0xff]
    %v2458 = vld [vmem:[#allocation2 + $0x1c0] sm:$0xff]
    %v2459 = vld [vmem:[#allocation2 + $0x1c8] sm:$0xff]
    %v2460 = vld [vmem:[#allocation2 + $0x1d0] sm:$0xff]
    %v2461 = vld [vmem:[#allocation2 + $0x1d8] sm:$0xff]
    %v2462 = vld [vmem:[#allocation2 + $0x1e0] sm:$0xff]
    %v2463 = vld [vmem:[#allocation2 + $0x1e8] sm:$0xff]
    %v2464 = vld [vmem:[#allocation2 + $0x1f0] sm:$0xff]
    %v2465 = vld [vmem:[#allocation2 + $0x1f8] sm:$0xff]
    %v2466 = vld [vmem:[%s8] sm:$0x3]
    %v2468 = vlaneseq
    %v2469 = vshrl.u32 %v2468, 7
    %v2470 = vsub.s32 0, %v2469
    %v2471 = vrot.slane %v2466, %v2470
    %v2472 = vlaneseq
    %v2473 = vshrl.u32 %v2472, 7
    %v2474 = vsub.s32 1, %v2473
    %v2475 = vrot.slane %v2466, %v2474
    %2478 = vmatprep.subr.mxu0 %v2403
    %2479 = vmatpush1.msra.mxu0 %v2402
    %2480 = vmatprep.subr.mxu0 %v2405
    %2481 = vmatpush1.msra.mxu0 %v2404
    %2482 = vmatprep.subr.mxu0 %v2407
    %2483 = vmatpush1.msra.mxu0 %v2406
    %2484 = vmatprep.subr.mxu0 %v2409
    %2485 = vmatpush1.msra.mxu0 %v2408
    %2486 = vmatprep.subr.mxu0 %v2411
    %2487 = vmatpush1.msra.mxu0 %v2410
    %2488 = vmatprep.subr.mxu0 %v2413
    %2489 = vmatpush1.msra.mxu0 %v2412
    %2490 = vmatprep.subr.mxu0 %v2415
    %2491 = vmatpush1.msra.mxu0 %v2414
    %2492 = vmatprep.subr.mxu0 %v2417
    %2493 = vmatpush1.msra.mxu0 %v2416
    %2494 = vmatprep.subr.mxu0 %v2419
    %2495 = vmatpush1.msra.mxu0 %v2418
    %2496 = vmatprep.subr.mxu0 %v2421
    %2497 = vmatpush1.msra.mxu0 %v2420
    %2498 = vmatprep.subr.mxu0 %v2423
    %2499 = vmatpush1.msra.mxu0 %v2422
    %2500 = vmatprep.subr.mxu0 %v2425
    %2501 = vmatpush1.msra.mxu0 %v2424
    %2502 = vmatprep.subr.mxu0 %v2427
    %2503 = vmatpush1.msra.mxu0 %v2426
    %2504 = vmatprep.subr.mxu0 %v2429
    %2505 = vmatpush1.msra.mxu0 %v2428
    %2506 = vmatprep.subr.mxu0 %v2431
    %2507 = vmatpush1.msra.mxu0 %v2430
    %2508 = vmatprep.subr.mxu0 %v2433
    %2509 = vmatpush1.msra.mxu0 %v2432
    %2510 = vmatprep.subr.mxu0 %v2435
    %2511 = vmatpush1.msra.mxu0 %v2434
    %2512 = vmatprep.subr.mxu0 %v2437
    %2513 = vmatpush1.msra.mxu0 %v2436
    %2514 = vmatprep.subr.mxu0 %v2439
    %2515 = vmatpush1.msra.mxu0 %v2438
    %2516 = vmatprep.subr.mxu0 %v2441
    %2517 = vmatpush1.msra.mxu0 %v2440
    %2518 = vmatprep.subr.mxu0 %v2443
    %2519 = vmatpush1.msra.mxu0 %v2442
    %2520 = vmatprep.subr.mxu0 %v2445
    %2521 = vmatpush1.msra.mxu0 %v2444
    %2522 = vmatprep.subr.mxu0 %v2447
    %2523 = vmatpush1.msra.mxu0 %v2446
    %2524 = vmatprep.subr.mxu0 %v2449
    %2525 = vmatpush1.msra.mxu0 %v2448
    %2526 = vmatprep.subr.mxu0 %v2451
    %2527 = vmatpush1.msra.mxu0 %v2450
    %2528 = vmatprep.subr.mxu0 %v2453
    %2529 = vmatpush1.msra.mxu0 %v2452
    %2530 = vmatprep.subr.mxu0 %v2455
    %2531 = vmatpush1.msra.mxu0 %v2454
    %2532 = vmatprep.subr.mxu0 %v2457
    %2533 = vmatpush1.msra.mxu0 %v2456
    %2534 = vmatprep.subr.mxu0 %v2459
    %2535 = vmatpush1.msra.mxu0 %v2458
    %2536 = vmatprep.subr.mxu0 %v2461
    %2537 = vmatpush1.msra.mxu0 %v2460
    %2538 = vmatprep.subr.mxu0 %v2463
    %2539 = vmatpush1.msra.mxu0 %v2462
    %2540 = vmatprep.subr.mxu0 %v2465
    %2541 = vmatpush1.msra.mxu0 %v2464
    %2542 = vmatprep.mubr.f32.mxu0 %v2401
    %2543 = vmatmul.mubr.f32.gmra.mrb[0].mxu0 %v2398
    %v2544 = vpop.f32.mrb[0].mxu0
    %v2545 = vadd.f32 %v2471, %v2544
    %v2546 = vpop.f32.mrb[0].mxu0
    %v2547 = vadd.f32 %v2475, %v2546
    %2548 = vdwg.mxu0
    %v2549 = vrot.slane %v2545, 4
    %v2550 = vadd.f32 %v2545, %v2549
    %v2551 = vrot.slane %v2550, 2
    %v2552 = vadd.f32 %v2550, %v2551
    %v2553 = vrot.slane %v2552, 1
    %v2554 = vadd.f32 %v2552, %v2553
    %v2555 = vrot.slane %v2547, 4
    %v2556 = vadd.f32 %v2547, %v2555
    %v2557 = vrot.slane %v2556, 2
    %v2558 = vadd.f32 %v2556, %v2557
    %v2559 = vrot.slane %v2558, 1
    %v2560 = vadd.f32 %v2558, %v2559
    %v2561 = vrcp.pop 8.0
    %v2562 = vmul.f32 %v2554, %v2561
    %v2563 = vmul.f32 %v2560, %v2561
    %v2564 = vsub.f32 %v2545, %v2562
    %v2565 = vsub.f32 %v2547, %v2563
    %v2566 = vmul.f32 %v2564, %v2564
    %v2567 = vmul.f32 %v2565, %v2565
    %v2568 = vrot.slane %v2566, 4
    %v2569 = vadd.f32 %v2566, %v2568
    %v2570 = vrot.slane %v2569, 2
    %v2571 = vadd.f32 %v2569, %v2570
    %v2572 = vrot.slane %v2571, 1
    %v2573 = vadd.f32 %v2571, %v2572
    %v2574 = vrot.slane %v2567, 4
    %v2575 = vadd.f32 %v2567, %v2574
    %v2576 = vrot.slane %v2575, 2
    %v2577 = vadd.f32 %v2575, %v2576
    %v2578 = vrot.slane %v2577, 1
    %v2579 = vadd.f32 %v2577, %v2578
    %v2580 = vmul.f32 %v2573, %v2561
    %v2581 = vmul.f32 %v2579, %v2561
    %v2582 = vadd.f32 %v2580, 1e-05
    %v2583 = vadd.f32 %v2581, 1e-05
    %v2584 = vrsqrt.pop %v2582
    %v2585 = vrsqrt.pop %v2583
    %v2586 = vmul.f32 %v2564, %v2584
    %v2587 = vmul.f32 %v2565, %v2585
    %v2588 = vld [vmem:[%s9] sm:$0x3]
    %v2590 = vlaneseq
    %v2591 = vshrl.u32 %v2590, 7
    %v2592 = vsub.s32 0, %v2591
    %v2593 = vrot.slane %v2588, %v2592
    %v2594 = vlaneseq
    %v2595 = vshrl.u32 %v2594, 7
    %v2596 = vsub.s32 1, %v2595
    %v2597 = vrot.slane %v2588, %v2596
    %v2600 = vmul.f32 %v2586, %v2593
    %v2601 = vmul.f32 %v2587, %v2597
    %v2602 = vld [vmem:[%s10] sm:$0x3]
    %v2604 = vlaneseq
    %v2605 = vshrl.u32 %v2604, 7
    %v2606 = vsub.s32 0, %v2605
    %v2607 = vrot.slane %v2602, %v2606
    %v2608 = vlaneseq
    %v2609 = vshrl.u32 %v2608, 7
    %v2610 = vsub.s32 1, %v2609
    %v2611 = vrot.slane %v2602, %v2610
    %v2614 = vadd.f32 %v2600, %v2607
    %v2615 = vadd.f32 %v2601, %v2611
    %vm2616 = vcmp.ge.f32.partialorder %v2614, 0.0
    %vm2617 = vcmp.ge.f32.partialorder %v2615, 0.0
    %v2618 = vmul.f32 %v2614, 0.2
    %v2619 = vmul.f32 %v2615, 0.2
    %v2620 = vsel %vm2616, %v2614, %v2618
    %v2621 = vsel %vm2617, %v2615, %v2619
    %v2622 = vsel %vm215, %v2620, -inf
    %2623 = vmax.xlane.f32.xlu0 %v2622
    %v2624 = vpop.xlane.xlu0 %2623
    %v2625 = vsub.f32 %v2620, %v2624
    %v2626 = vmul.f32 %v2625, 1.442695
    %v2627 = vpow.pop %v2626
    %v2628 = vsel %vm215, %v2627, 0.0
    %2629 = vadd.xlane.f32.xlu0 %v2628
    %v2630 = vpop.xlane.xlu0 %2629
    %v2631 = vlog2.pop %v2630
    %v2632 = vmul.f32 %v2631, 0.6931472
    %v2633 = vsub.f32 %v2625, %v2632
    %vm2634 = vcmask 523520
    %v2635 = vsel %vm2634, %v2620, -inf
    %2636 = vmax.xlane.f32.xlu0 %v2635
    %v2637 = vpop.xlane.xlu0 %2636
    %v2638 = vsub.f32 %v2620, %v2637
    %v2639 = vmul.f32 %v2638, 1.442695
    %v2640 = vpow.pop %v2639
    %2642 = vrot.lane.b32.xlu0 %v2640, 96
    %v2643 = vpop.permute.xlu0 %2642
    %v2645 = vsel %vm215, %v2643, 0.0
    %2646 = vadd.xlane.f32.xlu0 %v2645
    %v2647 = vpop.xlane.xlu0 %2646
    %v2648 = vlog2.pop %v2647
    %v2649 = vmul.f32 %v2648, 0.6931472
    %v2650 = vsub.f32 %v2638, %v2649
    %vm2651 = vcmask 785920
    %v2652 = vsel %vm2651, %v2620, -inf
    %2653 = vmax.xlane.f32.xlu0 %v2652
    %v2654 = vpop.xlane.xlu0 %2653
    %v2655 = vsub.f32 %v2620, %v2654
    %v2656 = vmul.f32 %v2655, 1.442695
    %v2657 = vpow.pop %v2656
    %2659 = vrot.lane.b32.xlu0 %v2657, 64
    %v2660 = vpop.permute.xlu0 %2659
    %v2662 = vsel %vm215, %v2660, 0.0
    %2663 = vadd.xlane.f32.xlu0 %v2662
    %v2664 = vpop.xlane.xlu0 %2663
    %v2665 = vlog2.pop %v2664
    %v2666 = vmul.f32 %v2665, 0.6931472
    %v2667 = vsub.f32 %v2655, %v2666
    %vm2668 = vcmask 1048320
    %v2669 = vsel %vm2668, %v2620, -inf
    %2670 = vmax.xlane.f32.xlu0 %v2669
    %v2671 = vpop.xlane.xlu0 %2670
    %v2672 = vsub.f32 %v2620, %v2671
    %v2673 = vmul.f32 %v2672, 1.442695
    %v2674 = vpow.pop %v2673
    %2676 = vrot.lane.b32.xlu0 %v2674, 32
    %v2677 = vpop.permute.xlu0 %2676
    %v2679 = vsel %vm215, %v2677, 0.0
    %2680 = vadd.xlane.f32.xlu0 %v2679
    %v2681 = vpop.xlane.xlu0 %2680
    %v2682 = vlog2.pop %v2681
    %v2683 = vmul.f32 %v2682, 0.6931472
    %v2684 = vsub.f32 %v2672, %v2683
    %v2685 = vsel %vm215, %v2621, -inf
    %2686 = vmax.xlane.f32.xlu0 %v2685
    %v2687 = vpop.xlane.xlu0 %2686
    %v2688 = vsub.f32 %v2621, %v2687
    %v2689 = vmul.f32 %v2688, 1.442695
    %v2690 = vpow.pop %v2689
    %v2691 = vsel %vm215, %v2690, 0.0
    %2692 = vadd.xlane.f32.xlu0 %v2691
    %v2693 = vpop.xlane.xlu0 %2692
    %v2694 = vlog2.pop %v2693
    %v2695 = vmul.f32 %v2694, 0.6931472
    %v2696 = vsub.f32 %v2688, %v2695
    %v2697 = vsel %vm2634, %v2621, -inf
    %2698 = vmax.xlane.f32.xlu0 %v2697
    %v2699 = vpop.xlane.xlu0 %2698
    %v2700 = vsub.f32 %v2621, %v2699
    %v2701 = vmul.f32 %v2700, 1.442695
    %v2702 = vpow.pop %v2701
    %2704 = vrot.lane.b32.xlu0 %v2702, 96
    %v2705 = vpop.permute.xlu0 %2704
    %v2707 = vsel %vm215, %v2705, 0.0
    %2708 = vadd.xlane.f32.xlu0 %v2707
    %v2709 = vpop.xlane.xlu0 %2708
    %v2710 = vlog2.pop %v2709
    %v2711 = vmul.f32 %v2710, 0.6931472
    %v2712 = vsub.f32 %v2700, %v2711
    %v2713 = vsel %vm2651, %v2621, -inf
    %2714 = vmax.xlane.f32.xlu0 %v2713
    %v2715 = vpop.xlane.xlu0 %2714
    %v2716 = vsub.f32 %v2621, %v2715
    %v2717 = vmul.f32 %v2716, 1.442695
    %v2718 = vpow.pop %v2717
    %2720 = vrot.lane.b32.xlu0 %v2718, 64
    %v2721 = vpop.permute.xlu0 %2720
    %v2723 = vsel %vm215, %v2721, 0.0
    %2724 = vadd.xlane.f32.xlu0 %v2723
    %v2725 = vpop.xlane.xlu0 %2724
    %v2726 = vlog2.pop %v2725
    %v2727 = vmul.f32 %v2726, 0.6931472
    %v2728 = vsub.f32 %v2716, %v2727
    %v2729 = vsel %vm2668, %v2621, -inf
    %2730 = vmax.xlane.f32.xlu0 %v2729
    %v2731 = vpop.xlane.xlu0 %2730
    %v2732 = vsub.f32 %v2621, %v2731
    %v2733 = vmul.f32 %v2732, 1.442695
    %v2734 = vpow.pop %v2733
    %2736 = vrot.lane.b32.xlu0 %v2734, 32
    %v2737 = vpop.permute.xlu0 %2736
    %v2739 = vsel %vm215, %v2737, 0.0
    %2740 = vadd.xlane.f32.xlu0 %v2739
    %v2741 = vpop.xlane.xlu0 %2740
    %v2742 = vlog2.pop %v2741
    %v2743 = vmul.f32 %v2742, 0.6931472
    %v2744 = vsub.f32 %v2732, %v2743
    %v2745 = vsel %vm215, %v2633, %v2650
    %v2746 = vsel %vm2395, %v2745, %v2667
    %v2747 = vsel %vm2397, %v2746, %v2684
    %v2748 = vsel %vm215, %v2696, %v2712
    %v2749 = vsel %vm2395, %v2748, %v2728
    %v2750 = vsel %vm2397, %v2749, %v2744
    %2751 = vst [vmem:[%s11] sm:$0xff] %v2747
    %2752 = vst [vmem:[%s11 + $0x8] sm:$0xff] %v2750
    // Predicated region
    $region50: #{generator_forward.1} parent=1 // pred_check
      _
    $region51: #{generator_forward.1} parent=1 // pred_check_branch
      %2754 = sbr.rel (0) target = $region53
    $region52: #{generator_forward.1} parent=1 // pred_region
      _
    $region53: #{generator_forward.1} parent=1 // pred_fallthru
      _
    // Predicated region
    $region54: #{generator_forward.1} parent=1 // pred_check
      _
    $region55: #{generator_forward.1} parent=1 // pred_check_branch
      %2756 = sbr.rel (0) target = $region57
    $region56: #{generator_forward.1} parent=1 // pred_region
      _
    $region57: #{generator_forward.1} parent=1 // pred_fallthru
      _
    %2757 = vsyncpa [#allocation3], 1

</llo_original>
